<compile_context>
chip_gen: v7x
topology: tpu7x:2x2x1
jax: 0.10.0
libtpu: 0.0.40
codegen_flags: <defaults>
</compile_context>

<pallas_src>
import math
import jax
import jax.numpy as jnp
from jax.experimental import pallas as pl
from jax.experimental.pallas import tpu as pltpu

# ------------------------- synthetic BERT config (small) -------------------------
VOCAB = 100
HIDDEN = 32
N_HEADS = 4
HEAD_DIM = HIDDEN // N_HEADS
INTERMEDIATE = 64
N_LAYERS = 2
MAX_POS = 16
NUM_CLASSES = 2
SEQ = 8
BATCH = 2
LN_EPS = 1e-12
LOGITS_PAD = 128            # lane-dense logits slab width (>= NUM_CLASSES)


def _layernorm(x, gamma, beta):
    mu = jnp.mean(x, axis=-1, keepdims=True)
    var = jnp.mean((x - mu) ** 2, axis=-1, keepdims=True)
    return (x - mu) * jax.lax.rsqrt(var + LN_EPS) * gamma + beta


# ------------------------------- fused Pallas kernel ------------------------------
def fused_bert_kernel(x_ref, bias_ref, embln_ref,
                      wqkv_ref, bqkv_ref, wo_ref,
                      w1_ref, b1_ref, w2_ref, hvec_ref,
                      wc_ref, bc_ref, o_ref):
    # x_ref:    (R, H)  summed embeddings, R = B*S
    # bias_ref: (R, R)  additive attention bias (padding + cross-batch masking)
    # embln_ref:(2, H)  [emb_gamma; emb_beta]
    # per-layer slabs stacked over L: wqkv (L,H,3H), bqkv (L,1,3H), wo (L,H,H),
    #   w1 (L,H,I), b1 (L,1,I), w2 (L,I,H), hvec (L,6,H)=[bo,g1,be1,b2,g2,be2]
    # wc_ref: (H, 128) zero-padded classifier weight; bc_ref: (1, 128)
    x = _layernorm(x_ref[...], embln_ref[0:1, :], embln_ref[1:2, :])
    bias = bias_ref[...]
    scale = 1.0 / math.sqrt(HEAD_DIM)

    for li in range(N_LAYERS):               # static unroll; weights resident in VMEM
        hv = hvec_ref[li]                    # (6, H)

        # ---- fused QKV projection: one (R,H)x(H,3H) MXU pass ----
        qkv = jnp.dot(x, wqkv_ref[li], preferred_element_type=jnp.float32) + bqkv_ref[li]

        # ---- head-major stacks -> single batched contractions over all heads ----
        q = jnp.stack([qkv[:, h * HEAD_DIM:(h + 1) * HEAD_DIM]
                       for h in range(N_HEADS)], axis=0)                       # (NH,R,D)
        k = jnp.stack([qkv[:, HIDDEN + h * HEAD_DIM:HIDDEN + (h + 1) * HEAD_DIM]
                       for h in range(N_HEADS)], axis=0)
        v = jnp.stack([qkv[:, 2 * HIDDEN + h * HEAD_DIM:2 * HIDDEN + (h + 1) * HEAD_DIM]
                       for h in range(N_HEADS)], axis=0)

        s = jnp.einsum('nqd,nkd->nqk', q, k,
                       preferred_element_type=jnp.float32) * scale             # (NH,R,R)
        s = s + bias[None, :, :]
        s = s - jnp.max(s, axis=-1, keepdims=True)
        p = jnp.exp(s)
        p = p * pl.reciprocal(jnp.sum(p, axis=-1, keepdims=True), approx=True)
        ctx = jnp.einsum('nqk,nkd->nqd', p, v,
                         preferred_element_type=jnp.float32)                   # (NH,R,D)
        ctx = jnp.concatenate([ctx[h] for h in range(N_HEADS)], axis=-1)       # (R,H)

        attn = jnp.dot(ctx, wo_ref[li], preferred_element_type=jnp.float32) + hv[0:1, :]
        x = _layernorm(x + attn, hv[1:2, :], hv[2:3, :])

        hmid = jnp.dot(x, w1_ref[li], preferred_element_type=jnp.float32) + b1_ref[li]
        hmid = jax.nn.gelu(hmid, approximate=True)  # TODO(synk): HF BERT uses exact erf-GELU
        ffn = jnp.dot(hmid, w2_ref[li], preferred_element_type=jnp.float32) + hv[3:4, :]
        x = _layernorm(x + ffn, hv[4:5, :], hv[5:6, :])

    # ---- classifier epilogue: lane-dense (R, 128) logits slab ----
    o_ref[...] = jnp.dot(x, wc_ref[...], preferred_element_type=jnp.float32) + bc_ref[...]


# ----------------------------- wrapper / param packing ----------------------------
def _full_spec(shape):
    zeros = (0,) * len(shape)
    return pl.BlockSpec(shape, lambda i: zeros)


def _pack_params(params):
    """Pack per-layer dict params into stacked, DMA-friendly slabs (plain JAX)."""
    L = params["layers"]
    # NOTE: weights are assumed already in (in, out) layout (PyTorch nn.Linear
    # weights must be transposed when importing real checkpoints).
    wqkv = jnp.stack([jnp.concatenate([lp["wq"], lp["wk"], lp["wv"]], axis=1) for lp in L])
    bqkv = jnp.stack([jnp.concatenate([lp["bq"], lp["bk"], lp["bv"]], axis=1) for lp in L])
    wo = jnp.stack([lp["wo"] for lp in L])
    w1 = jnp.stack([lp["w1"] for lp in L])
    b1 = jnp.stack([lp["b1"] for lp in L])
    w2 = jnp.stack([lp["w2"] for lp in L])
    hvec = jnp.stack([jnp.concatenate([lp["bo"], lp["g1"], lp["be1"],
                                       lp["b2"], lp["g2"], lp["be2"]], axis=0) for lp in L])
    emb_ln = jnp.concatenate([params["emb_g"], params["emb_b"]], axis=0)
    wc = jnp.zeros((HIDDEN, LOGITS_PAD), jnp.float32).at[:, :NUM_CLASSES].set(params["clf_w"])
    bc = jnp.zeros((1, LOGITS_PAD), jnp.float32).at[:, :NUM_CLASSES].set(params["clf_b"])
    return dict(wqkv=wqkv, bqkv=bqkv, wo=wo, w1=w1, b1=b1, w2=w2,
                hvec=hvec, emb_ln=emb_ln, wc=wc, bc=bc)


@jax.jit
def bert_model_forward(ids, params):
    # mask = torch.where(x != 0, 1, 0)
    ids = ids.astype(jnp.int32)
    B, S = ids.shape
    R = B * S
    mask = (ids != 0)

    # embeddings (gather is glue, plain JAX), flattened to (B*S, H)
    emb = (params["word_emb"][ids]
           + params["pos_emb"][None, :S, :]
           + params["type_emb"][0][None, None, :])
    x = emb.reshape(R, HIDDEN).astype(jnp.float32)

    # additive attention bias over the flattened token axis (HF-style -10000 for
    # padding keys; -10000 also for cross-batch pairs, which exp() underflows to
    # exactly 0, so the merged-batch attention equals per-batch attention).
    row_batch = jnp.arange(R, dtype=jnp.int32) // S
    same_batch = row_batch[:, None] == row_batch[None, :]
    key_ok = mask.reshape(R)[None, :]
    attn_bias = jnp.where(same_batch & key_ok, 0.0, -10000.0).astype(jnp.float32)

    p = _pack_params(params)

    logits_slab = pl.pallas_call(
        fused_bert_kernel,
        out_shape=jax.ShapeDtypeStruct((R, LOGITS_PAD), jnp.float32),
        grid=(1,),
        in_specs=[_full_spec((R, HIDDEN)),
                  _full_spec((R, R)),
                  _full_spec((2, HIDDEN)),
                  _full_spec((N_LAYERS, HIDDEN, 3 * HIDDEN)),
                  _full_spec((N_LAYERS, 1, 3 * HIDDEN)),
                  _full_spec((N_LAYERS, HIDDEN, HIDDEN)),
                  _full_spec((N_LAYERS, HIDDEN, INTERMEDIATE)),
                  _full_spec((N_LAYERS, 1, INTERMEDIATE)),
                  _full_spec((N_LAYERS, INTERMEDIATE, HIDDEN)),
                  _full_spec((N_LAYERS, 6, HIDDEN)),
                  _full_spec((HIDDEN, LOGITS_PAD)),
                  _full_spec((1, LOGITS_PAD))],
        out_specs=_full_spec((R, LOGITS_PAD)),
        compiler_params=pltpu.CompilerParams(dimension_semantics=("arbitrary",)),
    )(x, attn_bias, p["emb_ln"], p["wqkv"], p["bqkv"], p["wo"],
      p["w1"], p["b1"], p["w2"], p["hvec"], p["wc"], p["bc"])

    # bert_base(...)[0][:, 0, :] -> CLS rows (s == 0), then first NUM_CLASSES lanes
    logits = logits_slab.reshape(B, S, LOGITS_PAD)[:, 0, :NUM_CLASSES]
    return logits.astype(jnp.float32)


# ------------------------------- deterministic init --------------------------------
def init_params(key):
    def nrm(k, shape):
        return (0.02 * jax.random.normal(k, shape)).astype(jnp.float32)

    keys = jax.random.split(key, 8 + N_LAYERS)
    params = {
        "word_emb": nrm(keys[0], (VOCAB, HIDDEN)),
        "pos_emb": nrm(keys[1], (MAX_POS, HIDDEN)),
        "type_emb": nrm(keys[2], (2, HIDDEN)),
        "emb_g": jnp.ones((1, HIDDEN), jnp.float32),
        "emb_b": jnp.zeros((1, HIDDEN), jnp.float32),
        "clf_w": nrm(keys[3], (HIDDEN, NUM_CLASSES)),
        "clf_b": jnp.zeros((1, NUM_CLASSES), jnp.float32),
        "layers": [],
    }
    for li in range(N_LAYERS):
        lk = jax.random.split(keys[8 + li], 6)
        params["layers"].append({
            "wq": nrm(lk[0], (HIDDEN, HIDDEN)), "bq": jnp.zeros((1, HIDDEN), jnp.float32),
            "wk": nrm(lk[1], (HIDDEN, HIDDEN)), "bk": jnp.zeros((1, HIDDEN), jnp.float32),
            "wv": nrm(lk[2], (HIDDEN, HIDDEN)), "bv": jnp.zeros((1, HIDDEN), jnp.float32),
            "wo": nrm(lk[3], (HIDDEN, HIDDEN)), "bo": jnp.zeros((1, HIDDEN), jnp.float32),
            "g1": jnp.ones((1, HIDDEN), jnp.float32), "be1": jnp.zeros((1, HIDDEN), jnp.float32),
            "w1": nrm(lk[4], (HIDDEN, INTERMEDIATE)),
            "b1": jnp.zeros((1, INTERMEDIATE), jnp.float32),
            "w2": nrm(lk[5], (INTERMEDIATE, HIDDEN)),
            "b2": jnp.zeros((1, HIDDEN), jnp.float32),
            "g2": jnp.ones((1, HIDDEN), jnp.float32), "be2": jnp.zeros((1, HIDDEN), jnp.float32),
        })
    return params


if __name__ == "__main__":
    key = jax.random.PRNGKey(0)
    k_ids, k_params = jax.random.split(key)

    # token ids; 0 acts as padding id and is masked out of attention
    ids = jax.random.randint(k_ids, (BATCH, SEQ), 0, VOCAB, dtype=jnp.int32)
    ids = ids.at[:, -2:].set(0)  # force some padding so the mask path is exercised

    params = init_params(k_params)

    logits = bert_model_forward(ids, params)
    logits = jax.block_until_ready(logits)

    assert logits.shape == (BATCH, NUM_CLASSES)
    assert logits.dtype == jnp.float32
    assert bool(jnp.all(jnp.isfinite(logits)))
    print("KERNEL_OK")
</pallas_src>

<mosaic_0001>
module attributes {stable_mosaic.version = 11 : i64} {
  func.func @fused_bert_kernel(%arg0: i32, %arg1: memref<16x32xf32, #tpu.memory_space<vmem>>, %arg2: memref<16x16xf32, #tpu.memory_space<vmem>>, %arg3: memref<2x32xf32, #tpu.memory_space<vmem>>, %arg4: memref<2x32x96xf32, #tpu.memory_space<vmem>>, %arg5: memref<2x1x96xf32, #tpu.memory_space<vmem>>, %arg6: memref<2x32x32xf32, #tpu.memory_space<vmem>>, %arg7: memref<2x32x64xf32, #tpu.memory_space<vmem>>, %arg8: memref<2x1x64xf32, #tpu.memory_space<vmem>>, %arg9: memref<2x64x32xf32, #tpu.memory_space<vmem>>, %arg10: memref<2x6x32xf32, #tpu.memory_space<vmem>>, %arg11: memref<32x128xf32, #tpu.memory_space<vmem>>, %arg12: memref<1x128xf32, #tpu.memory_space<vmem>>, %arg13: memref<16x128xf32, #tpu.memory_space<vmem>>) attributes {dimension_semantics = [#tpu.dimension_semantics<arbitrary>], iteration_bounds = array<i64: 1>, scalar_prefetch = 0 : i64, scratch_operands = 0 : i64, tpu.core_type = #tpu.core_type<tc>, window_params = [{pipeline_mode = #tpu.pipeline_mode<synchronous>, transform_indices = @transform_0, window_bounds = array<i64: 16, 32>}, {pipeline_mode = #tpu.pipeline_mode<synchronous>, transform_indices = @transform_1, window_bounds = array<i64: 16, 16>}, {pipeline_mode = #tpu.pipeline_mode<synchronous>, transform_indices = @transform_2, window_bounds = array<i64: 2, 32>}, {pipeline_mode = #tpu.pipeline_mode<synchronous>, transform_indices = @transform_3, window_bounds = array<i64: 2, 32, 96>}, {pipeline_mode = #tpu.pipeline_mode<synchronous>, transform_indices = @transform_4, window_bounds = array<i64: 2, 1, 96>}, {pipeline_mode = #tpu.pipeline_mode<synchronous>, transform_indices = @transform_5, window_bounds = array<i64: 2, 32, 32>}, {pipeline_mode = #tpu.pipeline_mode<synchronous>, transform_indices = @transform_6, window_bounds = array<i64: 2, 32, 64>}, {pipeline_mode = #tpu.pipeline_mode<synchronous>, transform_indices = @transform_7, window_bounds = array<i64: 2, 1, 64>}, {pipeline_mode = #tpu.pipeline_mode<synchronous>, transform_indices = @transform_8, window_bounds = array<i64: 2, 64, 32>}, {pipeline_mode = #tpu.pipeline_mode<synchronous>, transform_indices = @transform_9, window_bounds = array<i64: 2, 6, 32>}, {pipeline_mode = #tpu.pipeline_mode<synchronous>, transform_indices = @transform_10, window_bounds = array<i64: 32, 128>}, {pipeline_mode = #tpu.pipeline_mode<synchronous>, transform_indices = @transform_11, window_bounds = array<i64: 1, 128>}, {pipeline_mode = #tpu.pipeline_mode<synchronous>, transform_indices = @transform_12, window_bounds = array<i64: 16, 128>}]} {
    %c0 = arith.constant 0 : index
    %c0_0 = arith.constant 0 : index
    %0 = vector.load %arg1[%c0, %c0_0] : memref<16x32xf32, #tpu.memory_space<vmem>>, vector<16x32xf32>
    %c0_1 = arith.constant 0 : index
    %c0_2 = arith.constant 0 : index
    %1 = vector.load %arg3[%c0_1, %c0_2] : memref<2x32xf32, #tpu.memory_space<vmem>>, vector<1x32xf32>
    %c1 = arith.constant 1 : index
    %c0_3 = arith.constant 0 : index
    %2 = vector.load %arg3[%c1, %c0_3] : memref<2x32xf32, #tpu.memory_space<vmem>>, vector<1x32xf32>
    %cst = arith.constant dense<0.000000e+00> : vector<16xf32>
    %3 = vector.multi_reduction <add>, %0, %cst [1] : vector<16x32xf32> to vector<16xf32>
    %4 = vector.shape_cast %3 : vector<16xf32> to vector<16x1xf32>
    %cst_4 = arith.constant 3.200000e+01 : f32
    %5 = vector.broadcast %cst_4 : f32 to vector<16x1xf32>
    %6 = arith.divf %4, %5 : vector<16x1xf32>
    %7 = vector.broadcast %6 : vector<16x1xf32> to vector<16x32xf32>
    %8 = arith.subf %0, %7 : vector<16x32xf32>
    %9 = arith.mulf %8, %8 : vector<16x32xf32>
    %cst_5 = arith.constant dense<0.000000e+00> : vector<16xf32>
    %10 = vector.multi_reduction <add>, %9, %cst_5 [1] : vector<16x32xf32> to vector<16xf32>
    %11 = vector.shape_cast %10 : vector<16xf32> to vector<16x1xf32>
    %cst_6 = arith.constant 3.200000e+01 : f32
    %12 = vector.broadcast %cst_6 : f32 to vector<16x1xf32>
    %13 = arith.divf %11, %12 : vector<16x1xf32>
    %14 = vector.broadcast %6 : vector<16x1xf32> to vector<16x32xf32>
    %15 = arith.subf %0, %14 : vector<16x32xf32>
    %cst_7 = arith.constant 9.99999996E-13 : f32
    %16 = vector.broadcast %cst_7 : f32 to vector<16x1xf32>
    %17 = arith.addf %13, %16 : vector<16x1xf32>
    %18 = math.rsqrt %17 : vector<16x1xf32>
    %19 = vector.broadcast %18 : vector<16x1xf32> to vector<16x32xf32>
    %20 = arith.mulf %15, %19 : vector<16x32xf32>
    %21 = vector.broadcast %1 : vector<1x32xf32> to vector<16x32xf32>
    %22 = arith.mulf %20, %21 : vector<16x32xf32>
    %23 = vector.broadcast %2 : vector<1x32xf32> to vector<16x32xf32>
    %24 = arith.addf %22, %23 : vector<16x32xf32>
    %c0_8 = arith.constant 0 : index
    %c0_9 = arith.constant 0 : index
    %25 = vector.load %arg2[%c0_8, %c0_9] : memref<16x16xf32, #tpu.memory_space<vmem>>, vector<16x16xf32>
    %c0_10 = arith.constant 0 : index
    %c0_11 = arith.constant 0 : index
    %c0_12 = arith.constant 0 : index
    %26 = vector.load %arg10[%c0_10, %c0_11, %c0_12] : memref<2x6x32xf32, #tpu.memory_space<vmem>>, vector<1x6x32xf32>
    %27 = vector.shape_cast %26 : vector<1x6x32xf32> to vector<6x32xf32>
    %c0_13 = arith.constant 0 : index
    %c0_14 = arith.constant 0 : index
    %c0_15 = arith.constant 0 : index
    %28 = vector.load %arg4[%c0_13, %c0_14, %c0_15] : memref<2x32x96xf32, #tpu.memory_space<vmem>>, vector<1x32x96xf32>
    %29 = vector.shape_cast %28 : vector<1x32x96xf32> to vector<32x96xf32>
    %cst_16 = arith.constant dense<0.000000e+00> : vector<16x96xf32>
    %30 = tpu.matmul %24, %29, %cst_16 {dimension_numbers = #tpu.dot_dimension_numbers<[1], [0], [0], [1], [0, 0, 1, 1], [], []>} : vector<16x32xf32>, vector<32x96xf32>, vector<16x96xf32> -> vector<16x96xf32>
    %c0_17 = arith.constant 0 : index
    %c0_18 = arith.constant 0 : index
    %c0_19 = arith.constant 0 : index
    %31 = vector.load %arg5[%c0_17, %c0_18, %c0_19] : memref<2x1x96xf32, #tpu.memory_space<vmem>>, vector<1x1x96xf32>
    %32 = vector.shape_cast %31 : vector<1x1x96xf32> to vector<1x96xf32>
    %33 = vector.broadcast %32 : vector<1x96xf32> to vector<16x96xf32>
    %34 = arith.addf %30, %33 : vector<16x96xf32>
    %35 = vector.extract_strided_slice %34 {offsets = [0, 0], sizes = [16, 8], strides = [1, 1]} : vector<16x96xf32> to vector<16x8xf32>
    %36 = vector.extract_strided_slice %34 {offsets = [0, 8], sizes = [16, 8], strides = [1, 1]} : vector<16x96xf32> to vector<16x8xf32>
    %37 = vector.extract_strided_slice %34 {offsets = [0, 16], sizes = [16, 8], strides = [1, 1]} : vector<16x96xf32> to vector<16x8xf32>
    %38 = vector.extract_strided_slice %34 {offsets = [0, 24], sizes = [16, 8], strides = [1, 1]} : vector<16x96xf32> to vector<16x8xf32>
    %39 = vector.shape_cast %35 : vector<16x8xf32> to vector<1x16x8xf32>
    %40 = vector.shape_cast %36 : vector<16x8xf32> to vector<1x16x8xf32>
    %41 = vector.shape_cast %37 : vector<16x8xf32> to vector<1x16x8xf32>
    %42 = vector.shape_cast %38 : vector<16x8xf32> to vector<1x16x8xf32>
    %43 = tpu.concatenate %39, %40, %41, %42 in 0 : vector<1x16x8xf32>, vector<1x16x8xf32>, vector<1x16x8xf32>, vector<1x16x8xf32> -> vector<4x16x8xf32>
    %44 = vector.extract_strided_slice %34 {offsets = [0, 32], sizes = [16, 8], strides = [1, 1]} : vector<16x96xf32> to vector<16x8xf32>
    %45 = vector.extract_strided_slice %34 {offsets = [0, 40], sizes = [16, 8], strides = [1, 1]} : vector<16x96xf32> to vector<16x8xf32>
    %46 = vector.extract_strided_slice %34 {offsets = [0, 48], sizes = [16, 8], strides = [1, 1]} : vector<16x96xf32> to vector<16x8xf32>
    %47 = vector.extract_strided_slice %34 {offsets = [0, 56], sizes = [16, 8], strides = [1, 1]} : vector<16x96xf32> to vector<16x8xf32>
    %48 = vector.shape_cast %44 : vector<16x8xf32> to vector<1x16x8xf32>
    %49 = vector.shape_cast %45 : vector<16x8xf32> to vector<1x16x8xf32>
    %50 = vector.shape_cast %46 : vector<16x8xf32> to vector<1x16x8xf32>
    %51 = vector.shape_cast %47 : vector<16x8xf32> to vector<1x16x8xf32>
    %52 = tpu.concatenate %48, %49, %50, %51 in 0 : vector<1x16x8xf32>, vector<1x16x8xf32>, vector<1x16x8xf32>, vector<1x16x8xf32> -> vector<4x16x8xf32>
    %53 = vector.extract_strided_slice %34 {offsets = [0, 64], sizes = [16, 8], strides = [1, 1]} : vector<16x96xf32> to vector<16x8xf32>
    %54 = vector.extract_strided_slice %34 {offsets = [0, 72], sizes = [16, 8], strides = [1, 1]} : vector<16x96xf32> to vector<16x8xf32>
    %55 = vector.extract_strided_slice %34 {offsets = [0, 80], sizes = [16, 8], strides = [1, 1]} : vector<16x96xf32> to vector<16x8xf32>
    %56 = vector.extract_strided_slice %34 {offsets = [0, 88], sizes = [16, 8], strides = [1, 1]} : vector<16x96xf32> to vector<16x8xf32>
    %57 = vector.shape_cast %53 : vector<16x8xf32> to vector<1x16x8xf32>
    %58 = vector.shape_cast %54 : vector<16x8xf32> to vector<1x16x8xf32>
    %59 = vector.shape_cast %55 : vector<16x8xf32> to vector<1x16x8xf32>
    %60 = vector.shape_cast %56 : vector<16x8xf32> to vector<1x16x8xf32>
    %61 = tpu.concatenate %57, %58, %59, %60 in 0 : vector<1x16x8xf32>, vector<1x16x8xf32>, vector<1x16x8xf32>, vector<1x16x8xf32> -> vector<4x16x8xf32>
    "tpu.trace_start"() <{level = 10 : i32, message = "nqd,nkd->nqk"}> : () -> ()
    %cst_20 = arith.constant dense<0.000000e+00> : vector<4x16x16xf32>
    %62 = tpu.matmul %43, %52, %cst_20 {dimension_numbers = #tpu.dot_dimension_numbers<[2], [2], [1], [1], [0, 0, 0, 1, 1, 1], [0], [0]>} : vector<4x16x8xf32>, vector<4x16x8xf32>, vector<4x16x16xf32> -> vector<4x16x16xf32>
    "tpu.trace_stop"() : () -> ()
    %cst_21 = arith.constant 0.353553385 : f32
    %63 = vector.broadcast %cst_21 : f32 to vector<4x16x16xf32>
    %64 = arith.mulf %62, %63 : vector<4x16x16xf32>
    %65 = vector.shape_cast %25 : vector<16x16xf32> to vector<1x16x16xf32>
    %66 = vector.broadcast %65 : vector<1x16x16xf32> to vector<4x16x16xf32>
    %67 = arith.addf %64, %66 : vector<4x16x16xf32>
    %cst_22 = arith.constant dense<0xFF800000> : vector<4x16xf32>
    %68 = vector.multi_reduction <maximumf>, %67, %cst_22 [2] : vector<4x16x16xf32> to vector<4x16xf32>
    %69 = vector.shape_cast %68 : vector<4x16xf32> to vector<4x16x1xf32>
    %70 = vector.broadcast %69 : vector<4x16x1xf32> to vector<4x16x16xf32>
    %71 = arith.subf %67, %70 : vector<4x16x16xf32>
    %72 = math.exp %71 : vector<4x16x16xf32>
    %cst_23 = arith.constant dense<0.000000e+00> : vector<4x16xf32>
    %73 = vector.multi_reduction <add>, %72, %cst_23 [2] : vector<4x16x16xf32> to vector<4x16xf32>
    %74 = vector.shape_cast %73 : vector<4x16xf32> to vector<4x16x1xf32>
    %75 = tpu.reciprocal %74 {approx = true} : vector<4x16x1xf32> -> vector<4x16x1xf32>
    %76 = vector.broadcast %75 : vector<4x16x1xf32> to vector<4x16x16xf32>
    %77 = arith.mulf %72, %76 : vector<4x16x16xf32>
    "tpu.trace_start"() <{level = 10 : i32, message = "nqk,nkd->nqd"}> : () -> ()
    %cst_24 = arith.constant dense<0.000000e+00> : vector<4x16x8xf32>
    %78 = tpu.matmul %77, %61, %cst_24 {dimension_numbers = #tpu.dot_dimension_numbers<[2], [1], [1], [2], [0, 0, 0, 1, 1, 2], [0], [0]>} : vector<4x16x16xf32>, vector<4x16x8xf32>, vector<4x16x8xf32> -> vector<4x16x8xf32>
    "tpu.trace_stop"() : () -> ()
    %79 = vector.extract_strided_slice %78 {offsets = [0, 0, 0], sizes = [1, 16, 8], strides = [1, 1, 1]} : vector<4x16x8xf32> to vector<1x16x8xf32>
    %80 = vector.shape_cast %79 : vector<1x16x8xf32> to vector<16x8xf32>
    %81 = vector.extract_strided_slice %78 {offsets = [1, 0, 0], sizes = [1, 16, 8], strides = [1, 1, 1]} : vector<4x16x8xf32> to vector<1x16x8xf32>
    %82 = vector.shape_cast %81 : vector<1x16x8xf32> to vector<16x8xf32>
    %83 = vector.extract_strided_slice %78 {offsets = [2, 0, 0], sizes = [1, 16, 8], strides = [1, 1, 1]} : vector<4x16x8xf32> to vector<1x16x8xf32>
    %84 = vector.shape_cast %83 : vector<1x16x8xf32> to vector<16x8xf32>
    %85 = vector.extract_strided_slice %78 {offsets = [3, 0, 0], sizes = [1, 16, 8], strides = [1, 1, 1]} : vector<4x16x8xf32> to vector<1x16x8xf32>
    %86 = vector.shape_cast %85 : vector<1x16x8xf32> to vector<16x8xf32>
    %87 = tpu.concatenate %80, %82, %84, %86 in 1 : vector<16x8xf32>, vector<16x8xf32>, vector<16x8xf32>, vector<16x8xf32> -> vector<16x32xf32>
    %c0_25 = arith.constant 0 : index
    %c0_26 = arith.constant 0 : index
    %c0_27 = arith.constant 0 : index
    %88 = vector.load %arg6[%c0_25, %c0_26, %c0_27] : memref<2x32x32xf32, #tpu.memory_space<vmem>>, vector<1x32x32xf32>
    %89 = vector.shape_cast %88 : vector<1x32x32xf32> to vector<32x32xf32>
    %cst_28 = arith.constant dense<0.000000e+00> : vector<16x32xf32>
    %90 = tpu.matmul %87, %89, %cst_28 {dimension_numbers = #tpu.dot_dimension_numbers<[1], [0], [0], [1], [0, 0, 1, 1], [], []>} : vector<16x32xf32>, vector<32x32xf32>, vector<16x32xf32> -> vector<16x32xf32>
    %91 = vector.extract_strided_slice %27 {offsets = [0, 0], sizes = [1, 32], strides = [1, 1]} : vector<6x32xf32> to vector<1x32xf32>
    %92 = vector.broadcast %91 : vector<1x32xf32> to vector<16x32xf32>
    %93 = arith.addf %90, %92 : vector<16x32xf32>
    %94 = arith.addf %24, %93 : vector<16x32xf32>
    %95 = vector.extract_strided_slice %27 {offsets = [1, 0], sizes = [1, 32], strides = [1, 1]} : vector<6x32xf32> to vector<1x32xf32>
    %96 = vector.extract_strided_slice %27 {offsets = [2, 0], sizes = [1, 32], strides = [1, 1]} : vector<6x32xf32> to vector<1x32xf32>
    %cst_29 = arith.constant dense<0.000000e+00> : vector<16xf32>
    %97 = vector.multi_reduction <add>, %94, %cst_29 [1] : vector<16x32xf32> to vector<16xf32>
    %98 = vector.shape_cast %97 : vector<16xf32> to vector<16x1xf32>
    %cst_30 = arith.constant 3.200000e+01 : f32
    %99 = vector.broadcast %cst_30 : f32 to vector<16x1xf32>
    %100 = arith.divf %98, %99 : vector<16x1xf32>
    %101 = vector.broadcast %100 : vector<16x1xf32> to vector<16x32xf32>
    %102 = arith.subf %94, %101 : vector<16x32xf32>
    %103 = arith.mulf %102, %102 : vector<16x32xf32>
    %cst_31 = arith.constant dense<0.000000e+00> : vector<16xf32>
    %104 = vector.multi_reduction <add>, %103, %cst_31 [1] : vector<16x32xf32> to vector<16xf32>
    %105 = vector.shape_cast %104 : vector<16xf32> to vector<16x1xf32>
    %cst_32 = arith.constant 3.200000e+01 : f32
    %106 = vector.broadcast %cst_32 : f32 to vector<16x1xf32>
    %107 = arith.divf %105, %106 : vector<16x1xf32>
    %108 = vector.broadcast %100 : vector<16x1xf32> to vector<16x32xf32>
    %109 = arith.subf %94, %108 : vector<16x32xf32>
    %cst_33 = arith.constant 9.99999996E-13 : f32
    %110 = vector.broadcast %cst_33 : f32 to vector<16x1xf32>
    %111 = arith.addf %107, %110 : vector<16x1xf32>
    %112 = math.rsqrt %111 : vector<16x1xf32>
    %113 = vector.broadcast %112 : vector<16x1xf32> to vector<16x32xf32>
    %114 = arith.mulf %109, %113 : vector<16x32xf32>
    %115 = vector.broadcast %95 : vector<1x32xf32> to vector<16x32xf32>
    %116 = arith.mulf %114, %115 : vector<16x32xf32>
    %117 = vector.broadcast %96 : vector<1x32xf32> to vector<16x32xf32>
    %118 = arith.addf %116, %117 : vector<16x32xf32>
    %c0_34 = arith.constant 0 : index
    %c0_35 = arith.constant 0 : index
    %c0_36 = arith.constant 0 : index
    %119 = vector.load %arg7[%c0_34, %c0_35, %c0_36] : memref<2x32x64xf32, #tpu.memory_space<vmem>>, vector<1x32x64xf32>
    %120 = vector.shape_cast %119 : vector<1x32x64xf32> to vector<32x64xf32>
    %cst_37 = arith.constant dense<0.000000e+00> : vector<16x64xf32>
    %121 = tpu.matmul %118, %120, %cst_37 {dimension_numbers = #tpu.dot_dimension_numbers<[1], [0], [0], [1], [0, 0, 1, 1], [], []>} : vector<16x32xf32>, vector<32x64xf32>, vector<16x64xf32> -> vector<16x64xf32>
    %c0_38 = arith.constant 0 : index
    %c0_39 = arith.constant 0 : index
    %c0_40 = arith.constant 0 : index
    %122 = vector.load %arg8[%c0_38, %c0_39, %c0_40] : memref<2x1x64xf32, #tpu.memory_space<vmem>>, vector<1x1x64xf32>
    %123 = vector.shape_cast %122 : vector<1x1x64xf32> to vector<1x64xf32>
    %124 = vector.broadcast %123 : vector<1x64xf32> to vector<16x64xf32>
    %125 = arith.addf %121, %124 : vector<16x64xf32>
    %126 = arith.mulf %125, %125 : vector<16x64xf32>
    %127 = arith.mulf %125, %126 : vector<16x64xf32>
    %cst_41 = arith.constant 4.471500e-02 : f32
    %128 = vector.broadcast %cst_41 : f32 to vector<16x64xf32>
    %129 = arith.mulf %128, %127 : vector<16x64xf32>
    %130 = arith.addf %125, %129 : vector<16x64xf32>
    %cst_42 = arith.constant 0.797884583 : f32
    %131 = vector.broadcast %cst_42 : f32 to vector<16x64xf32>
    %132 = arith.mulf %131, %130 : vector<16x64xf32>
    %133 = math.tanh %132 : vector<16x64xf32>
    %cst_43 = arith.constant 1.000000e+00 : f32
    %134 = vector.broadcast %cst_43 : f32 to vector<16x64xf32>
    %135 = arith.addf %134, %133 : vector<16x64xf32>
    %cst_44 = arith.constant 5.000000e-01 : f32
    %136 = vector.broadcast %cst_44 : f32 to vector<16x64xf32>
    %137 = arith.mulf %136, %135 : vector<16x64xf32>
    %138 = arith.mulf %125, %137 : vector<16x64xf32>
    %c0_45 = arith.constant 0 : index
    %c0_46 = arith.constant 0 : index
    %c0_47 = arith.constant 0 : index
    %139 = vector.load %arg9[%c0_45, %c0_46, %c0_47] : memref<2x64x32xf32, #tpu.memory_space<vmem>>, vector<1x64x32xf32>
    %140 = vector.shape_cast %139 : vector<1x64x32xf32> to vector<64x32xf32>
    %cst_48 = arith.constant dense<0.000000e+00> : vector<16x32xf32>
    %141 = tpu.matmul %138, %140, %cst_48 {dimension_numbers = #tpu.dot_dimension_numbers<[1], [0], [0], [1], [0, 0, 1, 1], [], []>} : vector<16x64xf32>, vector<64x32xf32>, vector<16x32xf32> -> vector<16x32xf32>
    %142 = vector.extract_strided_slice %27 {offsets = [3, 0], sizes = [1, 32], strides = [1, 1]} : vector<6x32xf32> to vector<1x32xf32>
    %143 = vector.broadcast %142 : vector<1x32xf32> to vector<16x32xf32>
    %144 = arith.addf %141, %143 : vector<16x32xf32>
    %145 = arith.addf %118, %144 : vector<16x32xf32>
    %146 = vector.extract_strided_slice %27 {offsets = [4, 0], sizes = [1, 32], strides = [1, 1]} : vector<6x32xf32> to vector<1x32xf32>
    %147 = vector.extract_strided_slice %27 {offsets = [5, 0], sizes = [1, 32], strides = [1, 1]} : vector<6x32xf32> to vector<1x32xf32>
    %cst_49 = arith.constant dense<0.000000e+00> : vector<16xf32>
    %148 = vector.multi_reduction <add>, %145, %cst_49 [1] : vector<16x32xf32> to vector<16xf32>
    %149 = vector.shape_cast %148 : vector<16xf32> to vector<16x1xf32>
    %cst_50 = arith.constant 3.200000e+01 : f32
    %150 = vector.broadcast %cst_50 : f32 to vector<16x1xf32>
    %151 = arith.divf %149, %150 : vector<16x1xf32>
    %152 = vector.broadcast %151 : vector<16x1xf32> to vector<16x32xf32>
    %153 = arith.subf %145, %152 : vector<16x32xf32>
    %154 = arith.mulf %153, %153 : vector<16x32xf32>
    %cst_51 = arith.constant dense<0.000000e+00> : vector<16xf32>
    %155 = vector.multi_reduction <add>, %154, %cst_51 [1] : vector<16x32xf32> to vector<16xf32>
    %156 = vector.shape_cast %155 : vector<16xf32> to vector<16x1xf32>
    %cst_52 = arith.constant 3.200000e+01 : f32
    %157 = vector.broadcast %cst_52 : f32 to vector<16x1xf32>
    %158 = arith.divf %156, %157 : vector<16x1xf32>
    %159 = vector.broadcast %151 : vector<16x1xf32> to vector<16x32xf32>
    %160 = arith.subf %145, %159 : vector<16x32xf32>
    %cst_53 = arith.constant 9.99999996E-13 : f32
    %161 = vector.broadcast %cst_53 : f32 to vector<16x1xf32>
    %162 = arith.addf %158, %161 : vector<16x1xf32>
    %163 = math.rsqrt %162 : vector<16x1xf32>
    %164 = vector.broadcast %163 : vector<16x1xf32> to vector<16x32xf32>
    %165 = arith.mulf %160, %164 : vector<16x32xf32>
    %166 = vector.broadcast %146 : vector<1x32xf32> to vector<16x32xf32>
    %167 = arith.mulf %165, %166 : vector<16x32xf32>
    %168 = vector.broadcast %147 : vector<1x32xf32> to vector<16x32xf32>
    %169 = arith.addf %167, %168 : vector<16x32xf32>
    %c1_54 = arith.constant 1 : index
    %c0_55 = arith.constant 0 : index
    %c0_56 = arith.constant 0 : index
    %170 = vector.load %arg10[%c1_54, %c0_55, %c0_56] : memref<2x6x32xf32, #tpu.memory_space<vmem>>, vector<1x6x32xf32>
    %171 = vector.shape_cast %170 : vector<1x6x32xf32> to vector<6x32xf32>
    %c1_57 = arith.constant 1 : index
    %c0_58 = arith.constant 0 : index
    %c0_59 = arith.constant 0 : index
    %172 = vector.load %arg4[%c1_57, %c0_58, %c0_59] : memref<2x32x96xf32, #tpu.memory_space<vmem>>, vector<1x32x96xf32>
    %173 = vector.shape_cast %172 : vector<1x32x96xf32> to vector<32x96xf32>
    %cst_60 = arith.constant dense<0.000000e+00> : vector<16x96xf32>
    %174 = tpu.matmul %169, %173, %cst_60 {dimension_numbers = #tpu.dot_dimension_numbers<[1], [0], [0], [1], [0, 0, 1, 1], [], []>} : vector<16x32xf32>, vector<32x96xf32>, vector<16x96xf32> -> vector<16x96xf32>
    %c1_61 = arith.constant 1 : index
    %c0_62 = arith.constant 0 : index
    %c0_63 = arith.constant 0 : index
    %175 = vector.load %arg5[%c1_61, %c0_62, %c0_63] : memref<2x1x96xf32, #tpu.memory_space<vmem>>, vector<1x1x96xf32>
    %176 = vector.shape_cast %175 : vector<1x1x96xf32> to vector<1x96xf32>
    %177 = vector.broadcast %176 : vector<1x96xf32> to vector<16x96xf32>
    %178 = arith.addf %174, %177 : vector<16x96xf32>
    %179 = vector.extract_strided_slice %178 {offsets = [0, 0], sizes = [16, 8], strides = [1, 1]} : vector<16x96xf32> to vector<16x8xf32>
    %180 = vector.extract_strided_slice %178 {offsets = [0, 8], sizes = [16, 8], strides = [1, 1]} : vector<16x96xf32> to vector<16x8xf32>
    %181 = vector.extract_strided_slice %178 {offsets = [0, 16], sizes = [16, 8], strides = [1, 1]} : vector<16x96xf32> to vector<16x8xf32>
    %182 = vector.extract_strided_slice %178 {offsets = [0, 24], sizes = [16, 8], strides = [1, 1]} : vector<16x96xf32> to vector<16x8xf32>
    %183 = vector.shape_cast %179 : vector<16x8xf32> to vector<1x16x8xf32>
    %184 = vector.shape_cast %180 : vector<16x8xf32> to vector<1x16x8xf32>
    %185 = vector.shape_cast %181 : vector<16x8xf32> to vector<1x16x8xf32>
    %186 = vector.shape_cast %182 : vector<16x8xf32> to vector<1x16x8xf32>
    %187 = tpu.concatenate %183, %184, %185, %186 in 0 : vector<1x16x8xf32>, vector<1x16x8xf32>, vector<1x16x8xf32>, vector<1x16x8xf32> -> vector<4x16x8xf32>
    %188 = vector.extract_strided_slice %178 {offsets = [0, 32], sizes = [16, 8], strides = [1, 1]} : vector<16x96xf32> to vector<16x8xf32>
    %189 = vector.extract_strided_slice %178 {offsets = [0, 40], sizes = [16, 8], strides = [1, 1]} : vector<16x96xf32> to vector<16x8xf32>
    %190 = vector.extract_strided_slice %178 {offsets = [0, 48], sizes = [16, 8], strides = [1, 1]} : vector<16x96xf32> to vector<16x8xf32>
    %191 = vector.extract_strided_slice %178 {offsets = [0, 56], sizes = [16, 8], strides = [1, 1]} : vector<16x96xf32> to vector<16x8xf32>
    %192 = vector.shape_cast %188 : vector<16x8xf32> to vector<1x16x8xf32>
    %193 = vector.shape_cast %189 : vector<16x8xf32> to vector<1x16x8xf32>
    %194 = vector.shape_cast %190 : vector<16x8xf32> to vector<1x16x8xf32>
    %195 = vector.shape_cast %191 : vector<16x8xf32> to vector<1x16x8xf32>
    %196 = tpu.concatenate %192, %193, %194, %195 in 0 : vector<1x16x8xf32>, vector<1x16x8xf32>, vector<1x16x8xf32>, vector<1x16x8xf32> -> vector<4x16x8xf32>
    %197 = vector.extract_strided_slice %178 {offsets = [0, 64], sizes = [16, 8], strides = [1, 1]} : vector<16x96xf32> to vector<16x8xf32>
    %198 = vector.extract_strided_slice %178 {offsets = [0, 72], sizes = [16, 8], strides = [1, 1]} : vector<16x96xf32> to vector<16x8xf32>
    %199 = vector.extract_strided_slice %178 {offsets = [0, 80], sizes = [16, 8], strides = [1, 1]} : vector<16x96xf32> to vector<16x8xf32>
    %200 = vector.extract_strided_slice %178 {offsets = [0, 88], sizes = [16, 8], strides = [1, 1]} : vector<16x96xf32> to vector<16x8xf32>
    %201 = vector.shape_cast %197 : vector<16x8xf32> to vector<1x16x8xf32>
    %202 = vector.shape_cast %198 : vector<16x8xf32> to vector<1x16x8xf32>
    %203 = vector.shape_cast %199 : vector<16x8xf32> to vector<1x16x8xf32>
    %204 = vector.shape_cast %200 : vector<16x8xf32> to vector<1x16x8xf32>
    %205 = tpu.concatenate %201, %202, %203, %204 in 0 : vector<1x16x8xf32>, vector<1x16x8xf32>, vector<1x16x8xf32>, vector<1x16x8xf32> -> vector<4x16x8xf32>
    "tpu.trace_start"() <{level = 10 : i32, message = "nqd,nkd->nqk"}> : () -> ()
    %cst_64 = arith.constant dense<0.000000e+00> : vector<4x16x16xf32>
    %206 = tpu.matmul %187, %196, %cst_64 {dimension_numbers = #tpu.dot_dimension_numbers<[2], [2], [1], [1], [0, 0, 0, 1, 1, 1], [0], [0]>} : vector<4x16x8xf32>, vector<4x16x8xf32>, vector<4x16x16xf32> -> vector<4x16x16xf32>
    "tpu.trace_stop"() : () -> ()
    %cst_65 = arith.constant 0.353553385 : f32
    %207 = vector.broadcast %cst_65 : f32 to vector<4x16x16xf32>
    %208 = arith.mulf %206, %207 : vector<4x16x16xf32>
    %209 = vector.shape_cast %25 : vector<16x16xf32> to vector<1x16x16xf32>
    %210 = vector.broadcast %209 : vector<1x16x16xf32> to vector<4x16x16xf32>
    %211 = arith.addf %208, %210 : vector<4x16x16xf32>
    %cst_66 = arith.constant dense<0xFF800000> : vector<4x16xf32>
    %212 = vector.multi_reduction <maximumf>, %211, %cst_66 [2] : vector<4x16x16xf32> to vector<4x16xf32>
    %213 = vector.shape_cast %212 : vector<4x16xf32> to vector<4x16x1xf32>
    %214 = vector.broadcast %213 : vector<4x16x1xf32> to vector<4x16x16xf32>
    %215 = arith.subf %211, %214 : vector<4x16x16xf32>
    %216 = math.exp %215 : vector<4x16x16xf32>
    %cst_67 = arith.constant dense<0.000000e+00> : vector<4x16xf32>
    %217 = vector.multi_reduction <add>, %216, %cst_67 [2] : vector<4x16x16xf32> to vector<4x16xf32>
    %218 = vector.shape_cast %217 : vector<4x16xf32> to vector<4x16x1xf32>
    %219 = tpu.reciprocal %218 {approx = true} : vector<4x16x1xf32> -> vector<4x16x1xf32>
    %220 = vector.broadcast %219 : vector<4x16x1xf32> to vector<4x16x16xf32>
    %221 = arith.mulf %216, %220 : vector<4x16x16xf32>
    "tpu.trace_start"() <{level = 10 : i32, message = "nqk,nkd->nqd"}> : () -> ()
    %cst_68 = arith.constant dense<0.000000e+00> : vector<4x16x8xf32>
    %222 = tpu.matmul %221, %205, %cst_68 {dimension_numbers = #tpu.dot_dimension_numbers<[2], [1], [1], [2], [0, 0, 0, 1, 1, 2], [0], [0]>} : vector<4x16x16xf32>, vector<4x16x8xf32>, vector<4x16x8xf32> -> vector<4x16x8xf32>
    "tpu.trace_stop"() : () -> ()
    %223 = vector.extract_strided_slice %222 {offsets = [0, 0, 0], sizes = [1, 16, 8], strides = [1, 1, 1]} : vector<4x16x8xf32> to vector<1x16x8xf32>
    %224 = vector.shape_cast %223 : vector<1x16x8xf32> to vector<16x8xf32>
    %225 = vector.extract_strided_slice %222 {offsets = [1, 0, 0], sizes = [1, 16, 8], strides = [1, 1, 1]} : vector<4x16x8xf32> to vector<1x16x8xf32>
    %226 = vector.shape_cast %225 : vector<1x16x8xf32> to vector<16x8xf32>
    %227 = vector.extract_strided_slice %222 {offsets = [2, 0, 0], sizes = [1, 16, 8], strides = [1, 1, 1]} : vector<4x16x8xf32> to vector<1x16x8xf32>
    %228 = vector.shape_cast %227 : vector<1x16x8xf32> to vector<16x8xf32>
    %229 = vector.extract_strided_slice %222 {offsets = [3, 0, 0], sizes = [1, 16, 8], strides = [1, 1, 1]} : vector<4x16x8xf32> to vector<1x16x8xf32>
    %230 = vector.shape_cast %229 : vector<1x16x8xf32> to vector<16x8xf32>
    %231 = tpu.concatenate %224, %226, %228, %230 in 1 : vector<16x8xf32>, vector<16x8xf32>, vector<16x8xf32>, vector<16x8xf32> -> vector<16x32xf32>
    %c1_69 = arith.constant 1 : index
    %c0_70 = arith.constant 0 : index
    %c0_71 = arith.constant 0 : index
    %232 = vector.load %arg6[%c1_69, %c0_70, %c0_71] : memref<2x32x32xf32, #tpu.memory_space<vmem>>, vector<1x32x32xf32>
    %233 = vector.shape_cast %232 : vector<1x32x32xf32> to vector<32x32xf32>
    %cst_72 = arith.constant dense<0.000000e+00> : vector<16x32xf32>
    %234 = tpu.matmul %231, %233, %cst_72 {dimension_numbers = #tpu.dot_dimension_numbers<[1], [0], [0], [1], [0, 0, 1, 1], [], []>} : vector<16x32xf32>, vector<32x32xf32>, vector<16x32xf32> -> vector<16x32xf32>
    %235 = vector.extract_strided_slice %171 {offsets = [0, 0], sizes = [1, 32], strides = [1, 1]} : vector<6x32xf32> to vector<1x32xf32>
    %236 = vector.broadcast %235 : vector<1x32xf32> to vector<16x32xf32>
    %237 = arith.addf %234, %236 : vector<16x32xf32>
    %238 = arith.addf %169, %237 : vector<16x32xf32>
    %239 = vector.extract_strided_slice %171 {offsets = [1, 0], sizes = [1, 32], strides = [1, 1]} : vector<6x32xf32> to vector<1x32xf32>
    %240 = vector.extract_strided_slice %171 {offsets = [2, 0], sizes = [1, 32], strides = [1, 1]} : vector<6x32xf32> to vector<1x32xf32>
    %cst_73 = arith.constant dense<0.000000e+00> : vector<16xf32>
    %241 = vector.multi_reduction <add>, %238, %cst_73 [1] : vector<16x32xf32> to vector<16xf32>
    %242 = vector.shape_cast %241 : vector<16xf32> to vector<16x1xf32>
    %cst_74 = arith.constant 3.200000e+01 : f32
    %243 = vector.broadcast %cst_74 : f32 to vector<16x1xf32>
    %244 = arith.divf %242, %243 : vector<16x1xf32>
    %245 = vector.broadcast %244 : vector<16x1xf32> to vector<16x32xf32>
    %246 = arith.subf %238, %245 : vector<16x32xf32>
    %247 = arith.mulf %246, %246 : vector<16x32xf32>
    %cst_75 = arith.constant dense<0.000000e+00> : vector<16xf32>
    %248 = vector.multi_reduction <add>, %247, %cst_75 [1] : vector<16x32xf32> to vector<16xf32>
    %249 = vector.shape_cast %248 : vector<16xf32> to vector<16x1xf32>
    %cst_76 = arith.constant 3.200000e+01 : f32
    %250 = vector.broadcast %cst_76 : f32 to vector<16x1xf32>
    %251 = arith.divf %249, %250 : vector<16x1xf32>
    %252 = vector.broadcast %244 : vector<16x1xf32> to vector<16x32xf32>
    %253 = arith.subf %238, %252 : vector<16x32xf32>
    %cst_77 = arith.constant 9.99999996E-13 : f32
    %254 = vector.broadcast %cst_77 : f32 to vector<16x1xf32>
    %255 = arith.addf %251, %254 : vector<16x1xf32>
    %256 = math.rsqrt %255 : vector<16x1xf32>
    %257 = vector.broadcast %256 : vector<16x1xf32> to vector<16x32xf32>
    %258 = arith.mulf %253, %257 : vector<16x32xf32>
    %259 = vector.broadcast %239 : vector<1x32xf32> to vector<16x32xf32>
    %260 = arith.mulf %258, %259 : vector<16x32xf32>
    %261 = vector.broadcast %240 : vector<1x32xf32> to vector<16x32xf32>
    %262 = arith.addf %260, %261 : vector<16x32xf32>
    %c1_78 = arith.constant 1 : index
    %c0_79 = arith.constant 0 : index
    %c0_80 = arith.constant 0 : index
    %263 = vector.load %arg7[%c1_78, %c0_79, %c0_80] : memref<2x32x64xf32, #tpu.memory_space<vmem>>, vector<1x32x64xf32>
    %264 = vector.shape_cast %263 : vector<1x32x64xf32> to vector<32x64xf32>
    %cst_81 = arith.constant dense<0.000000e+00> : vector<16x64xf32>
    %265 = tpu.matmul %262, %264, %cst_81 {dimension_numbers = #tpu.dot_dimension_numbers<[1], [0], [0], [1], [0, 0, 1, 1], [], []>} : vector<16x32xf32>, vector<32x64xf32>, vector<16x64xf32> -> vector<16x64xf32>
    %c1_82 = arith.constant 1 : index
    %c0_83 = arith.constant 0 : index
    %c0_84 = arith.constant 0 : index
    %266 = vector.load %arg8[%c1_82, %c0_83, %c0_84] : memref<2x1x64xf32, #tpu.memory_space<vmem>>, vector<1x1x64xf32>
    %267 = vector.shape_cast %266 : vector<1x1x64xf32> to vector<1x64xf32>
    %268 = vector.broadcast %267 : vector<1x64xf32> to vector<16x64xf32>
    %269 = arith.addf %265, %268 : vector<16x64xf32>
    %270 = arith.mulf %269, %269 : vector<16x64xf32>
    %271 = arith.mulf %269, %270 : vector<16x64xf32>
    %cst_85 = arith.constant 4.471500e-02 : f32
    %272 = vector.broadcast %cst_85 : f32 to vector<16x64xf32>
    %273 = arith.mulf %272, %271 : vector<16x64xf32>
    %274 = arith.addf %269, %273 : vector<16x64xf32>
    %cst_86 = arith.constant 0.797884583 : f32
    %275 = vector.broadcast %cst_86 : f32 to vector<16x64xf32>
    %276 = arith.mulf %275, %274 : vector<16x64xf32>
    %277 = math.tanh %276 : vector<16x64xf32>
    %cst_87 = arith.constant 1.000000e+00 : f32
    %278 = vector.broadcast %cst_87 : f32 to vector<16x64xf32>
    %279 = arith.addf %278, %277 : vector<16x64xf32>
    %cst_88 = arith.constant 5.000000e-01 : f32
    %280 = vector.broadcast %cst_88 : f32 to vector<16x64xf32>
    %281 = arith.mulf %280, %279 : vector<16x64xf32>
    %282 = arith.mulf %269, %281 : vector<16x64xf32>
    %c1_89 = arith.constant 1 : index
    %c0_90 = arith.constant 0 : index
    %c0_91 = arith.constant 0 : index
    %283 = vector.load %arg9[%c1_89, %c0_90, %c0_91] : memref<2x64x32xf32, #tpu.memory_space<vmem>>, vector<1x64x32xf32>
    %284 = vector.shape_cast %283 : vector<1x64x32xf32> to vector<64x32xf32>
    %cst_92 = arith.constant dense<0.000000e+00> : vector<16x32xf32>
    %285 = tpu.matmul %282, %284, %cst_92 {dimension_numbers = #tpu.dot_dimension_numbers<[1], [0], [0], [1], [0, 0, 1, 1], [], []>} : vector<16x64xf32>, vector<64x32xf32>, vector<16x32xf32> -> vector<16x32xf32>
    %286 = vector.extract_strided_slice %171 {offsets = [3, 0], sizes = [1, 32], strides = [1, 1]} : vector<6x32xf32> to vector<1x32xf32>
    %287 = vector.broadcast %286 : vector<1x32xf32> to vector<16x32xf32>
    %288 = arith.addf %285, %287 : vector<16x32xf32>
    %289 = arith.addf %262, %288 : vector<16x32xf32>
    %290 = vector.extract_strided_slice %171 {offsets = [4, 0], sizes = [1, 32], strides = [1, 1]} : vector<6x32xf32> to vector<1x32xf32>
    %291 = vector.extract_strided_slice %171 {offsets = [5, 0], sizes = [1, 32], strides = [1, 1]} : vector<6x32xf32> to vector<1x32xf32>
    %cst_93 = arith.constant dense<0.000000e+00> : vector<16xf32>
    %292 = vector.multi_reduction <add>, %289, %cst_93 [1] : vector<16x32xf32> to vector<16xf32>
    %293 = vector.shape_cast %292 : vector<16xf32> to vector<16x1xf32>
    %cst_94 = arith.constant 3.200000e+01 : f32
    %294 = vector.broadcast %cst_94 : f32 to vector<16x1xf32>
    %295 = arith.divf %293, %294 : vector<16x1xf32>
    %296 = vector.broadcast %295 : vector<16x1xf32> to vector<16x32xf32>
    %297 = arith.subf %289, %296 : vector<16x32xf32>
    %298 = arith.mulf %297, %297 : vector<16x32xf32>
    %cst_95 = arith.constant dense<0.000000e+00> : vector<16xf32>
    %299 = vector.multi_reduction <add>, %298, %cst_95 [1] : vector<16x32xf32> to vector<16xf32>
    %300 = vector.shape_cast %299 : vector<16xf32> to vector<16x1xf32>
    %cst_96 = arith.constant 3.200000e+01 : f32
    %301 = vector.broadcast %cst_96 : f32 to vector<16x1xf32>
    %302 = arith.divf %300, %301 : vector<16x1xf32>
    %303 = vector.broadcast %295 : vector<16x1xf32> to vector<16x32xf32>
    %304 = arith.subf %289, %303 : vector<16x32xf32>
    %cst_97 = arith.constant 9.99999996E-13 : f32
    %305 = vector.broadcast %cst_97 : f32 to vector<16x1xf32>
    %306 = arith.addf %302, %305 : vector<16x1xf32>
    %307 = math.rsqrt %306 : vector<16x1xf32>
    %308 = vector.broadcast %307 : vector<16x1xf32> to vector<16x32xf32>
    %309 = arith.mulf %304, %308 : vector<16x32xf32>
    %310 = vector.broadcast %290 : vector<1x32xf32> to vector<16x32xf32>
    %311 = arith.mulf %309, %310 : vector<16x32xf32>
    %312 = vector.broadcast %291 : vector<1x32xf32> to vector<16x32xf32>
    %313 = arith.addf %311, %312 : vector<16x32xf32>
    %c0_98 = arith.constant 0 : index
    %c0_99 = arith.constant 0 : index
    %314 = vector.load %arg11[%c0_98, %c0_99] : memref<32x128xf32, #tpu.memory_space<vmem>>, vector<32x128xf32>
    %cst_100 = arith.constant dense<0.000000e+00> : vector<16x128xf32>
    %315 = tpu.matmul %313, %314, %cst_100 {dimension_numbers = #tpu.dot_dimension_numbers<[1], [0], [0], [1], [0, 0, 1, 1], [], []>} : vector<16x32xf32>, vector<32x128xf32>, vector<16x128xf32> -> vector<16x128xf32>
    %c0_101 = arith.constant 0 : index
    %c0_102 = arith.constant 0 : index
    %316 = vector.load %arg12[%c0_101, %c0_102] : memref<1x128xf32, #tpu.memory_space<vmem>>, vector<1x128xf32>
    %317 = vector.broadcast %316 : vector<1x128xf32> to vector<16x128xf32>
    %318 = arith.addf %315, %317 : vector<16x128xf32>
    %c0_103 = arith.constant 0 : index
    %c0_104 = arith.constant 0 : index
    %319 = vector.load %arg13[%c0_103, %c0_104] : memref<16x128xf32, #tpu.memory_space<vmem>>, vector<16x128xf32>
    tpu.vector_store %arg13[%c0_103, %c0_104], %318 {strides = array<i32>} : memref<16x128xf32, #tpu.memory_space<vmem>>, vector<16x128xf32>,
    return
  }
  func.func @transform_0(%arg0: i32) -> (i32, i32) {
    %c0_i32 = arith.constant 0 : i32
    %c0_i32_0 = arith.constant 0 : i32
    %c0_i32_1 = arith.constant 0 : i32
    return %c0_i32, %c0_i32_0 : i32, i32
  }
  func.func @transform_1(%arg0: i32) -> (i32, i32) {
    %c0_i32 = arith.constant 0 : i32
    %c0_i32_0 = arith.constant 0 : i32
    %c0_i32_1 = arith.constant 0 : i32
    return %c0_i32, %c0_i32_0 : i32, i32
  }
  func.func @transform_2(%arg0: i32) -> (i32, i32) {
    %c0_i32 = arith.constant 0 : i32
    %c0_i32_0 = arith.constant 0 : i32
    %c0_i32_1 = arith.constant 0 : i32
    return %c0_i32, %c0_i32_0 : i32, i32
  }
  func.func @transform_3(%arg0: i32) -> (i32, i32, i32) {
    %c0_i32 = arith.constant 0 : i32
    %c0_i32_0 = arith.constant 0 : i32
    %c0_i32_1 = arith.constant 0 : i32
    %c0_i32_2 = arith.constant 0 : i32
    return %c0_i32, %c0_i32_0, %c0_i32_1 : i32, i32, i32
  }
  func.func @transform_4(%arg0: i32) -> (i32, i32, i32) {
    %c0_i32 = arith.constant 0 : i32
    %c0_i32_0 = arith.constant 0 : i32
    %c0_i32_1 = arith.constant 0 : i32
    %c0_i32_2 = arith.constant 0 : i32
    return %c0_i32, %c0_i32_0, %c0_i32_1 : i32, i32, i32
  }
  func.func @transform_5(%arg0: i32) -> (i32, i32, i32) {
    %c0_i32 = arith.constant 0 : i32
    %c0_i32_0 = arith.constant 0 : i32
    %c0_i32_1 = arith.constant 0 : i32
    %c0_i32_2 = arith.constant 0 : i32
    return %c0_i32, %c0_i32_0, %c0_i32_1 : i32, i32, i32
  }
  func.func @transform_6(%arg0: i32) -> (i32, i32, i32) {
    %c0_i32 = arith.constant 0 : i32
    %c0_i32_0 = arith.constant 0 : i32
    %c0_i32_1 = arith.constant 0 : i32
    %c0_i32_2 = arith.constant 0 : i32
    return %c0_i32, %c0_i32_0, %c0_i32_1 : i32, i32, i32
  }
  func.func @transform_7(%arg0: i32) -> (i32, i32, i32) {
    %c0_i32 = arith.constant 0 : i32
    %c0_i32_0 = arith.constant 0 : i32
    %c0_i32_1 = arith.constant 0 : i32
    %c0_i32_2 = arith.constant 0 : i32
    return %c0_i32, %c0_i32_0, %c0_i32_1 : i32, i32, i32
  }
  func.func @transform_8(%arg0: i32) -> (i32, i32, i32) {
    %c0_i32 = arith.constant 0 : i32
    %c0_i32_0 = arith.constant 0 : i32
    %c0_i32_1 = arith.constant 0 : i32
    %c0_i32_2 = arith.constant 0 : i32
    return %c0_i32, %c0_i32_0, %c0_i32_1 : i32, i32, i32
  }
  func.func @transform_9(%arg0: i32) -> (i32, i32, i32) {
    %c0_i32 = arith.constant 0 : i32
    %c0_i32_0 = arith.constant 0 : i32
    %c0_i32_1 = arith.constant 0 : i32
    %c0_i32_2 = arith.constant 0 : i32
    return %c0_i32, %c0_i32_0, %c0_i32_1 : i32, i32, i32
  }
  func.func @transform_10(%arg0: i32) -> (i32, i32) {
    %c0_i32 = arith.constant 0 : i32
    %c0_i32_0 = arith.constant 0 : i32
    %c0_i32_1 = arith.constant 0 : i32
    return %c0_i32, %c0_i32_0 : i32, i32
  }
  func.func @transform_11(%arg0: i32) -> (i32, i32) {
    %c0_i32 = arith.constant 0 : i32
    %c0_i32_0 = arith.constant 0 : i32
    %c0_i32_1 = arith.constant 0 : i32
    return %c0_i32, %c0_i32_0 : i32, i32
  }
  func.func @transform_12(%arg0: i32) -> (i32, i32) {
    %c0_i32 = arith.constant 0 : i32
    %c0_i32_0 = arith.constant 0 : i32
    %c0_i32_1 = arith.constant 0 : i32
    return %c0_i32, %c0_i32_0 : i32, i32
  }
}

</mosaic_0001>

<llo_original>
// kernel: bert_model_forward.1
$region0: #{bert_model_forward.1}
  #allocation0 [shape = 'u32[]', space=smem, size = 0x4, offset = 0x4, fixed_abs, tag = 'smem constant byte address 0x4 - core index']
  #allocation1 [shape = 'u32[144,128]{1,0:T(1,128)}', space=vmem, size = 0x12000, scoped, tag = 'internal scratch']
  %s0 = inlined_call_operand.vmem [shape: f32[16,32], index: 0, kind: input, shape index: {}]
  %s1 = inlined_call_operand.vmem [shape: f32[16,16], index: 1, kind: input, shape index: {}]
  %s2 = inlined_call_operand.vmem [shape: f32[2,32], index: 2, kind: input, shape index: {}]
  %s3 = inlined_call_operand.vmem [shape: f32[2,32,96], index: 3, kind: input, shape index: {}]
  %s4 = inlined_call_operand.vmem [shape: f32[2,1,96], index: 4, kind: input, shape index: {}]
  %s5 = inlined_call_operand.vmem [shape: f32[2,32,32], index: 5, kind: input, shape index: {}]
  %s6 = inlined_call_operand.vmem [shape: f32[2,32,64], index: 6, kind: input, shape index: {}]
  %s7 = inlined_call_operand.vmem [shape: f32[2,1,64], index: 7, kind: input, shape index: {}]
  %s8 = inlined_call_operand.vmem [shape: f32[2,64,32], index: 8, kind: input, shape index: {}]
  %s9 = inlined_call_operand.vmem [shape: f32[2,6,32], index: 9, kind: input, shape index: {}]
  %s10 = inlined_call_operand.vmem [shape: f32[32,128], index: 10, kind: input, shape index: {}]
  %s11 = inlined_call_operand.vmem [shape: f32[1,128], index: 11, kind: input, shape index: {}]
  %s12 = inlined_call_operand.vmem [shape: f32[16,128], index: 12, kind: output, shape index: {}]
  %s13 = sld [smem:[#allocation0]]
  $region58: #{bert_model_forward.1} parent=0
    _
  %s15 = ssub.s32 1, %s13
  %s16 = scalar_select 0, %s15, %s13
  // Predicated region
  $region2: #{bert_model_forward.1} parent=0 // pred_check
    _
  $region3: #{bert_model_forward.1} parent=0 // pred_check_branch
    %18 = sbr.rel (0) target = $region5
  $region4: #{bert_model_forward.1} parent=0 // pred_region
    _
  $region5: #{bert_model_forward.1} parent=0 // pred_fallthru
    _
  // Predicated region
  $region6: #{bert_model_forward.1} parent=0 // pred_check
    _
  $region7: #{bert_model_forward.1} parent=0 // pred_check_branch
    %20 = sbr.rel (0) target = $region9
  $region8: #{bert_model_forward.1} parent=0 // pred_region
    _
  $region9: #{bert_model_forward.1} parent=0 // pred_fallthru
    _
  // Predicated region
  $region10: #{bert_model_forward.1} parent=0 // pred_check
    _
  $region11: #{bert_model_forward.1} parent=0 // pred_check_branch
    %22 = sbr.rel (0) target = $region13
  $region12: #{bert_model_forward.1} parent=0 // pred_region
    _
  $region13: #{bert_model_forward.1} parent=0 // pred_fallthru
    _
  // Predicated region
  $region14: #{bert_model_forward.1} parent=0 // pred_check
    _
  $region15: #{bert_model_forward.1} parent=0 // pred_check_branch
    %24 = sbr.rel (0) target = $region17
  $region16: #{bert_model_forward.1} parent=0 // pred_region
    _
  $region17: #{bert_model_forward.1} parent=0 // pred_fallthru
    _
  // Predicated region
  $region18: #{bert_model_forward.1} parent=0 // pred_check
    _
  $region19: #{bert_model_forward.1} parent=0 // pred_check_branch
    %26 = sbr.rel (0) target = $region21
  $region20: #{bert_model_forward.1} parent=0 // pred_region
    _
  $region21: #{bert_model_forward.1} parent=0 // pred_fallthru
    _
  // Predicated region
  $region22: #{bert_model_forward.1} parent=0 // pred_check
    _
  $region23: #{bert_model_forward.1} parent=0 // pred_check_branch
    %28 = sbr.rel (0) target = $region25
  $region24: #{bert_model_forward.1} parent=0 // pred_region
    _
  $region25: #{bert_model_forward.1} parent=0 // pred_fallthru
    _
  // Predicated region
  $region26: #{bert_model_forward.1} parent=0 // pred_check
    _
  $region27: #{bert_model_forward.1} parent=0 // pred_check_branch
    %30 = sbr.rel (0) target = $region29
  $region28: #{bert_model_forward.1} parent=0 // pred_region
    _
  $region29: #{bert_model_forward.1} parent=0 // pred_fallthru
    _
  // Predicated region
  $region30: #{bert_model_forward.1} parent=0 // pred_check
    _
  $region31: #{bert_model_forward.1} parent=0 // pred_check_branch
    %32 = sbr.rel (0) target = $region33
  $region32: #{bert_model_forward.1} parent=0 // pred_region
    _
  $region33: #{bert_model_forward.1} parent=0 // pred_fallthru
    _
  // Predicated region
  $region34: #{bert_model_forward.1} parent=0 // pred_check
    _
  $region35: #{bert_model_forward.1} parent=0 // pred_check_branch
    %34 = sbr.rel (0) target = $region37
  $region36: #{bert_model_forward.1} parent=0 // pred_region
    _
  $region37: #{bert_model_forward.1} parent=0 // pred_fallthru
    _
  // Predicated region
  $region38: #{bert_model_forward.1} parent=0 // pred_check
    _
  $region39: #{bert_model_forward.1} parent=0 // pred_check_branch
    %36 = sbr.rel (0) target = $region41
  $region40: #{bert_model_forward.1} parent=0 // pred_region
    _
  $region41: #{bert_model_forward.1} parent=0 // pred_fallthru
    _
  // Predicated region
  $region42: #{bert_model_forward.1} parent=0 // pred_check
    _
  $region43: #{bert_model_forward.1} parent=0 // pred_check_branch
    %38 = sbr.rel (0) target = $region45
  $region44: #{bert_model_forward.1} parent=0 // pred_region
    _
  $region45: #{bert_model_forward.1} parent=0 // pred_fallthru
    _
  // Predicated region
  $region46: #{bert_model_forward.1} parent=0 // pred_check
    _
  $region47: #{bert_model_forward.1} parent=0 // pred_check_branch
    %40 = sbr.rel (0) target = $region49
  $region48: #{bert_model_forward.1} parent=0 // pred_region
    _
  $region49: #{bert_model_forward.1} parent=0 // pred_fallthru
    _
  %v41 = vld [vmem:[%s0] sm:$0xff]
  %v42 = vld [vmem:[%s0 + $0x8] sm:$0xff]
  %v43 = vld [vmem:[%s2] sm:$0x1]
  %v44 = vld [vmem:[%s2 + $0x1] sm:$0x1]
  %vm45 = vcmask 261120
  %v46 = vsel %vm45, %v41, 0.0
  %47 = vadd.xlane.f32.xlu0 %v46
  %v48 = vpop.xlane.xlu0 %47
  %v49 = vsel %vm45, %v42, 0.0
  %50 = vadd.xlane.f32.xlu0 %v49
  %v51 = vpop.xlane.xlu0 %50
  %v52 = vrcp.pop 32.0
  %v53 = vmul.f32 %v48, %v52
  %v54 = vmul.f32 %v51, %v52
  %v55 = vsub.f32 %v41, %v53
  %v56 = vsub.f32 %v42, %v54
  %v57 = vmul.f32 %v55, %v55
  %v58 = vmul.f32 %v56, %v56
  %v59 = vsel %vm45, %v57, 0.0
  %60 = vadd.xlane.f32.xlu0 %v59
  %v61 = vpop.xlane.xlu0 %60
  %v62 = vsel %vm45, %v58, 0.0
  %63 = vadd.xlane.f32.xlu0 %v62
  %v64 = vpop.xlane.xlu0 %63
  %v65 = vmul.f32 %v61, %v52
  %v66 = vmul.f32 %v64, %v52
  %v67 = vadd.f32 %v65, 1e-12
  %v68 = vadd.f32 %v66, 1e-12
  %v69 = vrsqrt.pop %v67
  %v70 = vrsqrt.pop %v68
  %v71 = vmul.f32 %v55, %v69
  %v72 = vmul.f32 %v56, %v70
  %v73 = vlaneseq
  %v74 = vshrl.u32 %v73, 7
  %v75 = vsub.s32 0, %v74
  %v76 = vrot.slane %v43, %v75
  %v77 = vmul.f32 %v71, %v76
  %v78 = vmul.f32 %v72, %v76
  %v79 = vlaneseq
  %v80 = vshrl.u32 %v79, 7
  %v81 = vsub.s32 0, %v80
  %v82 = vrot.slane %v44, %v81
  %v83 = vadd.f32 %v77, %v82
  %v84 = vadd.f32 %v78, %v82
  %v85 = vld [vmem:[%s1] sm:$0xff]
  %v86 = vld [vmem:[%s1 + $0x8] sm:$0xff]
  %v87 = vld [vmem:[%s9] sm:$0x3f]
  %v88 = vld [vmem:[%s3] sm:$0xff]
  %v89 = vld [vmem:[%s3 + $0x8] sm:$0xff]
  %v90 = vld [vmem:[%s3 + $0x10] sm:$0xff]
  %v91 = vld [vmem:[%s3 + $0x18] sm:$0xff]
  %v92 = vld [vmem:[%s4] sm:$0x1]
  %v94 = vlaneseq
  %v95 = vshrl.u32 %v94, 7
  %v96 = vsub.s32 0, %v95
  %v97 = vrot.slane %v92, %v96
  %v100 = vsel %vm45, %v83, 0
  %v103 = vsel %vm45, %v84, 0
  %105 = vmatprep.subr.mxu0 0.0
  %106 = vmatpush1.msra.mxu0 %v88
  %107 = vmatprep.subr.mxu0 0.0
  %108 = vmatpush1.msra.mxu0 %v89
  %109 = vmatprep.subr.mxu0 0.0
  %110 = vmatpush1.msra.mxu0 %v90
  %111 = vmatprep.subr.mxu0 0.0
  %112 = vmatpush1.msra.mxu0 %v91
  %113 = vmatprep.subr.mxu0 0.0
  %114 = vmatpush1.msra.mxu0 0.0
  %115 = vmatprep.subr.mxu0 0.0
  %116 = vmatpush1.msra.mxu0 0.0
  %117 = vmatprep.subr.mxu0 0.0
  %118 = vmatpush1.msra.mxu0 0.0
  %119 = vmatprep.subr.mxu0 0.0
  %120 = vmatpush1.msra.mxu0 0.0
  %121 = vmatprep.subr.mxu0 0.0
  %122 = vmatpush1.msra.mxu0 0.0
  %123 = vmatprep.subr.mxu0 0.0
  %124 = vmatpush1.msra.mxu0 0.0
  %125 = vmatprep.subr.mxu0 0.0
  %126 = vmatpush1.msra.mxu0 0.0
  %127 = vmatprep.subr.mxu0 0.0
  %128 = vmatpush1.msra.mxu0 0.0
  %129 = vmatprep.subr.mxu0 0.0
  %130 = vmatpush1.msra.mxu0 0.0
  %131 = vmatprep.subr.mxu0 0.0
  %132 = vmatpush1.msra.mxu0 0.0
  %133 = vmatprep.subr.mxu0 0.0
  %134 = vmatpush1.msra.mxu0 0.0
  %135 = vmatprep.subr.mxu0 0.0
  %136 = vmatpush1.msra.mxu0 0.0
  %137 = vmatprep.subr.mxu0 0.0
  %138 = vmatpush1.msra.mxu0 0.0
  %139 = vmatprep.subr.mxu0 0.0
  %140 = vmatpush1.msra.mxu0 0.0
  %141 = vmatprep.subr.mxu0 0.0
  %142 = vmatpush1.msra.mxu0 0.0
  %143 = vmatprep.subr.mxu0 0.0
  %144 = vmatpush1.msra.mxu0 0.0
  %145 = vmatprep.subr.mxu0 0.0
  %146 = vmatpush1.msra.mxu0 0.0
  %147 = vmatprep.subr.mxu0 0.0
  %148 = vmatpush1.msra.mxu0 0.0
  %149 = vmatprep.subr.mxu0 0.0
  %150 = vmatpush1.msra.mxu0 0.0
  %151 = vmatprep.subr.mxu0 0.0
  %152 = vmatpush1.msra.mxu0 0.0
  %153 = vmatprep.subr.mxu0 0.0
  %154 = vmatpush1.msra.mxu0 0.0
  %155 = vmatprep.subr.mxu0 0.0
  %156 = vmatpush1.msra.mxu0 0.0
  %157 = vmatprep.subr.mxu0 0.0
  %158 = vmatpush1.msra.mxu0 0.0
  %159 = vmatprep.subr.mxu0 0.0
  %160 = vmatpush1.msra.mxu0 0.0
  %161 = vmatprep.subr.mxu0 0.0
  %162 = vmatpush1.msra.mxu0 0.0
  %163 = vmatprep.subr.mxu0 0.0
  %164 = vmatpush1.msra.mxu0 0.0
  %165 = vmatprep.subr.mxu0 0.0
  %166 = vmatpush1.msra.mxu0 0.0
  %167 = vmatprep.subr.mxu0 0.0
  %168 = vmatpush1.msra.mxu0 0.0
  %169 = vmatprep.mubr.f32.mxu0 0.0
  %170 = vmatmul.mubr.f32.gmra.mrb[0].mxu0 %v100
  %v171 = vpop.f32.mrb[0].mxu0
  %v172 = vadd.f32 %v97, %v171
  %v173 = vpop.f32.mrb[0].mxu0
  %174 = vmatprep.mubr.f32.mxu0 0.0
  %175 = vmatmul.mubr.f32.gmra.mrb[0].mxu0 %v103
  %v176 = vpop.f32.mrb[0].mxu0
  %v177 = vadd.f32 %v97, %v176
  %v178 = vpop.f32.mrb[0].mxu0
  %179 = vdwg.mxu0
  %182 = vrot.lane.b32.xlu0 %v172, 120
  %v183 = vpop.permute.xlu0 %182
  %184 = vrot.lane.b32.xlu0 %v177, 120
  %v185 = vpop.permute.xlu0 %184
  %186 = vrot.lane.b32.xlu0 %v172, 112
  %v187 = vpop.permute.xlu0 %186
  %188 = vrot.lane.b32.xlu0 %v177, 112
  %v189 = vpop.permute.xlu0 %188
  %190 = vrot.lane.b32.xlu0 %v172, 104
  %v191 = vpop.permute.xlu0 %190
  %192 = vrot.lane.b32.xlu0 %v177, 104
  %v193 = vpop.permute.xlu0 %192
  %194 = vrot.lane.b32.xlu0 %v172, 96
  %v195 = vpop.permute.xlu0 %194
  %196 = vrot.lane.b32.xlu0 %v177, 96
  %v197 = vpop.permute.xlu0 %196
  %vm198 = vcmask 64512
  %v199 = vsel %vm198, %v172, 0
  %v201 = vsel %vm198, %v177, 0
  %v203 = vsel %vm198, %v195, 0
  %v205 = vsel %vm198, %v197, 0
  %207 = vmatprep.subr.mxu0 0.0
  %208 = vmatpush1.xpose.msra.mxu0 %v203
  %209 = vmatprep.subr.mxu0 0.0
  %210 = vmatpush1.xpose.msra.mxu0 %v205
  %211 = vmatprep.subr.mxu0 0.0
  %212 = vmatpush1.xpose.msra.mxu0 0.0
  %213 = vmatprep.subr.mxu0 0.0
  %214 = vmatpush1.xpose.msra.mxu0 0.0
  %215 = vmatprep.subr.mxu0 0.0
  %216 = vmatpush1.xpose.msra.mxu0 0.0
  %217 = vmatprep.subr.mxu0 0.0
  %218 = vmatpush1.xpose.msra.mxu0 0.0
  %219 = vmatprep.subr.mxu0 0.0
  %220 = vmatpush1.xpose.msra.mxu0 0.0
  %221 = vmatprep.subr.mxu0 0.0
  %222 = vmatpush1.xpose.msra.mxu0 0.0
  %223 = vmatprep.subr.mxu0 0.0
  %224 = vmatpush1.xpose.msra.mxu0 0.0
  %225 = vmatprep.subr.mxu0 0.0
  %226 = vmatpush1.xpose.msra.mxu0 0.0
  %227 = vmatprep.subr.mxu0 0.0
  %228 = vmatpush1.xpose.msra.mxu0 0.0
  %229 = vmatprep.subr.mxu0 0.0
  %230 = vmatpush1.xpose.msra.mxu0 0.0
  %231 = vmatprep.subr.mxu0 0.0
  %232 = vmatpush1.xpose.msra.mxu0 0.0
  %233 = vmatprep.subr.mxu0 0.0
  %234 = vmatpush1.xpose.msra.mxu0 0.0
  %235 = vmatprep.subr.mxu0 0.0
  %236 = vmatpush1.xpose.msra.mxu0 0.0
  %237 = vmatprep.subr.mxu0 0.0
  %238 = vmatpush1.xpose.msra.mxu0 0.0
  %239 = vmatprep.subr.mxu0 0.0
  %240 = vmatpush1.xpose.msra.mxu0 0.0
  %241 = vmatprep.subr.mxu0 0.0
  %242 = vmatpush1.xpose.msra.mxu0 0.0
  %243 = vmatprep.subr.mxu0 0.0
  %244 = vmatpush1.xpose.msra.mxu0 0.0
  %245 = vmatprep.subr.mxu0 0.0
  %246 = vmatpush1.xpose.msra.mxu0 0.0
  %247 = vmatprep.subr.mxu0 0.0
  %248 = vmatpush1.xpose.msra.mxu0 0.0
  %249 = vmatprep.subr.mxu0 0.0
  %250 = vmatpush1.xpose.msra.mxu0 0.0
  %251 = vmatprep.subr.mxu0 0.0
  %252 = vmatpush1.xpose.msra.mxu0 0.0
  %253 = vmatprep.subr.mxu0 0.0
  %254 = vmatpush1.xpose.msra.mxu0 0.0
  %255 = vmatprep.subr.mxu0 0.0
  %256 = vmatpush1.xpose.msra.mxu0 0.0
  %257 = vmatprep.subr.mxu0 0.0
  %258 = vmatpush1.xpose.msra.mxu0 0.0
  %259 = vmatprep.subr.mxu0 0.0
  %260 = vmatpush1.xpose.msra.mxu0 0.0
  %261 = vmatprep.subr.mxu0 0.0
  %262 = vmatpush1.xpose.msra.mxu0 0.0
  %263 = vmatprep.subr.mxu0 0.0
  %264 = vmatpush1.xpose.msra.mxu0 0.0
  %265 = vmatprep.subr.mxu0 0.0
  %266 = vmatpush1.xpose.msra.mxu0 0.0
  %267 = vmatprep.subr.mxu0 0.0
  %268 = vmatpush1.xpose.msra.mxu0 0.0
  %269 = vmatprep.subr.mxu0 0.0
  %270 = vmatpush1.xpose.msra.mxu0 0.0
  %271 = vmatprep.mubr.f32.mxu0 0.0
  %272 = vmatmul.mubr.f32.gmra.mrb[0].mxu0 %v199
  %v273 = vpop.f32.mrb[0].mxu0
  %v274 = vadd.f32 0.0, %v273
  %v275 = vpop.f32.mrb[0].mxu0
  %276 = vmatprep.mubr.f32.mxu0 0.0
  %277 = vmatmul.mubr.f32.gmra.mrb[0].mxu0 %v201
  %v278 = vpop.f32.mrb[0].mxu0
  %v279 = vadd.f32 0.0, %v278
  %v280 = vpop.f32.mrb[0].mxu0
  %281 = vdwg.mxu0
  %282 = vrot.lane.b32.xlu0 %v183, 96
  %v283 = vpop.permute.xlu0 %282
  %284 = vrot.lane.b32.xlu0 %v185, 96
  %v285 = vpop.permute.xlu0 %284
  %v286 = vsel %vm198, %v183, 0
  %v288 = vsel %vm198, %v185, 0
  %v290 = vsel %vm198, %v283, 0
  %v292 = vsel %vm198, %v285, 0
  %294 = vmatprep.subr.mxu0 0.0
  %295 = vmatpush1.xpose.msra.mxu0 %v290
  %296 = vmatprep.subr.mxu0 0.0
  %297 = vmatpush1.xpose.msra.mxu0 %v292
  %298 = vmatprep.subr.mxu0 0.0
  %299 = vmatpush1.xpose.msra.mxu0 0.0
  %300 = vmatprep.subr.mxu0 0.0
  %301 = vmatpush1.xpose.msra.mxu0 0.0
  %302 = vmatprep.subr.mxu0 0.0
  %303 = vmatpush1.xpose.msra.mxu0 0.0
  %304 = vmatprep.subr.mxu0 0.0
  %305 = vmatpush1.xpose.msra.mxu0 0.0
  %306 = vmatprep.subr.mxu0 0.0
  %307 = vmatpush1.xpose.msra.mxu0 0.0
  %308 = vmatprep.subr.mxu0 0.0
  %309 = vmatpush1.xpose.msra.mxu0 0.0
  %310 = vmatprep.subr.mxu0 0.0
  %311 = vmatpush1.xpose.msra.mxu0 0.0
  %312 = vmatprep.subr.mxu0 0.0
  %313 = vmatpush1.xpose.msra.mxu0 0.0
  %314 = vmatprep.subr.mxu0 0.0
  %315 = vmatpush1.xpose.msra.mxu0 0.0
  %316 = vmatprep.subr.mxu0 0.0
  %317 = vmatpush1.xpose.msra.mxu0 0.0
  %318 = vmatprep.subr.mxu0 0.0
  %319 = vmatpush1.xpose.msra.mxu0 0.0
  %320 = vmatprep.subr.mxu0 0.0
  %321 = vmatpush1.xpose.msra.mxu0 0.0
  %322 = vmatprep.subr.mxu0 0.0
  %323 = vmatpush1.xpose.msra.mxu0 0.0
  %324 = vmatprep.subr.mxu0 0.0
  %325 = vmatpush1.xpose.msra.mxu0 0.0
  %326 = vmatprep.subr.mxu0 0.0
  %327 = vmatpush1.xpose.msra.mxu0 0.0
  %328 = vmatprep.subr.mxu0 0.0
  %329 = vmatpush1.xpose.msra.mxu0 0.0
  %330 = vmatprep.subr.mxu0 0.0
  %331 = vmatpush1.xpose.msra.mxu0 0.0
  %332 = vmatprep.subr.mxu0 0.0
  %333 = vmatpush1.xpose.msra.mxu0 0.0
  %334 = vmatprep.subr.mxu0 0.0
  %335 = vmatpush1.xpose.msra.mxu0 0.0
  %336 = vmatprep.subr.mxu0 0.0
  %337 = vmatpush1.xpose.msra.mxu0 0.0
  %338 = vmatprep.subr.mxu0 0.0
  %339 = vmatpush1.xpose.msra.mxu0 0.0
  %340 = vmatprep.subr.mxu0 0.0
  %341 = vmatpush1.xpose.msra.mxu0 0.0
  %342 = vmatprep.subr.mxu0 0.0
  %343 = vmatpush1.xpose.msra.mxu0 0.0
  %344 = vmatprep.subr.mxu0 0.0
  %345 = vmatpush1.xpose.msra.mxu0 0.0
  %346 = vmatprep.subr.mxu0 0.0
  %347 = vmatpush1.xpose.msra.mxu0 0.0
  %348 = vmatprep.subr.mxu0 0.0
  %349 = vmatpush1.xpose.msra.mxu0 0.0
  %350 = vmatprep.subr.mxu0 0.0
  %351 = vmatpush1.xpose.msra.mxu0 0.0
  %352 = vmatprep.subr.mxu0 0.0
  %353 = vmatpush1.xpose.msra.mxu0 0.0
  %354 = vmatprep.subr.mxu0 0.0
  %355 = vmatpush1.xpose.msra.mxu0 0.0
  %356 = vmatprep.subr.mxu0 0.0
  %357 = vmatpush1.xpose.msra.mxu0 0.0
  %358 = vmatprep.mubr.f32.mxu0 0.0
  %359 = vmatmul.mubr.f32.gmra.mrb[0].mxu0 %v286
  %v360 = vpop.f32.mrb[0].mxu0
  %v361 = vadd.f32 0.0, %v360
  %v362 = vpop.f32.mrb[0].mxu0
  %363 = vmatprep.mubr.f32.mxu0 0.0
  %364 = vmatmul.mubr.f32.gmra.mrb[0].mxu0 %v288
  %v365 = vpop.f32.mrb[0].mxu0
  %v366 = vadd.f32 0.0, %v365
  %v367 = vpop.f32.mrb[0].mxu0
  %368 = vdwg.mxu0
  %369 = vrot.lane.b32.xlu0 %v187, 96
  %v370 = vpop.permute.xlu0 %369
  %371 = vrot.lane.b32.xlu0 %v189, 96
  %v372 = vpop.permute.xlu0 %371
  %v373 = vsel %vm198, %v187, 0
  %v375 = vsel %vm198, %v189, 0
  %v377 = vsel %vm198, %v370, 0
  %v379 = vsel %vm198, %v372, 0
  %381 = vmatprep.subr.mxu0 0.0
  %382 = vmatpush1.xpose.msra.mxu0 %v377
  %383 = vmatprep.subr.mxu0 0.0
  %384 = vmatpush1.xpose.msra.mxu0 %v379
  %385 = vmatprep.subr.mxu0 0.0
  %386 = vmatpush1.xpose.msra.mxu0 0.0
  %387 = vmatprep.subr.mxu0 0.0
  %388 = vmatpush1.xpose.msra.mxu0 0.0
  %389 = vmatprep.subr.mxu0 0.0
  %390 = vmatpush1.xpose.msra.mxu0 0.0
  %391 = vmatprep.subr.mxu0 0.0
  %392 = vmatpush1.xpose.msra.mxu0 0.0
  %393 = vmatprep.subr.mxu0 0.0
  %394 = vmatpush1.xpose.msra.mxu0 0.0
  %395 = vmatprep.subr.mxu0 0.0
  %396 = vmatpush1.xpose.msra.mxu0 0.0
  %397 = vmatprep.subr.mxu0 0.0
  %398 = vmatpush1.xpose.msra.mxu0 0.0
  %399 = vmatprep.subr.mxu0 0.0
  %400 = vmatpush1.xpose.msra.mxu0 0.0
  %401 = vmatprep.subr.mxu0 0.0
  %402 = vmatpush1.xpose.msra.mxu0 0.0
  %403 = vmatprep.subr.mxu0 0.0
  %404 = vmatpush1.xpose.msra.mxu0 0.0
  %405 = vmatprep.subr.mxu0 0.0
  %406 = vmatpush1.xpose.msra.mxu0 0.0
  %407 = vmatprep.subr.mxu0 0.0
  %408 = vmatpush1.xpose.msra.mxu0 0.0
  %409 = vmatprep.subr.mxu0 0.0
  %410 = vmatpush1.xpose.msra.mxu0 0.0
  %411 = vmatprep.subr.mxu0 0.0
  %412 = vmatpush1.xpose.msra.mxu0 0.0
  %413 = vmatprep.subr.mxu0 0.0
  %414 = vmatpush1.xpose.msra.mxu0 0.0
  %415 = vmatprep.subr.mxu0 0.0
  %416 = vmatpush1.xpose.msra.mxu0 0.0
  %417 = vmatprep.subr.mxu0 0.0
  %418 = vmatpush1.xpose.msra.mxu0 0.0
  %419 = vmatprep.subr.mxu0 0.0
  %420 = vmatpush1.xpose.msra.mxu0 0.0
  %421 = vmatprep.subr.mxu0 0.0
  %422 = vmatpush1.xpose.msra.mxu0 0.0
  %423 = vmatprep.subr.mxu0 0.0
  %424 = vmatpush1.xpose.msra.mxu0 0.0
  %425 = vmatprep.subr.mxu0 0.0
  %426 = vmatpush1.xpose.msra.mxu0 0.0
  %427 = vmatprep.subr.mxu0 0.0
  %428 = vmatpush1.xpose.msra.mxu0 0.0
  %429 = vmatprep.subr.mxu0 0.0
  %430 = vmatpush1.xpose.msra.mxu0 0.0
  %431 = vmatprep.subr.mxu0 0.0
  %432 = vmatpush1.xpose.msra.mxu0 0.0
  %433 = vmatprep.subr.mxu0 0.0
  %434 = vmatpush1.xpose.msra.mxu0 0.0
  %435 = vmatprep.subr.mxu0 0.0
  %436 = vmatpush1.xpose.msra.mxu0 0.0
  %437 = vmatprep.subr.mxu0 0.0
  %438 = vmatpush1.xpose.msra.mxu0 0.0
  %439 = vmatprep.subr.mxu0 0.0
  %440 = vmatpush1.xpose.msra.mxu0 0.0
  %441 = vmatprep.subr.mxu0 0.0
  %442 = vmatpush1.xpose.msra.mxu0 0.0
  %443 = vmatprep.subr.mxu0 0.0
  %444 = vmatpush1.xpose.msra.mxu0 0.0
  %445 = vmatprep.mubr.f32.mxu0 0.0
  %446 = vmatmul.mubr.f32.gmra.mrb[0].mxu0 %v373
  %v447 = vpop.f32.mrb[0].mxu0
  %v448 = vadd.f32 0.0, %v447
  %v449 = vpop.f32.mrb[0].mxu0
  %450 = vmatprep.mubr.f32.mxu0 0.0
  %451 = vmatmul.mubr.f32.gmra.mrb[0].mxu0 %v375
  %v452 = vpop.f32.mrb[0].mxu0
  %v453 = vadd.f32 0.0, %v452
  %v454 = vpop.f32.mrb[0].mxu0
  %455 = vdwg.mxu0
  %456 = vrot.lane.b32.xlu0 %v191, 96
  %v457 = vpop.permute.xlu0 %456
  %458 = vrot.lane.b32.xlu0 %v193, 96
  %v459 = vpop.permute.xlu0 %458
  %v460 = vsel %vm198, %v191, 0
  %v462 = vsel %vm198, %v193, 0
  %v464 = vsel %vm198, %v457, 0
  %v466 = vsel %vm198, %v459, 0
  %468 = vmatprep.subr.mxu0 0.0
  %469 = vmatpush1.xpose.msra.mxu0 %v464
  %470 = vmatprep.subr.mxu0 0.0
  %471 = vmatpush1.xpose.msra.mxu0 %v466
  %472 = vmatprep.subr.mxu0 0.0
  %473 = vmatpush1.xpose.msra.mxu0 0.0
  %474 = vmatprep.subr.mxu0 0.0
  %475 = vmatpush1.xpose.msra.mxu0 0.0
  %476 = vmatprep.subr.mxu0 0.0
  %477 = vmatpush1.xpose.msra.mxu0 0.0
  %478 = vmatprep.subr.mxu0 0.0
  %479 = vmatpush1.xpose.msra.mxu0 0.0
  %480 = vmatprep.subr.mxu0 0.0
  %481 = vmatpush1.xpose.msra.mxu0 0.0
  %482 = vmatprep.subr.mxu0 0.0
  %483 = vmatpush1.xpose.msra.mxu0 0.0
  %484 = vmatprep.subr.mxu0 0.0
  %485 = vmatpush1.xpose.msra.mxu0 0.0
  %486 = vmatprep.subr.mxu0 0.0
  %487 = vmatpush1.xpose.msra.mxu0 0.0
  %488 = vmatprep.subr.mxu0 0.0
  %489 = vmatpush1.xpose.msra.mxu0 0.0
  %490 = vmatprep.subr.mxu0 0.0
  %491 = vmatpush1.xpose.msra.mxu0 0.0
  %492 = vmatprep.subr.mxu0 0.0
  %493 = vmatpush1.xpose.msra.mxu0 0.0
  %494 = vmatprep.subr.mxu0 0.0
  %495 = vmatpush1.xpose.msra.mxu0 0.0
  %496 = vmatprep.subr.mxu0 0.0
  %497 = vmatpush1.xpose.msra.mxu0 0.0
  %498 = vmatprep.subr.mxu0 0.0
  %499 = vmatpush1.xpose.msra.mxu0 0.0
  %500 = vmatprep.subr.mxu0 0.0
  %501 = vmatpush1.xpose.msra.mxu0 0.0
  %502 = vmatprep.subr.mxu0 0.0
  %503 = vmatpush1.xpose.msra.mxu0 0.0
  %504 = vmatprep.subr.mxu0 0.0
  %505 = vmatpush1.xpose.msra.mxu0 0.0
  %506 = vmatprep.subr.mxu0 0.0
  %507 = vmatpush1.xpose.msra.mxu0 0.0
  %508 = vmatprep.subr.mxu0 0.0
  %509 = vmatpush1.xpose.msra.mxu0 0.0
  %510 = vmatprep.subr.mxu0 0.0
  %511 = vmatpush1.xpose.msra.mxu0 0.0
  %512 = vmatprep.subr.mxu0 0.0
  %513 = vmatpush1.xpose.msra.mxu0 0.0
  %514 = vmatprep.subr.mxu0 0.0
  %515 = vmatpush1.xpose.msra.mxu0 0.0
  %516 = vmatprep.subr.mxu0 0.0
  %517 = vmatpush1.xpose.msra.mxu0 0.0
  %518 = vmatprep.subr.mxu0 0.0
  %519 = vmatpush1.xpose.msra.mxu0 0.0
  %520 = vmatprep.subr.mxu0 0.0
  %521 = vmatpush1.xpose.msra.mxu0 0.0
  %522 = vmatprep.subr.mxu0 0.0
  %523 = vmatpush1.xpose.msra.mxu0 0.0
  %524 = vmatprep.subr.mxu0 0.0
  %525 = vmatpush1.xpose.msra.mxu0 0.0
  %526 = vmatprep.subr.mxu0 0.0
  %527 = vmatpush1.xpose.msra.mxu0 0.0
  %528 = vmatprep.subr.mxu0 0.0
  %529 = vmatpush1.xpose.msra.mxu0 0.0
  %530 = vmatprep.subr.mxu0 0.0
  %531 = vmatpush1.xpose.msra.mxu0 0.0
  %532 = vmatprep.mubr.f32.mxu0 0.0
  %533 = vmatmul.mubr.f32.gmra.mrb[0].mxu0 %v460
  %v534 = vpop.f32.mrb[0].mxu0
  %v535 = vadd.f32 0.0, %v534
  %v536 = vpop.f32.mrb[0].mxu0
  %537 = vmatprep.mubr.f32.mxu0 0.0
  %538 = vmatmul.mubr.f32.gmra.mrb[0].mxu0 %v462
  %v539 = vpop.f32.mrb[0].mxu0
  %v540 = vadd.f32 0.0, %v539
  %v541 = vpop.f32.mrb[0].mxu0
  %542 = vdwg.mxu0
  %v543 = vmul.f32 %v274, 0.35355338
  %v544 = vmul.f32 %v279, 0.35355338
  %v545 = vmul.f32 %v361, 0.35355338
  %v546 = vmul.f32 %v366, 0.35355338
  %v547 = vmul.f32 %v448, 0.35355338
  %v548 = vmul.f32 %v453, 0.35355338
  %v549 = vmul.f32 %v535, 0.35355338
  %v550 = vmul.f32 %v540, 0.35355338
  %v551 = vadd.f32 %v543, %v85
  %v552 = vadd.f32 %v544, %v86
  %v553 = vadd.f32 %v545, %v85
  %v554 = vadd.f32 %v546, %v86
  %v555 = vadd.f32 %v547, %v85
  %v556 = vadd.f32 %v548, %v86
  %v557 = vadd.f32 %v549, %v85
  %v558 = vadd.f32 %v550, %v86
  %vm559 = vcmask 130048
  %v560 = vsel %vm559, %v551, -inf
  %561 = vmax.xlane.f32.xlu0 %v560
  %v562 = vpop.xlane.xlu0 %561
  %v563 = vsel %vm559, %v552, -inf
  %564 = vmax.xlane.f32.xlu0 %v563
  %v565 = vpop.xlane.xlu0 %564
  %v566 = vsel %vm559, %v553, -inf
  %567 = vmax.xlane.f32.xlu0 %v566
  %v568 = vpop.xlane.xlu0 %567
  %v569 = vsel %vm559, %v554, -inf
  %570 = vmax.xlane.f32.xlu0 %v569
  %v571 = vpop.xlane.xlu0 %570
  %v572 = vsel %vm559, %v555, -inf
  %573 = vmax.xlane.f32.xlu0 %v572
  %v574 = vpop.xlane.xlu0 %573
  %v575 = vsel %vm559, %v556, -inf
  %576 = vmax.xlane.f32.xlu0 %v575
  %v577 = vpop.xlane.xlu0 %576
  %v578 = vsel %vm559, %v557, -inf
  %579 = vmax.xlane.f32.xlu0 %v578
  %v580 = vpop.xlane.xlu0 %579
  %v581 = vsel %vm559, %v558, -inf
  %582 = vmax.xlane.f32.xlu0 %v581
  %v583 = vpop.xlane.xlu0 %582
  %v584 = vsub.f32 %v551, %v562
  %v585 = vsub.f32 %v552, %v565
  %v586 = vsub.f32 %v553, %v568
  %v587 = vsub.f32 %v554, %v571
  %v588 = vsub.f32 %v555, %v574
  %v589 = vsub.f32 %v556, %v577
  %v590 = vsub.f32 %v557, %v580
  %v591 = vsub.f32 %v558, %v583
  %v592 = vmul.f32 %v584, 1.442695
  %v593 = vpow.pop %v592
  %v594 = vmul.f32 %v585, 1.442695
  %v595 = vpow.pop %v594
  %v596 = vmul.f32 %v586, 1.442695
  %v597 = vpow.pop %v596
  %v598 = vmul.f32 %v587, 1.442695
  %v599 = vpow.pop %v598
  %v600 = vmul.f32 %v588, 1.442695
  %v601 = vpow.pop %v600
  %v602 = vmul.f32 %v589, 1.442695
  %v603 = vpow.pop %v602
  %v604 = vmul.f32 %v590, 1.442695
  %v605 = vpow.pop %v604
  %v606 = vmul.f32 %v591, 1.442695
  %v607 = vpow.pop %v606
  %v608 = vsel %vm559, %v593, 0.0
  %609 = vadd.xlane.f32.xlu0 %v608
  %v610 = vpop.xlane.xlu0 %609
  %v611 = vsel %vm559, %v595, 0.0
  %612 = vadd.xlane.f32.xlu0 %v611
  %v613 = vpop.xlane.xlu0 %612
  %v614 = vsel %vm559, %v597, 0.0
  %615 = vadd.xlane.f32.xlu0 %v614
  %v616 = vpop.xlane.xlu0 %615
  %v617 = vsel %vm559, %v599, 0.0
  %618 = vadd.xlane.f32.xlu0 %v617
  %v619 = vpop.xlane.xlu0 %618
  %v620 = vsel %vm559, %v601, 0.0
  %621 = vadd.xlane.f32.xlu0 %v620
  %v622 = vpop.xlane.xlu0 %621
  %v623 = vsel %vm559, %v603, 0.0
  %624 = vadd.xlane.f32.xlu0 %v623
  %v625 = vpop.xlane.xlu0 %624
  %v626 = vsel %vm559, %v605, 0.0
  %627 = vadd.xlane.f32.xlu0 %v626
  %v628 = vpop.xlane.xlu0 %627
  %v629 = vsel %vm559, %v607, 0.0
  %630 = vadd.xlane.f32.xlu0 %v629
  %v631 = vpop.xlane.xlu0 %630
  %v632 = vrcp.pop %v610
  %v633 = vrcp.pop %v613
  %v634 = vrcp.pop %v616
  %v635 = vrcp.pop %v619
  %v636 = vrcp.pop %v622
  %v637 = vrcp.pop %v625
  %v638 = vrcp.pop %v628
  %v639 = vrcp.pop %v631
  %v640 = vmul.f32 %v593, %v632
  %v641 = vmul.f32 %v595, %v633
  %v642 = vmul.f32 %v597, %v634
  %v643 = vmul.f32 %v599, %v635
  %v644 = vmul.f32 %v601, %v636
  %v645 = vmul.f32 %v603, %v637
  %v646 = vmul.f32 %v605, %v638
  %v647 = vmul.f32 %v607, %v639
  %648 = vrot.lane.b32.xlu0 %v172, 64
  %v649 = vpop.permute.xlu0 %648
  %650 = vrot.lane.b32.xlu0 %v177, 64
  %v651 = vpop.permute.xlu0 %650
  %v655 = vsel %vm559, %v640, 0
  %v658 = vsel %vm559, %v641, 0
  %660 = vmatprep.subr.mxu0 0.0
  %661 = vmatpush1.msra.mxu0 %v649
  %662 = vmatprep.subr.mxu0 0.0
  %663 = vmatpush1.msra.mxu0 %v651
  %664 = vmatprep.subr.mxu0 0.0
  %665 = vmatpush1.msra.mxu0 0.0
  %666 = vmatprep.subr.mxu0 0.0
  %667 = vmatpush1.msra.mxu0 0.0
  %668 = vmatprep.subr.mxu0 0.0
  %669 = vmatpush1.msra.mxu0 0.0
  %670 = vmatprep.subr.mxu0 0.0
  %671 = vmatpush1.msra.mxu0 0.0
  %672 = vmatprep.subr.mxu0 0.0
  %673 = vmatpush1.msra.mxu0 0.0
  %674 = vmatprep.subr.mxu0 0.0
  %675 = vmatpush1.msra.mxu0 0.0
  %676 = vmatprep.subr.mxu0 0.0
  %677 = vmatpush1.msra.mxu0 0.0
  %678 = vmatprep.subr.mxu0 0.0
  %679 = vmatpush1.msra.mxu0 0.0
  %680 = vmatprep.subr.mxu0 0.0
  %681 = vmatpush1.msra.mxu0 0.0
  %682 = vmatprep.subr.mxu0 0.0
  %683 = vmatpush1.msra.mxu0 0.0
  %684 = vmatprep.subr.mxu0 0.0
  %685 = vmatpush1.msra.mxu0 0.0
  %686 = vmatprep.subr.mxu0 0.0
  %687 = vmatpush1.msra.mxu0 0.0
  %688 = vmatprep.subr.mxu0 0.0
  %689 = vmatpush1.msra.mxu0 0.0
  %690 = vmatprep.subr.mxu0 0.0
  %691 = vmatpush1.msra.mxu0 0.0
  %692 = vmatprep.subr.mxu0 0.0
  %693 = vmatpush1.msra.mxu0 0.0
  %694 = vmatprep.subr.mxu0 0.0
  %695 = vmatpush1.msra.mxu0 0.0
  %696 = vmatprep.subr.mxu0 0.0
  %697 = vmatpush1.msra.mxu0 0.0
  %698 = vmatprep.subr.mxu0 0.0
  %699 = vmatpush1.msra.mxu0 0.0
  %700 = vmatprep.subr.mxu0 0.0
  %701 = vmatpush1.msra.mxu0 0.0
  %702 = vmatprep.subr.mxu0 0.0
  %703 = vmatpush1.msra.mxu0 0.0
  %704 = vmatprep.subr.mxu0 0.0
  %705 = vmatpush1.msra.mxu0 0.0
  %706 = vmatprep.subr.mxu0 0.0
  %707 = vmatpush1.msra.mxu0 0.0
  %708 = vmatprep.subr.mxu0 0.0
  %709 = vmatpush1.msra.mxu0 0.0
  %710 = vmatprep.subr.mxu0 0.0
  %711 = vmatpush1.msra.mxu0 0.0
  %712 = vmatprep.subr.mxu0 0.0
  %713 = vmatpush1.msra.mxu0 0.0
  %714 = vmatprep.subr.mxu0 0.0
  %715 = vmatpush1.msra.mxu0 0.0
  %716 = vmatprep.subr.mxu0 0.0
  %717 = vmatpush1.msra.mxu0 0.0
  %718 = vmatprep.subr.mxu0 0.0
  %719 = vmatpush1.msra.mxu0 0.0
  %720 = vmatprep.subr.mxu0 0.0
  %721 = vmatpush1.msra.mxu0 0.0
  %722 = vmatprep.subr.mxu0 0.0
  %723 = vmatpush1.msra.mxu0 0.0
  %724 = vmatprep.mubr.f32.mxu0 0.0
  %725 = vmatmul.mubr.f32.gmra.mrb[0].mxu0 %v655
  %v726 = vpop.f32.mrb[0].mxu0
  %v727 = vadd.f32 0.0, %v726
  %v728 = vpop.f32.mrb[0].mxu0
  %729 = vmatprep.mubr.f32.mxu0 0.0
  %730 = vmatmul.mubr.f32.gmra.mrb[0].mxu0 %v658
  %v731 = vpop.f32.mrb[0].mxu0
  %v732 = vadd.f32 0.0, %v731
  %v733 = vpop.f32.mrb[0].mxu0
  %734 = vdwg.mxu0
  %735 = vrot.lane.b32.xlu0 %v183, 64
  %v736 = vpop.permute.xlu0 %735
  %737 = vrot.lane.b32.xlu0 %v185, 64
  %v738 = vpop.permute.xlu0 %737
  %v742 = vsel %vm559, %v642, 0
  %v745 = vsel %vm559, %v643, 0
  %747 = vmatprep.subr.mxu0 0.0
  %748 = vmatpush1.msra.mxu0 %v736
  %749 = vmatprep.subr.mxu0 0.0
  %750 = vmatpush1.msra.mxu0 %v738
  %751 = vmatprep.subr.mxu0 0.0
  %752 = vmatpush1.msra.mxu0 0.0
  %753 = vmatprep.subr.mxu0 0.0
  %754 = vmatpush1.msra.mxu0 0.0
  %755 = vmatprep.subr.mxu0 0.0
  %756 = vmatpush1.msra.mxu0 0.0
  %757 = vmatprep.subr.mxu0 0.0
  %758 = vmatpush1.msra.mxu0 0.0
  %759 = vmatprep.subr.mxu0 0.0
  %760 = vmatpush1.msra.mxu0 0.0
  %761 = vmatprep.subr.mxu0 0.0
  %762 = vmatpush1.msra.mxu0 0.0
  %763 = vmatprep.subr.mxu0 0.0
  %764 = vmatpush1.msra.mxu0 0.0
  %765 = vmatprep.subr.mxu0 0.0
  %766 = vmatpush1.msra.mxu0 0.0
  %767 = vmatprep.subr.mxu0 0.0
  %768 = vmatpush1.msra.mxu0 0.0
  %769 = vmatprep.subr.mxu0 0.0
  %770 = vmatpush1.msra.mxu0 0.0
  %771 = vmatprep.subr.mxu0 0.0
  %772 = vmatpush1.msra.mxu0 0.0
  %773 = vmatprep.subr.mxu0 0.0
  %774 = vmatpush1.msra.mxu0 0.0
  %775 = vmatprep.subr.mxu0 0.0
  %776 = vmatpush1.msra.mxu0 0.0
  %777 = vmatprep.subr.mxu0 0.0
  %778 = vmatpush1.msra.mxu0 0.0
  %779 = vmatprep.subr.mxu0 0.0
  %780 = vmatpush1.msra.mxu0 0.0
  %781 = vmatprep.subr.mxu0 0.0
  %782 = vmatpush1.msra.mxu0 0.0
  %783 = vmatprep.subr.mxu0 0.0
  %784 = vmatpush1.msra.mxu0 0.0
  %785 = vmatprep.subr.mxu0 0.0
  %786 = vmatpush1.msra.mxu0 0.0
  %787 = vmatprep.subr.mxu0 0.0
  %788 = vmatpush1.msra.mxu0 0.0
  %789 = vmatprep.subr.mxu0 0.0
  %790 = vmatpush1.msra.mxu0 0.0
  %791 = vmatprep.subr.mxu0 0.0
  %792 = vmatpush1.msra.mxu0 0.0
  %793 = vmatprep.subr.mxu0 0.0
  %794 = vmatpush1.msra.mxu0 0.0
  %795 = vmatprep.subr.mxu0 0.0
  %796 = vmatpush1.msra.mxu0 0.0
  %797 = vmatprep.subr.mxu0 0.0
  %798 = vmatpush1.msra.mxu0 0.0
  %799 = vmatprep.subr.mxu0 0.0
  %800 = vmatpush1.msra.mxu0 0.0
  %801 = vmatprep.subr.mxu0 0.0
  %802 = vmatpush1.msra.mxu0 0.0
  %803 = vmatprep.subr.mxu0 0.0
  %804 = vmatpush1.msra.mxu0 0.0
  %805 = vmatprep.subr.mxu0 0.0
  %806 = vmatpush1.msra.mxu0 0.0
  %807 = vmatprep.subr.mxu0 0.0
  %808 = vmatpush1.msra.mxu0 0.0
  %809 = vmatprep.subr.mxu0 0.0
  %810 = vmatpush1.msra.mxu0 0.0
  %811 = vmatprep.mubr.f32.mxu0 0.0
  %812 = vmatmul.mubr.f32.gmra.mrb[0].mxu0 %v742
  %v813 = vpop.f32.mrb[0].mxu0
  %v814 = vadd.f32 0.0, %v813
  %v815 = vpop.f32.mrb[0].mxu0
  %816 = vmatprep.mubr.f32.mxu0 0.0
  %817 = vmatmul.mubr.f32.gmra.mrb[0].mxu0 %v745
  %v818 = vpop.f32.mrb[0].mxu0
  %v819 = vadd.f32 0.0, %v818
  %v820 = vpop.f32.mrb[0].mxu0
  %821 = vdwg.mxu0
  %822 = vrot.lane.b32.xlu0 %v187, 64
  %v823 = vpop.permute.xlu0 %822
  %824 = vrot.lane.b32.xlu0 %v189, 64
  %v825 = vpop.permute.xlu0 %824
  %v829 = vsel %vm559, %v644, 0
  %v832 = vsel %vm559, %v645, 0
  %834 = vmatprep.subr.mxu0 0.0
  %835 = vmatpush1.msra.mxu0 %v823
  %836 = vmatprep.subr.mxu0 0.0
  %837 = vmatpush1.msra.mxu0 %v825
  %838 = vmatprep.subr.mxu0 0.0
  %839 = vmatpush1.msra.mxu0 0.0
  %840 = vmatprep.subr.mxu0 0.0
  %841 = vmatpush1.msra.mxu0 0.0
  %842 = vmatprep.subr.mxu0 0.0
  %843 = vmatpush1.msra.mxu0 0.0
  %844 = vmatprep.subr.mxu0 0.0
  %845 = vmatpush1.msra.mxu0 0.0
  %846 = vmatprep.subr.mxu0 0.0
  %847 = vmatpush1.msra.mxu0 0.0
  %848 = vmatprep.subr.mxu0 0.0
  %849 = vmatpush1.msra.mxu0 0.0
  %850 = vmatprep.subr.mxu0 0.0
  %851 = vmatpush1.msra.mxu0 0.0
  %852 = vmatprep.subr.mxu0 0.0
  %853 = vmatpush1.msra.mxu0 0.0
  %854 = vmatprep.subr.mxu0 0.0
  %855 = vmatpush1.msra.mxu0 0.0
  %856 = vmatprep.subr.mxu0 0.0
  %857 = vmatpush1.msra.mxu0 0.0
  %858 = vmatprep.subr.mxu0 0.0
  %859 = vmatpush1.msra.mxu0 0.0
  %860 = vmatprep.subr.mxu0 0.0
  %861 = vmatpush1.msra.mxu0 0.0
  %862 = vmatprep.subr.mxu0 0.0
  %863 = vmatpush1.msra.mxu0 0.0
  %864 = vmatprep.subr.mxu0 0.0
  %865 = vmatpush1.msra.mxu0 0.0
  %866 = vmatprep.subr.mxu0 0.0
  %867 = vmatpush1.msra.mxu0 0.0
  %868 = vmatprep.subr.mxu0 0.0
  %869 = vmatpush1.msra.mxu0 0.0
  %870 = vmatprep.subr.mxu0 0.0
  %871 = vmatpush1.msra.mxu0 0.0
  %872 = vmatprep.subr.mxu0 0.0
  %873 = vmatpush1.msra.mxu0 0.0
  %874 = vmatprep.subr.mxu0 0.0
  %875 = vmatpush1.msra.mxu0 0.0
  %876 = vmatprep.subr.mxu0 0.0
  %877 = vmatpush1.msra.mxu0 0.0
  %878 = vmatprep.subr.mxu0 0.0
  %879 = vmatpush1.msra.mxu0 0.0
  %880 = vmatprep.subr.mxu0 0.0
  %881 = vmatpush1.msra.mxu0 0.0
  %882 = vmatprep.subr.mxu0 0.0
  %883 = vmatpush1.msra.mxu0 0.0
  %884 = vmatprep.subr.mxu0 0.0
  %885 = vmatpush1.msra.mxu0 0.0
  %886 = vmatprep.subr.mxu0 0.0
  %887 = vmatpush1.msra.mxu0 0.0
  %888 = vmatprep.subr.mxu0 0.0
  %889 = vmatpush1.msra.mxu0 0.0
  %890 = vmatprep.subr.mxu0 0.0
  %891 = vmatpush1.msra.mxu0 0.0
  %892 = vmatprep.subr.mxu0 0.0
  %893 = vmatpush1.msra.mxu0 0.0
  %894 = vmatprep.subr.mxu0 0.0
  %895 = vmatpush1.msra.mxu0 0.0
  %896 = vmatprep.subr.mxu0 0.0
  %897 = vmatpush1.msra.mxu0 0.0
  %898 = vmatprep.mubr.f32.mxu0 0.0
  %899 = vmatmul.mubr.f32.gmra.mrb[0].mxu0 %v829
  %v900 = vpop.f32.mrb[0].mxu0
  %v901 = vadd.f32 0.0, %v900
  %v902 = vpop.f32.mrb[0].mxu0
  %903 = vmatprep.mubr.f32.mxu0 0.0
  %904 = vmatmul.mubr.f32.gmra.mrb[0].mxu0 %v832
  %v905 = vpop.f32.mrb[0].mxu0
  %v906 = vadd.f32 0.0, %v905
  %v907 = vpop.f32.mrb[0].mxu0
  %908 = vdwg.mxu0
  %909 = vrot.lane.b32.xlu0 %v191, 64
  %v910 = vpop.permute.xlu0 %909
  %911 = vrot.lane.b32.xlu0 %v193, 64
  %v912 = vpop.permute.xlu0 %911
  %v916 = vsel %vm559, %v646, 0
  %v919 = vsel %vm559, %v647, 0
  %921 = vmatprep.subr.mxu0 0.0
  %922 = vmatpush1.msra.mxu0 %v910
  %923 = vmatprep.subr.mxu0 0.0
  %924 = vmatpush1.msra.mxu0 %v912
  %925 = vmatprep.subr.mxu0 0.0
  %926 = vmatpush1.msra.mxu0 0.0
  %927 = vmatprep.subr.mxu0 0.0
  %928 = vmatpush1.msra.mxu0 0.0
  %929 = vmatprep.subr.mxu0 0.0
  %930 = vmatpush1.msra.mxu0 0.0
  %931 = vmatprep.subr.mxu0 0.0
  %932 = vmatpush1.msra.mxu0 0.0
  %933 = vmatprep.subr.mxu0 0.0
  %934 = vmatpush1.msra.mxu0 0.0
  %935 = vmatprep.subr.mxu0 0.0
  %936 = vmatpush1.msra.mxu0 0.0
  %937 = vmatprep.subr.mxu0 0.0
  %938 = vmatpush1.msra.mxu0 0.0
  %939 = vmatprep.subr.mxu0 0.0
  %940 = vmatpush1.msra.mxu0 0.0
  %941 = vmatprep.subr.mxu0 0.0
  %942 = vmatpush1.msra.mxu0 0.0
  %943 = vmatprep.subr.mxu0 0.0
  %944 = vmatpush1.msra.mxu0 0.0
  %945 = vmatprep.subr.mxu0 0.0
  %946 = vmatpush1.msra.mxu0 0.0
  %947 = vmatprep.subr.mxu0 0.0
  %948 = vmatpush1.msra.mxu0 0.0
  %949 = vmatprep.subr.mxu0 0.0
  %950 = vmatpush1.msra.mxu0 0.0
  %951 = vmatprep.subr.mxu0 0.0
  %952 = vmatpush1.msra.mxu0 0.0
  %953 = vmatprep.subr.mxu0 0.0
  %954 = vmatpush1.msra.mxu0 0.0
  %955 = vmatprep.subr.mxu0 0.0
  %956 = vmatpush1.msra.mxu0 0.0
  %957 = vmatprep.subr.mxu0 0.0
  %958 = vmatpush1.msra.mxu0 0.0
  %959 = vmatprep.subr.mxu0 0.0
  %960 = vmatpush1.msra.mxu0 0.0
  %961 = vmatprep.subr.mxu0 0.0
  %962 = vmatpush1.msra.mxu0 0.0
  %963 = vmatprep.subr.mxu0 0.0
  %964 = vmatpush1.msra.mxu0 0.0
  %965 = vmatprep.subr.mxu0 0.0
  %966 = vmatpush1.msra.mxu0 0.0
  %967 = vmatprep.subr.mxu0 0.0
  %968 = vmatpush1.msra.mxu0 0.0
  %969 = vmatprep.subr.mxu0 0.0
  %970 = vmatpush1.msra.mxu0 0.0
  %971 = vmatprep.subr.mxu0 0.0
  %972 = vmatpush1.msra.mxu0 0.0
  %973 = vmatprep.subr.mxu0 0.0
  %974 = vmatpush1.msra.mxu0 0.0
  %975 = vmatprep.subr.mxu0 0.0
  %976 = vmatpush1.msra.mxu0 0.0
  %977 = vmatprep.subr.mxu0 0.0
  %978 = vmatpush1.msra.mxu0 0.0
  %979 = vmatprep.subr.mxu0 0.0
  %980 = vmatpush1.msra.mxu0 0.0
  %981 = vmatprep.subr.mxu0 0.0
  %982 = vmatpush1.msra.mxu0 0.0
  %983 = vmatprep.subr.mxu0 0.0
  %984 = vmatpush1.msra.mxu0 0.0
  %985 = vmatprep.mubr.f32.mxu0 0.0
  %986 = vmatmul.mubr.f32.gmra.mrb[0].mxu0 %v916
  %v987 = vpop.f32.mrb[0].mxu0
  %v988 = vadd.f32 0.0, %v987
  %v989 = vpop.f32.mrb[0].mxu0
  %990 = vmatprep.mubr.f32.mxu0 0.0
  %991 = vmatmul.mubr.f32.gmra.mrb[0].mxu0 %v919
  %v992 = vpop.f32.mrb[0].mxu0
  %v993 = vadd.f32 0.0, %v992
  %v994 = vpop.f32.mrb[0].mxu0
  %995 = vdwg.mxu0
  %998 = vrot.lane.b32.xlu0 %v814, 8
  %v999 = vpop.permute.xlu0 %998
  %1000 = vrot.lane.b32.xlu0 %v819, 8
  %v1001 = vpop.permute.xlu0 %1000
  %1006 = vrot.lane.b32.xlu0 %v901, 16
  %v1007 = vpop.permute.xlu0 %1006
  %1008 = vrot.lane.b32.xlu0 %v906, 16
  %v1009 = vpop.permute.xlu0 %1008
  %1014 = vrot.lane.b32.xlu0 %v988, 24
  %v1015 = vpop.permute.xlu0 %1014
  %1016 = vrot.lane.b32.xlu0 %v993, 24
  %v1017 = vpop.permute.xlu0 %1016
  %v1020 = vsel %vm198, %v727, %v999
  %v1021 = vsel %vm198, %v732, %v1001
  %v1022 = vsel %vm559, %v1020, %v1007
  %v1023 = vsel %vm559, %v1021, %v1009
  %vm1024 = vcmask 195584
  %v1025 = vsel %vm1024, %v1022, %v1015
  %v1026 = vsel %vm1024, %v1023, %v1017
  %v1027 = vld [vmem:[%s5] sm:$0xff]
  %v1028 = vld [vmem:[%s5 + $0x8] sm:$0xff]
  %v1029 = vld [vmem:[%s5 + $0x10] sm:$0xff]
  %v1030 = vld [vmem:[%s5 + $0x18] sm:$0xff]
  %v1031 = vlaneseq
  %v1032 = vshrl.u32 %v1031, 7
  %v1033 = vsub.s32 0, %v1032
  %v1034 = vrot.slane %v87, %v1033
  %v1036 = vsel %vm45, %v1025, 0
  %v1039 = vsel %vm45, %v1026, 0
  %1041 = vmatprep.subr.mxu0 0.0
  %1042 = vmatpush1.msra.mxu0 %v1027
  %1043 = vmatprep.subr.mxu0 0.0
  %1044 = vmatpush1.msra.mxu0 %v1028
  %1045 = vmatprep.subr.mxu0 0.0
  %1046 = vmatpush1.msra.mxu0 %v1029
  %1047 = vmatprep.subr.mxu0 0.0
  %1048 = vmatpush1.msra.mxu0 %v1030
  %1049 = vmatprep.subr.mxu0 0.0
  %1050 = vmatpush1.msra.mxu0 0.0
  %1051 = vmatprep.subr.mxu0 0.0
  %1052 = vmatpush1.msra.mxu0 0.0
  %1053 = vmatprep.subr.mxu0 0.0
  %1054 = vmatpush1.msra.mxu0 0.0
  %1055 = vmatprep.subr.mxu0 0.0
  %1056 = vmatpush1.msra.mxu0 0.0
  %1057 = vmatprep.subr.mxu0 0.0
  %1058 = vmatpush1.msra.mxu0 0.0
  %1059 = vmatprep.subr.mxu0 0.0
  %1060 = vmatpush1.msra.mxu0 0.0
  %1061 = vmatprep.subr.mxu0 0.0
  %1062 = vmatpush1.msra.mxu0 0.0
  %1063 = vmatprep.subr.mxu0 0.0
  %1064 = vmatpush1.msra.mxu0 0.0
  %1065 = vmatprep.subr.mxu0 0.0
  %1066 = vmatpush1.msra.mxu0 0.0
  %1067 = vmatprep.subr.mxu0 0.0
  %1068 = vmatpush1.msra.mxu0 0.0
  %1069 = vmatprep.subr.mxu0 0.0
  %1070 = vmatpush1.msra.mxu0 0.0
  %1071 = vmatprep.subr.mxu0 0.0
  %1072 = vmatpush1.msra.mxu0 0.0
  %1073 = vmatprep.subr.mxu0 0.0
  %1074 = vmatpush1.msra.mxu0 0.0
  %1075 = vmatprep.subr.mxu0 0.0
  %1076 = vmatpush1.msra.mxu0 0.0
  %1077 = vmatprep.subr.mxu0 0.0
  %1078 = vmatpush1.msra.mxu0 0.0
  %1079 = vmatprep.subr.mxu0 0.0
  %1080 = vmatpush1.msra.mxu0 0.0
  %1081 = vmatprep.subr.mxu0 0.0
  %1082 = vmatpush1.msra.mxu0 0.0
  %1083 = vmatprep.subr.mxu0 0.0
  %1084 = vmatpush1.msra.mxu0 0.0
  %1085 = vmatprep.subr.mxu0 0.0
  %1086 = vmatpush1.msra.mxu0 0.0
  %1087 = vmatprep.subr.mxu0 0.0
  %1088 = vmatpush1.msra.mxu0 0.0
  %1089 = vmatprep.subr.mxu0 0.0
  %1090 = vmatpush1.msra.mxu0 0.0
  %1091 = vmatprep.subr.mxu0 0.0
  %1092 = vmatpush1.msra.mxu0 0.0
  %1093 = vmatprep.subr.mxu0 0.0
  %1094 = vmatpush1.msra.mxu0 0.0
  %1095 = vmatprep.subr.mxu0 0.0
  %1096 = vmatpush1.msra.mxu0 0.0
  %1097 = vmatprep.subr.mxu0 0.0
  %1098 = vmatpush1.msra.mxu0 0.0
  %1099 = vmatprep.subr.mxu0 0.0
  %1100 = vmatpush1.msra.mxu0 0.0
  %1101 = vmatprep.subr.mxu0 0.0
  %1102 = vmatpush1.msra.mxu0 0.0
  %1103 = vmatprep.subr.mxu0 0.0
  %1104 = vmatpush1.msra.mxu0 0.0
  %1105 = vmatprep.mubr.f32.mxu0 0.0
  %1106 = vmatmul.mubr.f32.gmra.mrb[0].mxu0 %v1036
  %v1107 = vpop.f32.mrb[0].mxu0
  %v1108 = vadd.f32 %v1034, %v1107
  %v1109 = vpop.f32.mrb[0].mxu0
  %1110 = vmatprep.mubr.f32.mxu0 0.0
  %1111 = vmatmul.mubr.f32.gmra.mrb[0].mxu0 %v1039
  %v1112 = vpop.f32.mrb[0].mxu0
  %v1113 = vadd.f32 %v1034, %v1112
  %v1114 = vpop.f32.mrb[0].mxu0
  %1115 = vdwg.mxu0
  %v1116 = vadd.f32 %v83, %v1108
  %v1117 = vadd.f32 %v84, %v1113
  %v1118 = vsel %vm45, %v1116, 0.0
  %1119 = vadd.xlane.f32.xlu0 %v1118
  %v1120 = vpop.xlane.xlu0 %1119
  %v1121 = vsel %vm45, %v1117, 0.0
  %1122 = vadd.xlane.f32.xlu0 %v1121
  %v1123 = vpop.xlane.xlu0 %1122
  %v1124 = vmul.f32 %v1120, %v52
  %v1125 = vmul.f32 %v1123, %v52
  %v1126 = vsub.f32 %v1116, %v1124
  %v1127 = vsub.f32 %v1117, %v1125
  %v1128 = vmul.f32 %v1126, %v1126
  %v1129 = vmul.f32 %v1127, %v1127
  %v1130 = vsel %vm45, %v1128, 0.0
  %1131 = vadd.xlane.f32.xlu0 %v1130
  %v1132 = vpop.xlane.xlu0 %1131
  %v1133 = vsel %vm45, %v1129, 0.0
  %1134 = vadd.xlane.f32.xlu0 %v1133
  %v1135 = vpop.xlane.xlu0 %1134
  %v1136 = vmul.f32 %v1132, %v52
  %v1137 = vmul.f32 %v1135, %v52
  %v1138 = vadd.f32 %v1136, 1e-12
  %v1139 = vadd.f32 %v1137, 1e-12
  %v1140 = vrsqrt.pop %v1138
  %v1141 = vrsqrt.pop %v1139
  %v1142 = vmul.f32 %v1126, %v1140
  %v1143 = vmul.f32 %v1127, %v1141
  %v1144 = vlaneseq
  %v1145 = vshrl.u32 %v1144, 7
  %v1146 = vsub.s32 1, %v1145
  %v1147 = vrot.slane %v87, %v1146
  %v1148 = vmul.f32 %v1142, %v1147
  %v1149 = vmul.f32 %v1143, %v1147
  %v1150 = vlaneseq
  %v1151 = vshrl.u32 %v1150, 7
  %v1152 = vsub.s32 2, %v1151
  %v1153 = vrot.slane %v87, %v1152
  %v1154 = vadd.f32 %v1148, %v1153
  %v1155 = vadd.f32 %v1149, %v1153
  %v1156 = vld [vmem:[%s6] sm:$0xff]
  %v1157 = vld [vmem:[%s6 + $0x8] sm:$0xff]
  %v1158 = vld [vmem:[%s6 + $0x10] sm:$0xff]
  %v1159 = vld [vmem:[%s6 + $0x18] sm:$0xff]
  %v1160 = vld [vmem:[%s7] sm:$0x1]
  %v1162 = vlaneseq
  %v1163 = vshrl.u32 %v1162, 7
  %v1164 = vsub.s32 0, %v1163
  %v1165 = vrot.slane %v1160, %v1164
  %v1168 = vsel %vm45, %v1154, 0
  %v1171 = vsel %vm45, %v1155, 0
  %1173 = vmatprep.subr.mxu0 0.0
  %1174 = vmatpush1.msra.mxu0 %v1156
  %1175 = vmatprep.subr.mxu0 0.0
  %1176 = vmatpush1.msra.mxu0 %v1157
  %1177 = vmatprep.subr.mxu0 0.0
  %1178 = vmatpush1.msra.mxu0 %v1158
  %1179 = vmatprep.subr.mxu0 0.0
  %1180 = vmatpush1.msra.mxu0 %v1159
  %1181 = vmatprep.subr.mxu0 0.0
  %1182 = vmatpush1.msra.mxu0 0.0
  %1183 = vmatprep.subr.mxu0 0.0
  %1184 = vmatpush1.msra.mxu0 0.0
  %1185 = vmatprep.subr.mxu0 0.0
  %1186 = vmatpush1.msra.mxu0 0.0
  %1187 = vmatprep.subr.mxu0 0.0
  %1188 = vmatpush1.msra.mxu0 0.0
  %1189 = vmatprep.subr.mxu0 0.0
  %1190 = vmatpush1.msra.mxu0 0.0
  %1191 = vmatprep.subr.mxu0 0.0
  %1192 = vmatpush1.msra.mxu0 0.0
  %1193 = vmatprep.subr.mxu0 0.0
  %1194 = vmatpush1.msra.mxu0 0.0
  %1195 = vmatprep.subr.mxu0 0.0
  %1196 = vmatpush1.msra.mxu0 0.0
  %1197 = vmatprep.subr.mxu0 0.0
  %1198 = vmatpush1.msra.mxu0 0.0
  %1199 = vmatprep.subr.mxu0 0.0
  %1200 = vmatpush1.msra.mxu0 0.0
  %1201 = vmatprep.subr.mxu0 0.0
  %1202 = vmatpush1.msra.mxu0 0.0
  %1203 = vmatprep.subr.mxu0 0.0
  %1204 = vmatpush1.msra.mxu0 0.0
  %1205 = vmatprep.subr.mxu0 0.0
  %1206 = vmatpush1.msra.mxu0 0.0
  %1207 = vmatprep.subr.mxu0 0.0
  %1208 = vmatpush1.msra.mxu0 0.0
  %1209 = vmatprep.subr.mxu0 0.0
  %1210 = vmatpush1.msra.mxu0 0.0
  %1211 = vmatprep.subr.mxu0 0.0
  %1212 = vmatpush1.msra.mxu0 0.0
  %1213 = vmatprep.subr.mxu0 0.0
  %1214 = vmatpush1.msra.mxu0 0.0
  %1215 = vmatprep.subr.mxu0 0.0
  %1216 = vmatpush1.msra.mxu0 0.0
  %1217 = vmatprep.subr.mxu0 0.0
  %1218 = vmatpush1.msra.mxu0 0.0
  %1219 = vmatprep.subr.mxu0 0.0
  %1220 = vmatpush1.msra.mxu0 0.0
  %1221 = vmatprep.subr.mxu0 0.0
  %1222 = vmatpush1.msra.mxu0 0.0
  %1223 = vmatprep.subr.mxu0 0.0
  %1224 = vmatpush1.msra.mxu0 0.0
  %1225 = vmatprep.subr.mxu0 0.0
  %1226 = vmatpush1.msra.mxu0 0.0
  %1227 = vmatprep.subr.mxu0 0.0
  %1228 = vmatpush1.msra.mxu0 0.0
  %1229 = vmatprep.subr.mxu0 0.0
  %1230 = vmatpush1.msra.mxu0 0.0
  %1231 = vmatprep.subr.mxu0 0.0
  %1232 = vmatpush1.msra.mxu0 0.0
  %1233 = vmatprep.subr.mxu0 0.0
  %1234 = vmatpush1.msra.mxu0 0.0
  %1235 = vmatprep.subr.mxu0 0.0
  %1236 = vmatpush1.msra.mxu0 0.0
  %1237 = vmatprep.mubr.f32.mxu0 0.0
  %1238 = vmatmul.mubr.f32.gmra.mrb[0].mxu0 %v1168
  %v1239 = vpop.f32.mrb[0].mxu0
  %v1240 = vadd.f32 %v1165, %v1239
  %v1241 = vpop.f32.mrb[0].mxu0
  %1242 = vmatprep.mubr.f32.mxu0 0.0
  %1243 = vmatmul.mubr.f32.gmra.mrb[0].mxu0 %v1171
  %v1244 = vpop.f32.mrb[0].mxu0
  %v1245 = vadd.f32 %v1165, %v1244
  %v1246 = vpop.f32.mrb[0].mxu0
  %1247 = vdwg.mxu0
  %v1248 = vmul.f32 %v1240, %v1240
  %v1249 = vmul.f32 %v1245, %v1245
  %v1250 = vmul.f32 %v1240, %v1248
  %v1251 = vmul.f32 %v1245, %v1249
  %v1252 = vmul.f32 %v1250, 0.044715
  %v1253 = vmul.f32 %v1251, 0.044715
  %v1254 = vadd.f32 %v1240, %v1252
  %v1255 = vadd.f32 %v1245, %v1253
  %v1256 = vmul.f32 %v1254, 0.7978846
  %v1257 = vmul.f32 %v1255, 0.7978846
  %v1258 = vtanh.pop %v1256
  %v1259 = vtanh.pop %v1257
  %v1260 = vadd.f32 %v1258, 1.0
  %v1261 = vadd.f32 %v1259, 1.0
  %v1262 = vmul.f32 %v1260, 0.5
  %v1263 = vmul.f32 %v1261, 0.5
  %v1264 = vmul.f32 %v1240, %v1262
  %v1265 = vmul.f32 %v1245, %v1263
  %v1266 = vld [vmem:[%s8] sm:$0xff]
  %v1267 = vld [vmem:[%s8 + $0x8] sm:$0xff]
  %v1268 = vld [vmem:[%s8 + $0x10] sm:$0xff]
  %v1269 = vld [vmem:[%s8 + $0x18] sm:$0xff]
  %v1270 = vld [vmem:[%s8 + $0x20] sm:$0xff]
  %v1271 = vld [vmem:[%s8 + $0x28] sm:$0xff]
  %v1272 = vld [vmem:[%s8 + $0x30] sm:$0xff]
  %v1273 = vld [vmem:[%s8 + $0x38] sm:$0xff]
  %v1274 = vlaneseq
  %v1275 = vshrl.u32 %v1274, 7
  %v1276 = vsub.s32 3, %v1275
  %v1277 = vrot.slane %v87, %v1276
  %vm1278 = vcmask 523264
  %v1280 = vsel %vm1278, %v1264, 0
  %v1283 = vsel %vm1278, %v1265, 0
  %1285 = vmatprep.subr.mxu0 0.0
  %1286 = vmatpush1.msra.mxu0 %v1266
  %1287 = vmatprep.subr.mxu0 0.0
  %1288 = vmatpush1.msra.mxu0 %v1267
  %1289 = vmatprep.subr.mxu0 0.0
  %1290 = vmatpush1.msra.mxu0 %v1268
  %1291 = vmatprep.subr.mxu0 0.0
  %1292 = vmatpush1.msra.mxu0 %v1269
  %1293 = vmatprep.subr.mxu0 0.0
  %1294 = vmatpush1.msra.mxu0 %v1270
  %1295 = vmatprep.subr.mxu0 0.0
  %1296 = vmatpush1.msra.mxu0 %v1271
  %1297 = vmatprep.subr.mxu0 0.0
  %1298 = vmatpush1.msra.mxu0 %v1272
  %1299 = vmatprep.subr.mxu0 0.0
  %1300 = vmatpush1.msra.mxu0 %v1273
  %1301 = vmatprep.subr.mxu0 0.0
  %1302 = vmatpush1.msra.mxu0 0.0
  %1303 = vmatprep.subr.mxu0 0.0
  %1304 = vmatpush1.msra.mxu0 0.0
  %1305 = vmatprep.subr.mxu0 0.0
  %1306 = vmatpush1.msra.mxu0 0.0
  %1307 = vmatprep.subr.mxu0 0.0
  %1308 = vmatpush1.msra.mxu0 0.0
  %1309 = vmatprep.subr.mxu0 0.0
  %1310 = vmatpush1.msra.mxu0 0.0
  %1311 = vmatprep.subr.mxu0 0.0
  %1312 = vmatpush1.msra.mxu0 0.0
  %1313 = vmatprep.subr.mxu0 0.0
  %1314 = vmatpush1.msra.mxu0 0.0
  %1315 = vmatprep.subr.mxu0 0.0
  %1316 = vmatpush1.msra.mxu0 0.0
  %1317 = vmatprep.subr.mxu0 0.0
  %1318 = vmatpush1.msra.mxu0 0.0
  %1319 = vmatprep.subr.mxu0 0.0
  %1320 = vmatpush1.msra.mxu0 0.0
  %1321 = vmatprep.subr.mxu0 0.0
  %1322 = vmatpush1.msra.mxu0 0.0
  %1323 = vmatprep.subr.mxu0 0.0
  %1324 = vmatpush1.msra.mxu0 0.0
  %1325 = vmatprep.subr.mxu0 0.0
  %1326 = vmatpush1.msra.mxu0 0.0
  %1327 = vmatprep.subr.mxu0 0.0
  %1328 = vmatpush1.msra.mxu0 0.0
  %1329 = vmatprep.subr.mxu0 0.0
  %1330 = vmatpush1.msra.mxu0 0.0
  %1331 = vmatprep.subr.mxu0 0.0
  %1332 = vmatpush1.msra.mxu0 0.0
  %1333 = vmatprep.subr.mxu0 0.0
  %1334 = vmatpush1.msra.mxu0 0.0
  %1335 = vmatprep.subr.mxu0 0.0
  %1336 = vmatpush1.msra.mxu0 0.0
  %1337 = vmatprep.subr.mxu0 0.0
  %1338 = vmatpush1.msra.mxu0 0.0
  %1339 = vmatprep.subr.mxu0 0.0
  %1340 = vmatpush1.msra.mxu0 0.0
  %1341 = vmatprep.subr.mxu0 0.0
  %1342 = vmatpush1.msra.mxu0 0.0
  %1343 = vmatprep.subr.mxu0 0.0
  %1344 = vmatpush1.msra.mxu0 0.0
  %1345 = vmatprep.subr.mxu0 0.0
  %1346 = vmatpush1.msra.mxu0 0.0
  %1347 = vmatprep.subr.mxu0 0.0
  %1348 = vmatpush1.msra.mxu0 0.0
  %1349 = vmatprep.mubr.f32.mxu0 0.0
  %1350 = vmatmul.mubr.f32.gmra.mrb[0].mxu0 %v1280
  %v1351 = vpop.f32.mrb[0].mxu0
  %v1352 = vadd.f32 %v1277, %v1351
  %v1353 = vpop.f32.mrb[0].mxu0
  %1354 = vmatprep.mubr.f32.mxu0 0.0
  %1355 = vmatmul.mubr.f32.gmra.mrb[0].mxu0 %v1283
  %v1356 = vpop.f32.mrb[0].mxu0
  %v1357 = vadd.f32 %v1277, %v1356
  %v1358 = vpop.f32.mrb[0].mxu0
  %1359 = vdwg.mxu0
  %v1360 = vadd.f32 %v1154, %v1352
  %v1361 = vadd.f32 %v1155, %v1357
  %v1362 = vsel %vm45, %v1360, 0.0
  %1363 = vadd.xlane.f32.xlu0 %v1362
  %v1364 = vpop.xlane.xlu0 %1363
  %v1365 = vsel %vm45, %v1361, 0.0
  %1366 = vadd.xlane.f32.xlu0 %v1365
  %v1367 = vpop.xlane.xlu0 %1366
  %v1368 = vmul.f32 %v1364, %v52
  %v1369 = vmul.f32 %v1367, %v52
  %v1370 = vsub.f32 %v1360, %v1368
  %v1371 = vsub.f32 %v1361, %v1369
  %v1372 = vmul.f32 %v1370, %v1370
  %v1373 = vmul.f32 %v1371, %v1371
  %v1374 = vsel %vm45, %v1372, 0.0
  %1375 = vadd.xlane.f32.xlu0 %v1374
  %v1376 = vpop.xlane.xlu0 %1375
  %v1377 = vsel %vm45, %v1373, 0.0
  %1378 = vadd.xlane.f32.xlu0 %v1377
  %v1379 = vpop.xlane.xlu0 %1378
  %v1380 = vmul.f32 %v1376, %v52
  %v1381 = vmul.f32 %v1379, %v52
  %v1382 = vadd.f32 %v1380, 1e-12
  %v1383 = vadd.f32 %v1381, 1e-12
  %v1384 = vrsqrt.pop %v1382
  %v1385 = vrsqrt.pop %v1383
  %v1386 = vmul.f32 %v1370, %v1384
  %v1387 = vmul.f32 %v1371, %v1385
  %v1388 = vlaneseq
  %v1389 = vshrl.u32 %v1388, 7
  %v1390 = vsub.s32 4, %v1389
  %v1391 = vrot.slane %v87, %v1390
  %v1392 = vmul.f32 %v1386, %v1391
  %v1393 = vmul.f32 %v1387, %v1391
  %v1394 = vlaneseq
  %v1395 = vshrl.u32 %v1394, 7
  %v1396 = vsub.s32 5, %v1395
  %v1397 = vrot.slane %v87, %v1396
  %v1398 = vadd.f32 %v1392, %v1397
  %v1399 = vadd.f32 %v1393, %v1397
  %s1400 = scalar_lea.vmem %s9, 8
  %v1401 = vld [vmem:[%s1400] sm:$0x3f]
  %s1402 = scalar_lea.vmem %s3, 32
  %v1403 = vld [vmem:[%s1402] sm:$0xff]
  %v1404 = vld [vmem:[%s1402 + $0x8] sm:$0xff]
  %v1405 = vld [vmem:[%s1402 + $0x10] sm:$0xff]
  %v1406 = vld [vmem:[%s1402 + $0x18] sm:$0xff]
  %s1407 = scalar_lea.vmem %s4, 1
  %v1408 = vld [vmem:[%s1407] sm:$0x1]
  %v1410 = vlaneseq
  %v1411 = vshrl.u32 %v1410, 7
  %v1412 = vsub.s32 0, %v1411
  %v1413 = vrot.slane %v1408, %v1412
  %v1416 = vsel %vm45, %v1398, 0
  %v1419 = vsel %vm45, %v1399, 0
  %1421 = vmatprep.subr.mxu0 0.0
  %1422 = vmatpush1.msra.mxu0 %v1403
  %1423 = vmatprep.subr.mxu0 0.0
  %1424 = vmatpush1.msra.mxu0 %v1404
  %1425 = vmatprep.subr.mxu0 0.0
  %1426 = vmatpush1.msra.mxu0 %v1405
  %1427 = vmatprep.subr.mxu0 0.0
  %1428 = vmatpush1.msra.mxu0 %v1406
  %1429 = vmatprep.subr.mxu0 0.0
  %1430 = vmatpush1.msra.mxu0 0.0
  %1431 = vmatprep.subr.mxu0 0.0
  %1432 = vmatpush1.msra.mxu0 0.0
  %1433 = vmatprep.subr.mxu0 0.0
  %1434 = vmatpush1.msra.mxu0 0.0
  %1435 = vmatprep.subr.mxu0 0.0
  %1436 = vmatpush1.msra.mxu0 0.0
  %1437 = vmatprep.subr.mxu0 0.0
  %1438 = vmatpush1.msra.mxu0 0.0
  %1439 = vmatprep.subr.mxu0 0.0
  %1440 = vmatpush1.msra.mxu0 0.0
  %1441 = vmatprep.subr.mxu0 0.0
  %1442 = vmatpush1.msra.mxu0 0.0
  %1443 = vmatprep.subr.mxu0 0.0
  %1444 = vmatpush1.msra.mxu0 0.0
  %1445 = vmatprep.subr.mxu0 0.0
  %1446 = vmatpush1.msra.mxu0 0.0
  %1447 = vmatprep.subr.mxu0 0.0
  %1448 = vmatpush1.msra.mxu0 0.0
  %1449 = vmatprep.subr.mxu0 0.0
  %1450 = vmatpush1.msra.mxu0 0.0
  %1451 = vmatprep.subr.mxu0 0.0
  %1452 = vmatpush1.msra.mxu0 0.0
  %1453 = vmatprep.subr.mxu0 0.0
  %1454 = vmatpush1.msra.mxu0 0.0
  %1455 = vmatprep.subr.mxu0 0.0
  %1456 = vmatpush1.msra.mxu0 0.0
  %1457 = vmatprep.subr.mxu0 0.0
  %1458 = vmatpush1.msra.mxu0 0.0
  %1459 = vmatprep.subr.mxu0 0.0
  %1460 = vmatpush1.msra.mxu0 0.0
  %1461 = vmatprep.subr.mxu0 0.0
  %1462 = vmatpush1.msra.mxu0 0.0
  %1463 = vmatprep.subr.mxu0 0.0
  %1464 = vmatpush1.msra.mxu0 0.0
  %1465 = vmatprep.subr.mxu0 0.0
  %1466 = vmatpush1.msra.mxu0 0.0
  %1467 = vmatprep.subr.mxu0 0.0
  %1468 = vmatpush1.msra.mxu0 0.0
  %1469 = vmatprep.subr.mxu0 0.0
  %1470 = vmatpush1.msra.mxu0 0.0
  %1471 = vmatprep.subr.mxu0 0.0
  %1472 = vmatpush1.msra.mxu0 0.0
  %1473 = vmatprep.subr.mxu0 0.0
  %1474 = vmatpush1.msra.mxu0 0.0
  %1475 = vmatprep.subr.mxu0 0.0
  %1476 = vmatpush1.msra.mxu0 0.0
  %1477 = vmatprep.subr.mxu0 0.0
  %1478 = vmatpush1.msra.mxu0 0.0
  %1479 = vmatprep.subr.mxu0 0.0
  %1480 = vmatpush1.msra.mxu0 0.0
  %1481 = vmatprep.subr.mxu0 0.0
  %1482 = vmatpush1.msra.mxu0 0.0
  %1483 = vmatprep.subr.mxu0 0.0
  %1484 = vmatpush1.msra.mxu0 0.0
  %1485 = vmatprep.mubr.f32.mxu0 0.0
  %1486 = vmatmul.mubr.f32.gmra.mrb[0].mxu0 %v1416
  %v1487 = vpop.f32.mrb[0].mxu0
  %v1488 = vadd.f32 %v1413, %v1487
  %v1489 = vpop.f32.mrb[0].mxu0
  %1490 = vmatprep.mubr.f32.mxu0 0.0
  %1491 = vmatmul.mubr.f32.gmra.mrb[0].mxu0 %v1419
  %v1492 = vpop.f32.mrb[0].mxu0
  %v1493 = vadd.f32 %v1413, %v1492
  %v1494 = vpop.f32.mrb[0].mxu0
  %1495 = vdwg.mxu0
  %1498 = vrot.lane.b32.xlu0 %v1488, 120
  %v1499 = vpop.permute.xlu0 %1498
  %1500 = vrot.lane.b32.xlu0 %v1493, 120
  %v1501 = vpop.permute.xlu0 %1500
  %1502 = vrot.lane.b32.xlu0 %v1488, 112
  %v1503 = vpop.permute.xlu0 %1502
  %1504 = vrot.lane.b32.xlu0 %v1493, 112
  %v1505 = vpop.permute.xlu0 %1504
  %1506 = vrot.lane.b32.xlu0 %v1488, 104
  %v1507 = vpop.permute.xlu0 %1506
  %1508 = vrot.lane.b32.xlu0 %v1493, 104
  %v1509 = vpop.permute.xlu0 %1508
  %1510 = vrot.lane.b32.xlu0 %v1488, 96
  %v1511 = vpop.permute.xlu0 %1510
  %1512 = vrot.lane.b32.xlu0 %v1493, 96
  %v1513 = vpop.permute.xlu0 %1512
  %v1514 = vsel %vm198, %v1488, 0
  %v1516 = vsel %vm198, %v1493, 0
  %v1518 = vsel %vm198, %v1511, 0
  %v1520 = vsel %vm198, %v1513, 0
  %1522 = vmatprep.subr.mxu0 0.0
  %1523 = vmatpush1.xpose.msra.mxu0 %v1518
  %1524 = vmatprep.subr.mxu0 0.0
  %1525 = vmatpush1.xpose.msra.mxu0 %v1520
  %1526 = vmatprep.subr.mxu0 0.0
  %1527 = vmatpush1.xpose.msra.mxu0 0.0
  %1528 = vmatprep.subr.mxu0 0.0
  %1529 = vmatpush1.xpose.msra.mxu0 0.0
  %1530 = vmatprep.subr.mxu0 0.0
  %1531 = vmatpush1.xpose.msra.mxu0 0.0
  %1532 = vmatprep.subr.mxu0 0.0
  %1533 = vmatpush1.xpose.msra.mxu0 0.0
  %1534 = vmatprep.subr.mxu0 0.0
  %1535 = vmatpush1.xpose.msra.mxu0 0.0
  %1536 = vmatprep.subr.mxu0 0.0
  %1537 = vmatpush1.xpose.msra.mxu0 0.0
  %1538 = vmatprep.subr.mxu0 0.0
  %1539 = vmatpush1.xpose.msra.mxu0 0.0
  %1540 = vmatprep.subr.mxu0 0.0
  %1541 = vmatpush1.xpose.msra.mxu0 0.0
  %1542 = vmatprep.subr.mxu0 0.0
  %1543 = vmatpush1.xpose.msra.mxu0 0.0
  %1544 = vmatprep.subr.mxu0 0.0
  %1545 = vmatpush1.xpose.msra.mxu0 0.0
  %1546 = vmatprep.subr.mxu0 0.0
  %1547 = vmatpush1.xpose.msra.mxu0 0.0
  %1548 = vmatprep.subr.mxu0 0.0
  %1549 = vmatpush1.xpose.msra.mxu0 0.0
  %1550 = vmatprep.subr.mxu0 0.0
  %1551 = vmatpush1.xpose.msra.mxu0 0.0
  %1552 = vmatprep.subr.mxu0 0.0
  %1553 = vmatpush1.xpose.msra.mxu0 0.0
  %1554 = vmatprep.subr.mxu0 0.0
  %1555 = vmatpush1.xpose.msra.mxu0 0.0
  %1556 = vmatprep.subr.mxu0 0.0
  %1557 = vmatpush1.xpose.msra.mxu0 0.0
  %1558 = vmatprep.subr.mxu0 0.0
  %1559 = vmatpush1.xpose.msra.mxu0 0.0
  %1560 = vmatprep.subr.mxu0 0.0
  %1561 = vmatpush1.xpose.msra.mxu0 0.0
  %1562 = vmatprep.subr.mxu0 0.0
  %1563 = vmatpush1.xpose.msra.mxu0 0.0
  %1564 = vmatprep.subr.mxu0 0.0
  %1565 = vmatpush1.xpose.msra.mxu0 0.0
  %1566 = vmatprep.subr.mxu0 0.0
  %1567 = vmatpush1.xpose.msra.mxu0 0.0
  %1568 = vmatprep.subr.mxu0 0.0
  %1569 = vmatpush1.xpose.msra.mxu0 0.0
  %1570 = vmatprep.subr.mxu0 0.0
  %1571 = vmatpush1.xpose.msra.mxu0 0.0
  %1572 = vmatprep.subr.mxu0 0.0
  %1573 = vmatpush1.xpose.msra.mxu0 0.0
  %1574 = vmatprep.subr.mxu0 0.0
  %1575 = vmatpush1.xpose.msra.mxu0 0.0
  %1576 = vmatprep.subr.mxu0 0.0
  %1577 = vmatpush1.xpose.msra.mxu0 0.0
  %1578 = vmatprep.subr.mxu0 0.0
  %1579 = vmatpush1.xpose.msra.mxu0 0.0
  %1580 = vmatprep.subr.mxu0 0.0
  %1581 = vmatpush1.xpose.msra.mxu0 0.0
  %1582 = vmatprep.subr.mxu0 0.0
  %1583 = vmatpush1.xpose.msra.mxu0 0.0
  %1584 = vmatprep.subr.mxu0 0.0
  %1585 = vmatpush1.xpose.msra.mxu0 0.0
  %1586 = vmatprep.mubr.f32.mxu0 0.0
  %1587 = vmatmul.mubr.f32.gmra.mrb[0].mxu0 %v1514
  %v1588 = vpop.f32.mrb[0].mxu0
  %v1589 = vadd.f32 0.0, %v1588
  %v1590 = vpop.f32.mrb[0].mxu0
  %1591 = vmatprep.mubr.f32.mxu0 0.0
  %1592 = vmatmul.mubr.f32.gmra.mrb[0].mxu0 %v1516
  %v1593 = vpop.f32.mrb[0].mxu0
  %v1594 = vadd.f32 0.0, %v1593
  %v1595 = vpop.f32.mrb[0].mxu0
  %1596 = vdwg.mxu0
  %1597 = vrot.lane.b32.xlu0 %v1499, 96
  %v1598 = vpop.permute.xlu0 %1597
  %1599 = vrot.lane.b32.xlu0 %v1501, 96
  %v1600 = vpop.permute.xlu0 %1599
  %v1601 = vsel %vm198, %v1499, 0
  %v1603 = vsel %vm198, %v1501, 0
  %v1605 = vsel %vm198, %v1598, 0
  %v1607 = vsel %vm198, %v1600, 0
  %1609 = vmatprep.subr.mxu0 0.0
  %1610 = vmatpush1.xpose.msra.mxu0 %v1605
  %1611 = vmatprep.subr.mxu0 0.0
  %1612 = vmatpush1.xpose.msra.mxu0 %v1607
  %1613 = vmatprep.subr.mxu0 0.0
  %1614 = vmatpush1.xpose.msra.mxu0 0.0
  %1615 = vmatprep.subr.mxu0 0.0
  %1616 = vmatpush1.xpose.msra.mxu0 0.0
  %1617 = vmatprep.subr.mxu0 0.0
  %1618 = vmatpush1.xpose.msra.mxu0 0.0
  %1619 = vmatprep.subr.mxu0 0.0
  %1620 = vmatpush1.xpose.msra.mxu0 0.0
  %1621 = vmatprep.subr.mxu0 0.0
  %1622 = vmatpush1.xpose.msra.mxu0 0.0
  %1623 = vmatprep.subr.mxu0 0.0
  %1624 = vmatpush1.xpose.msra.mxu0 0.0
  %1625 = vmatprep.subr.mxu0 0.0
  %1626 = vmatpush1.xpose.msra.mxu0 0.0
  %1627 = vmatprep.subr.mxu0 0.0
  %1628 = vmatpush1.xpose.msra.mxu0 0.0
  %1629 = vmatprep.subr.mxu0 0.0
  %1630 = vmatpush1.xpose.msra.mxu0 0.0
  %1631 = vmatprep.subr.mxu0 0.0
  %1632 = vmatpush1.xpose.msra.mxu0 0.0
  %1633 = vmatprep.subr.mxu0 0.0
  %1634 = vmatpush1.xpose.msra.mxu0 0.0
  %1635 = vmatprep.subr.mxu0 0.0
  %1636 = vmatpush1.xpose.msra.mxu0 0.0
  %1637 = vmatprep.subr.mxu0 0.0
  %1638 = vmatpush1.xpose.msra.mxu0 0.0
  %1639 = vmatprep.subr.mxu0 0.0
  %1640 = vmatpush1.xpose.msra.mxu0 0.0
  %1641 = vmatprep.subr.mxu0 0.0
  %1642 = vmatpush1.xpose.msra.mxu0 0.0
  %1643 = vmatprep.subr.mxu0 0.0
  %1644 = vmatpush1.xpose.msra.mxu0 0.0
  %1645 = vmatprep.subr.mxu0 0.0
  %1646 = vmatpush1.xpose.msra.mxu0 0.0
  %1647 = vmatprep.subr.mxu0 0.0
  %1648 = vmatpush1.xpose.msra.mxu0 0.0
  %1649 = vmatprep.subr.mxu0 0.0
  %1650 = vmatpush1.xpose.msra.mxu0 0.0
  %1651 = vmatprep.subr.mxu0 0.0
  %1652 = vmatpush1.xpose.msra.mxu0 0.0
  %1653 = vmatprep.subr.mxu0 0.0
  %1654 = vmatpush1.xpose.msra.mxu0 0.0
  %1655 = vmatprep.subr.mxu0 0.0
  %1656 = vmatpush1.xpose.msra.mxu0 0.0
  %1657 = vmatprep.subr.mxu0 0.0
  %1658 = vmatpush1.xpose.msra.mxu0 0.0
  %1659 = vmatprep.subr.mxu0 0.0
  %1660 = vmatpush1.xpose.msra.mxu0 0.0
  %1661 = vmatprep.subr.mxu0 0.0
  %1662 = vmatpush1.xpose.msra.mxu0 0.0
  %1663 = vmatprep.subr.mxu0 0.0
  %1664 = vmatpush1.xpose.msra.mxu0 0.0
  %1665 = vmatprep.subr.mxu0 0.0
  %1666 = vmatpush1.xpose.msra.mxu0 0.0
  %1667 = vmatprep.subr.mxu0 0.0
  %1668 = vmatpush1.xpose.msra.mxu0 0.0
  %1669 = vmatprep.subr.mxu0 0.0
  %1670 = vmatpush1.xpose.msra.mxu0 0.0
  %1671 = vmatprep.subr.mxu0 0.0
  %1672 = vmatpush1.xpose.msra.mxu0 0.0
  %1673 = vmatprep.mubr.f32.mxu0 0.0
  %1674 = vmatmul.mubr.f32.gmra.mrb[0].mxu0 %v1601
  %v1675 = vpop.f32.mrb[0].mxu0
  %v1676 = vadd.f32 0.0, %v1675
  %v1677 = vpop.f32.mrb[0].mxu0
  %1678 = vmatprep.mubr.f32.mxu0 0.0
  %1679 = vmatmul.mubr.f32.gmra.mrb[0].mxu0 %v1603
  %v1680 = vpop.f32.mrb[0].mxu0
  %v1681 = vadd.f32 0.0, %v1680
  %v1682 = vpop.f32.mrb[0].mxu0
  %1683 = vdwg.mxu0
  %1684 = vrot.lane.b32.xlu0 %v1503, 96
  %v1685 = vpop.permute.xlu0 %1684
  %1686 = vrot.lane.b32.xlu0 %v1505, 96
  %v1687 = vpop.permute.xlu0 %1686
  %v1688 = vsel %vm198, %v1503, 0
  %v1690 = vsel %vm198, %v1505, 0
  %v1692 = vsel %vm198, %v1685, 0
  %v1694 = vsel %vm198, %v1687, 0
  %1696 = vmatprep.subr.mxu0 0.0
  %1697 = vmatpush1.xpose.msra.mxu0 %v1692
  %1698 = vmatprep.subr.mxu0 0.0
  %1699 = vmatpush1.xpose.msra.mxu0 %v1694
  %1700 = vmatprep.subr.mxu0 0.0
  %1701 = vmatpush1.xpose.msra.mxu0 0.0
  %1702 = vmatprep.subr.mxu0 0.0
  %1703 = vmatpush1.xpose.msra.mxu0 0.0
  %1704 = vmatprep.subr.mxu0 0.0
  %1705 = vmatpush1.xpose.msra.mxu0 0.0
  %1706 = vmatprep.subr.mxu0 0.0
  %1707 = vmatpush1.xpose.msra.mxu0 0.0
  %1708 = vmatprep.subr.mxu0 0.0
  %1709 = vmatpush1.xpose.msra.mxu0 0.0
  %1710 = vmatprep.subr.mxu0 0.0
  %1711 = vmatpush1.xpose.msra.mxu0 0.0
  %1712 = vmatprep.subr.mxu0 0.0
  %1713 = vmatpush1.xpose.msra.mxu0 0.0
  %1714 = vmatprep.subr.mxu0 0.0
  %1715 = vmatpush1.xpose.msra.mxu0 0.0
  %1716 = vmatprep.subr.mxu0 0.0
  %1717 = vmatpush1.xpose.msra.mxu0 0.0
  %1718 = vmatprep.subr.mxu0 0.0
  %1719 = vmatpush1.xpose.msra.mxu0 0.0
  %1720 = vmatprep.subr.mxu0 0.0
  %1721 = vmatpush1.xpose.msra.mxu0 0.0
  %1722 = vmatprep.subr.mxu0 0.0
  %1723 = vmatpush1.xpose.msra.mxu0 0.0
  %1724 = vmatprep.subr.mxu0 0.0
  %1725 = vmatpush1.xpose.msra.mxu0 0.0
  %1726 = vmatprep.subr.mxu0 0.0
  %1727 = vmatpush1.xpose.msra.mxu0 0.0
  %1728 = vmatprep.subr.mxu0 0.0
  %1729 = vmatpush1.xpose.msra.mxu0 0.0
  %1730 = vmatprep.subr.mxu0 0.0
  %1731 = vmatpush1.xpose.msra.mxu0 0.0
  %1732 = vmatprep.subr.mxu0 0.0
  %1733 = vmatpush1.xpose.msra.mxu0 0.0
  %1734 = vmatprep.subr.mxu0 0.0
  %1735 = vmatpush1.xpose.msra.mxu0 0.0
  %1736 = vmatprep.subr.mxu0 0.0
  %1737 = vmatpush1.xpose.msra.mxu0 0.0
  %1738 = vmatprep.subr.mxu0 0.0
  %1739 = vmatpush1.xpose.msra.mxu0 0.0
  %1740 = vmatprep.subr.mxu0 0.0
  %1741 = vmatpush1.xpose.msra.mxu0 0.0
  %1742 = vmatprep.subr.mxu0 0.0
  %1743 = vmatpush1.xpose.msra.mxu0 0.0
  %1744 = vmatprep.subr.mxu0 0.0
  %1745 = vmatpush1.xpose.msra.mxu0 0.0
  %1746 = vmatprep.subr.mxu0 0.0
  %1747 = vmatpush1.xpose.msra.mxu0 0.0
  %1748 = vmatprep.subr.mxu0 0.0
  %1749 = vmatpush1.xpose.msra.mxu0 0.0
  %1750 = vmatprep.subr.mxu0 0.0
  %1751 = vmatpush1.xpose.msra.mxu0 0.0
  %1752 = vmatprep.subr.mxu0 0.0
  %1753 = vmatpush1.xpose.msra.mxu0 0.0
  %1754 = vmatprep.subr.mxu0 0.0
  %1755 = vmatpush1.xpose.msra.mxu0 0.0
  %1756 = vmatprep.subr.mxu0 0.0
  %1757 = vmatpush1.xpose.msra.mxu0 0.0
  %1758 = vmatprep.subr.mxu0 0.0
  %1759 = vmatpush1.xpose.msra.mxu0 0.0
  %1760 = vmatprep.mubr.f32.mxu0 0.0
  %1761 = vmatmul.mubr.f32.gmra.mrb[0].mxu0 %v1688
  %v1762 = vpop.f32.mrb[0].mxu0
  %v1763 = vadd.f32 0.0, %v1762
  %v1764 = vpop.f32.mrb[0].mxu0
  %1765 = vmatprep.mubr.f32.mxu0 0.0
  %1766 = vmatmul.mubr.f32.gmra.mrb[0].mxu0 %v1690
  %v1767 = vpop.f32.mrb[0].mxu0
  %v1768 = vadd.f32 0.0, %v1767
  %v1769 = vpop.f32.mrb[0].mxu0
  %1770 = vdwg.mxu0
  %1771 = vrot.lane.b32.xlu0 %v1507, 96
  %v1772 = vpop.permute.xlu0 %1771
  %1773 = vrot.lane.b32.xlu0 %v1509, 96
  %v1774 = vpop.permute.xlu0 %1773
  %v1775 = vsel %vm198, %v1507, 0
  %v1777 = vsel %vm198, %v1509, 0
  %v1779 = vsel %vm198, %v1772, 0
  %v1781 = vsel %vm198, %v1774, 0
  %1783 = vmatprep.subr.mxu0 0.0
  %1784 = vmatpush1.xpose.msra.mxu0 %v1779
  %1785 = vmatprep.subr.mxu0 0.0
  %1786 = vmatpush1.xpose.msra.mxu0 %v1781
  %1787 = vmatprep.subr.mxu0 0.0
  %1788 = vmatpush1.xpose.msra.mxu0 0.0
  %1789 = vmatprep.subr.mxu0 0.0
  %1790 = vmatpush1.xpose.msra.mxu0 0.0
  %1791 = vmatprep.subr.mxu0 0.0
  %1792 = vmatpush1.xpose.msra.mxu0 0.0
  %1793 = vmatprep.subr.mxu0 0.0
  %1794 = vmatpush1.xpose.msra.mxu0 0.0
  %1795 = vmatprep.subr.mxu0 0.0
  %1796 = vmatpush1.xpose.msra.mxu0 0.0
  %1797 = vmatprep.subr.mxu0 0.0
  %1798 = vmatpush1.xpose.msra.mxu0 0.0
  %1799 = vmatprep.subr.mxu0 0.0
  %1800 = vmatpush1.xpose.msra.mxu0 0.0
  %1801 = vmatprep.subr.mxu0 0.0
  %1802 = vmatpush1.xpose.msra.mxu0 0.0
  %1803 = vmatprep.subr.mxu0 0.0
  %1804 = vmatpush1.xpose.msra.mxu0 0.0
  %1805 = vmatprep.subr.mxu0 0.0
  %1806 = vmatpush1.xpose.msra.mxu0 0.0
  %1807 = vmatprep.subr.mxu0 0.0
  %1808 = vmatpush1.xpose.msra.mxu0 0.0
  %1809 = vmatprep.subr.mxu0 0.0
  %1810 = vmatpush1.xpose.msra.mxu0 0.0
  %1811 = vmatprep.subr.mxu0 0.0
  %1812 = vmatpush1.xpose.msra.mxu0 0.0
  %1813 = vmatprep.subr.mxu0 0.0
  %1814 = vmatpush1.xpose.msra.mxu0 0.0
  %1815 = vmatprep.subr.mxu0 0.0
  %1816 = vmatpush1.xpose.msra.mxu0 0.0
  %1817 = vmatprep.subr.mxu0 0.0
  %1818 = vmatpush1.xpose.msra.mxu0 0.0
  %1819 = vmatprep.subr.mxu0 0.0
  %1820 = vmatpush1.xpose.msra.mxu0 0.0
  %1821 = vmatprep.subr.mxu0 0.0
  %1822 = vmatpush1.xpose.msra.mxu0 0.0
  %1823 = vmatprep.subr.mxu0 0.0
  %1824 = vmatpush1.xpose.msra.mxu0 0.0
  %1825 = vmatprep.subr.mxu0 0.0
  %1826 = vmatpush1.xpose.msra.mxu0 0.0
  %1827 = vmatprep.subr.mxu0 0.0
  %1828 = vmatpush1.xpose.msra.mxu0 0.0
  %1829 = vmatprep.subr.mxu0 0.0
  %1830 = vmatpush1.xpose.msra.mxu0 0.0
  %1831 = vmatprep.subr.mxu0 0.0
  %1832 = vmatpush1.xpose.msra.mxu0 0.0
  %1833 = vmatprep.subr.mxu0 0.0
  %1834 = vmatpush1.xpose.msra.mxu0 0.0
  %1835 = vmatprep.subr.mxu0 0.0
  %1836 = vmatpush1.xpose.msra.mxu0 0.0
  %1837 = vmatprep.subr.mxu0 0.0
  %1838 = vmatpush1.xpose.msra.mxu0 0.0
  %1839 = vmatprep.subr.mxu0 0.0
  %1840 = vmatpush1.xpose.msra.mxu0 0.0
  %1841 = vmatprep.subr.mxu0 0.0
  %1842 = vmatpush1.xpose.msra.mxu0 0.0
  %1843 = vmatprep.subr.mxu0 0.0
  %1844 = vmatpush1.xpose.msra.mxu0 0.0
  %1845 = vmatprep.subr.mxu0 0.0
  %1846 = vmatpush1.xpose.msra.mxu0 0.0
  %1847 = vmatprep.mubr.f32.mxu0 0.0
  %1848 = vmatmul.mubr.f32.gmra.mrb[0].mxu0 %v1775
  %v1849 = vpop.f32.mrb[0].mxu0
  %v1850 = vadd.f32 0.0, %v1849
  %v1851 = vpop.f32.mrb[0].mxu0
  %1852 = vmatprep.mubr.f32.mxu0 0.0
  %1853 = vmatmul.mubr.f32.gmra.mrb[0].mxu0 %v1777
  %v1854 = vpop.f32.mrb[0].mxu0
  %v1855 = vadd.f32 0.0, %v1854
  %v1856 = vpop.f32.mrb[0].mxu0
  %1857 = vdwg.mxu0
  %v1858 = vmul.f32 %v1589, 0.35355338
  %v1859 = vmul.f32 %v1594, 0.35355338
  %v1860 = vmul.f32 %v1676, 0.35355338
  %v1861 = vmul.f32 %v1681, 0.35355338
  %v1862 = vmul.f32 %v1763, 0.35355338
  %v1863 = vmul.f32 %v1768, 0.35355338
  %v1864 = vmul.f32 %v1850, 0.35355338
  %v1865 = vmul.f32 %v1855, 0.35355338
  %v1866 = vadd.f32 %v1858, %v85
  %v1867 = vadd.f32 %v1859, %v86
  %v1868 = vadd.f32 %v1860, %v85
  %v1869 = vadd.f32 %v1861, %v86
  %v1870 = vadd.f32 %v1862, %v85
  %v1871 = vadd.f32 %v1863, %v86
  %v1872 = vadd.f32 %v1864, %v85
  %v1873 = vadd.f32 %v1865, %v86
  %v1874 = vsel %vm559, %v1866, -inf
  %1875 = vmax.xlane.f32.xlu0 %v1874
  %v1876 = vpop.xlane.xlu0 %1875
  %v1877 = vsel %vm559, %v1867, -inf
  %1878 = vmax.xlane.f32.xlu0 %v1877
  %v1879 = vpop.xlane.xlu0 %1878
  %v1880 = vsel %vm559, %v1868, -inf
  %1881 = vmax.xlane.f32.xlu0 %v1880
  %v1882 = vpop.xlane.xlu0 %1881
  %v1883 = vsel %vm559, %v1869, -inf
  %1884 = vmax.xlane.f32.xlu0 %v1883
  %v1885 = vpop.xlane.xlu0 %1884
  %v1886 = vsel %vm559, %v1870, -inf
  %1887 = vmax.xlane.f32.xlu0 %v1886
  %v1888 = vpop.xlane.xlu0 %1887
  %v1889 = vsel %vm559, %v1871, -inf
  %1890 = vmax.xlane.f32.xlu0 %v1889
  %v1891 = vpop.xlane.xlu0 %1890
  %v1892 = vsel %vm559, %v1872, -inf
  %1893 = vmax.xlane.f32.xlu0 %v1892
  %v1894 = vpop.xlane.xlu0 %1893
  %v1895 = vsel %vm559, %v1873, -inf
  %1896 = vmax.xlane.f32.xlu0 %v1895
  %v1897 = vpop.xlane.xlu0 %1896
  %v1898 = vsub.f32 %v1866, %v1876
  %v1899 = vsub.f32 %v1867, %v1879
  %v1900 = vsub.f32 %v1868, %v1882
  %v1901 = vsub.f32 %v1869, %v1885
  %v1902 = vsub.f32 %v1870, %v1888
  %v1903 = vsub.f32 %v1871, %v1891
  %v1904 = vsub.f32 %v1872, %v1894
  %v1905 = vsub.f32 %v1873, %v1897
  %v1906 = vmul.f32 %v1898, 1.442695
  %v1907 = vpow.pop %v1906
  %v1908 = vmul.f32 %v1899, 1.442695
  %v1909 = vpow.pop %v1908
  %v1910 = vmul.f32 %v1900, 1.442695
  %v1911 = vpow.pop %v1910
  %v1912 = vmul.f32 %v1901, 1.442695
  %v1913 = vpow.pop %v1912
  %v1914 = vmul.f32 %v1902, 1.442695
  %v1915 = vpow.pop %v1914
  %v1916 = vmul.f32 %v1903, 1.442695
  %v1917 = vpow.pop %v1916
  %v1918 = vmul.f32 %v1904, 1.442695
  %v1919 = vpow.pop %v1918
  %v1920 = vmul.f32 %v1905, 1.442695
  %v1921 = vpow.pop %v1920
  %v1922 = vsel %vm559, %v1907, 0.0
  %1923 = vadd.xlane.f32.xlu0 %v1922
  %v1924 = vpop.xlane.xlu0 %1923
  %v1925 = vsel %vm559, %v1909, 0.0
  %1926 = vadd.xlane.f32.xlu0 %v1925
  %v1927 = vpop.xlane.xlu0 %1926
  %v1928 = vsel %vm559, %v1911, 0.0
  %1929 = vadd.xlane.f32.xlu0 %v1928
  %v1930 = vpop.xlane.xlu0 %1929
  %v1931 = vsel %vm559, %v1913, 0.0
  %1932 = vadd.xlane.f32.xlu0 %v1931
  %v1933 = vpop.xlane.xlu0 %1932
  %v1934 = vsel %vm559, %v1915, 0.0
  %1935 = vadd.xlane.f32.xlu0 %v1934
  %v1936 = vpop.xlane.xlu0 %1935
  %v1937 = vsel %vm559, %v1917, 0.0
  %1938 = vadd.xlane.f32.xlu0 %v1937
  %v1939 = vpop.xlane.xlu0 %1938
  %v1940 = vsel %vm559, %v1919, 0.0
  %1941 = vadd.xlane.f32.xlu0 %v1940
  %v1942 = vpop.xlane.xlu0 %1941
  %v1943 = vsel %vm559, %v1921, 0.0
  %1944 = vadd.xlane.f32.xlu0 %v1943
  %v1945 = vpop.xlane.xlu0 %1944
  %v1946 = vrcp.pop %v1924
  %v1947 = vrcp.pop %v1927
  %v1948 = vrcp.pop %v1930
  %v1949 = vrcp.pop %v1933
  %v1950 = vrcp.pop %v1936
  %v1951 = vrcp.pop %v1939
  %v1952 = vrcp.pop %v1942
  %v1953 = vrcp.pop %v1945
  %v1954 = vmul.f32 %v1907, %v1946
  %v1955 = vmul.f32 %v1909, %v1947
  %v1956 = vmul.f32 %v1911, %v1948
  %v1957 = vmul.f32 %v1913, %v1949
  %v1958 = vmul.f32 %v1915, %v1950
  %v1959 = vmul.f32 %v1917, %v1951
  %v1960 = vmul.f32 %v1919, %v1952
  %v1961 = vmul.f32 %v1921, %v1953
  %1962 = vrot.lane.b32.xlu0 %v1488, 64
  %v1963 = vpop.permute.xlu0 %1962
  %1964 = vrot.lane.b32.xlu0 %v1493, 64
  %v1965 = vpop.permute.xlu0 %1964
  %v1969 = vsel %vm559, %v1954, 0
  %v1972 = vsel %vm559, %v1955, 0
  %1974 = vmatprep.subr.mxu0 0.0
  %1975 = vmatpush1.msra.mxu0 %v1963
  %1976 = vmatprep.subr.mxu0 0.0
  %1977 = vmatpush1.msra.mxu0 %v1965
  %1978 = vmatprep.subr.mxu0 0.0
  %1979 = vmatpush1.msra.mxu0 0.0
  %1980 = vmatprep.subr.mxu0 0.0
  %1981 = vmatpush1.msra.mxu0 0.0
  %1982 = vmatprep.subr.mxu0 0.0
  %1983 = vmatpush1.msra.mxu0 0.0
  %1984 = vmatprep.subr.mxu0 0.0
  %1985 = vmatpush1.msra.mxu0 0.0
  %1986 = vmatprep.subr.mxu0 0.0
  %1987 = vmatpush1.msra.mxu0 0.0
  %1988 = vmatprep.subr.mxu0 0.0
  %1989 = vmatpush1.msra.mxu0 0.0
  %1990 = vmatprep.subr.mxu0 0.0
  %1991 = vmatpush1.msra.mxu0 0.0
  %1992 = vmatprep.subr.mxu0 0.0
  %1993 = vmatpush1.msra.mxu0 0.0
  %1994 = vmatprep.subr.mxu0 0.0
  %1995 = vmatpush1.msra.mxu0 0.0
  %1996 = vmatprep.subr.mxu0 0.0
  %1997 = vmatpush1.msra.mxu0 0.0
  %1998 = vmatprep.subr.mxu0 0.0
  %1999 = vmatpush1.msra.mxu0 0.0
  %2000 = vmatprep.subr.mxu0 0.0
  %2001 = vmatpush1.msra.mxu0 0.0
  %2002 = vmatprep.subr.mxu0 0.0
  %2003 = vmatpush1.msra.mxu0 0.0
  %2004 = vmatprep.subr.mxu0 0.0
  %2005 = vmatpush1.msra.mxu0 0.0
  %2006 = vmatprep.subr.mxu0 0.0
  %2007 = vmatpush1.msra.mxu0 0.0
  %2008 = vmatprep.subr.mxu0 0.0
  %2009 = vmatpush1.msra.mxu0 0.0
  %2010 = vmatprep.subr.mxu0 0.0
  %2011 = vmatpush1.msra.mxu0 0.0
  %2012 = vmatprep.subr.mxu0 0.0
  %2013 = vmatpush1.msra.mxu0 0.0
  %2014 = vmatprep.subr.mxu0 0.0
  %2015 = vmatpush1.msra.mxu0 0.0
  %2016 = vmatprep.subr.mxu0 0.0
  %2017 = vmatpush1.msra.mxu0 0.0
  %2018 = vmatprep.subr.mxu0 0.0
  %2019 = vmatpush1.msra.mxu0 0.0
  %2020 = vmatprep.subr.mxu0 0.0
  %2021 = vmatpush1.msra.mxu0 0.0
  %2022 = vmatprep.subr.mxu0 0.0
  %2023 = vmatpush1.msra.mxu0 0.0
  %2024 = vmatprep.subr.mxu0 0.0
  %2025 = vmatpush1.msra.mxu0 0.0
  %2026 = vmatprep.subr.mxu0 0.0
  %2027 = vmatpush1.msra.mxu0 0.0
  %2028 = vmatprep.subr.mxu0 0.0
  %2029 = vmatpush1.msra.mxu0 0.0
  %2030 = vmatprep.subr.mxu0 0.0
  %2031 = vmatpush1.msra.mxu0 0.0
  %2032 = vmatprep.subr.mxu0 0.0
  %2033 = vmatpush1.msra.mxu0 0.0
  %2034 = vmatprep.subr.mxu0 0.0
  %2035 = vmatpush1.msra.mxu0 0.0
  %2036 = vmatprep.subr.mxu0 0.0
  %2037 = vmatpush1.msra.mxu0 0.0
  %2038 = vmatprep.mubr.f32.mxu0 0.0
  %2039 = vmatmul.mubr.f32.gmra.mrb[0].mxu0 %v1969
  %v2040 = vpop.f32.mrb[0].mxu0
  %v2041 = vadd.f32 0.0, %v2040
  %v2042 = vpop.f32.mrb[0].mxu0
  %2043 = vmatprep.mubr.f32.mxu0 0.0
  %2044 = vmatmul.mubr.f32.gmra.mrb[0].mxu0 %v1972
  %v2045 = vpop.f32.mrb[0].mxu0
  %v2046 = vadd.f32 0.0, %v2045
  %v2047 = vpop.f32.mrb[0].mxu0
  %2048 = vdwg.mxu0
  %2049 = vrot.lane.b32.xlu0 %v1499, 64
  %v2050 = vpop.permute.xlu0 %2049
  %2051 = vrot.lane.b32.xlu0 %v1501, 64
  %v2052 = vpop.permute.xlu0 %2051
  %v2056 = vsel %vm559, %v1956, 0
  %v2059 = vsel %vm559, %v1957, 0
  %2061 = vmatprep.subr.mxu0 0.0
  %2062 = vmatpush1.msra.mxu0 %v2050
  %2063 = vmatprep.subr.mxu0 0.0
  %2064 = vmatpush1.msra.mxu0 %v2052
  %2065 = vmatprep.subr.mxu0 0.0
  %2066 = vmatpush1.msra.mxu0 0.0
  %2067 = vmatprep.subr.mxu0 0.0
  %2068 = vmatpush1.msra.mxu0 0.0
  %2069 = vmatprep.subr.mxu0 0.0
  %2070 = vmatpush1.msra.mxu0 0.0
  %2071 = vmatprep.subr.mxu0 0.0
  %2072 = vmatpush1.msra.mxu0 0.0
  %2073 = vmatprep.subr.mxu0 0.0
  %2074 = vmatpush1.msra.mxu0 0.0
  %2075 = vmatprep.subr.mxu0 0.0
  %2076 = vmatpush1.msra.mxu0 0.0
  %2077 = vmatprep.subr.mxu0 0.0
  %2078 = vmatpush1.msra.mxu0 0.0
  %2079 = vmatprep.subr.mxu0 0.0
  %2080 = vmatpush1.msra.mxu0 0.0
  %2081 = vmatprep.subr.mxu0 0.0
  %2082 = vmatpush1.msra.mxu0 0.0
  %2083 = vmatprep.subr.mxu0 0.0
  %2084 = vmatpush1.msra.mxu0 0.0
  %2085 = vmatprep.subr.mxu0 0.0
  %2086 = vmatpush1.msra.mxu0 0.0
  %2087 = vmatprep.subr.mxu0 0.0
  %2088 = vmatpush1.msra.mxu0 0.0
  %2089 = vmatprep.subr.mxu0 0.0
  %2090 = vmatpush1.msra.mxu0 0.0
  %2091 = vmatprep.subr.mxu0 0.0
  %2092 = vmatpush1.msra.mxu0 0.0
  %2093 = vmatprep.subr.mxu0 0.0
  %2094 = vmatpush1.msra.mxu0 0.0
  %2095 = vmatprep.subr.mxu0 0.0
  %2096 = vmatpush1.msra.mxu0 0.0
  %2097 = vmatprep.subr.mxu0 0.0
  %2098 = vmatpush1.msra.mxu0 0.0
  %2099 = vmatprep.subr.mxu0 0.0
  %2100 = vmatpush1.msra.mxu0 0.0
  %2101 = vmatprep.subr.mxu0 0.0
  %2102 = vmatpush1.msra.mxu0 0.0
  %2103 = vmatprep.subr.mxu0 0.0
  %2104 = vmatpush1.msra.mxu0 0.0
  %2105 = vmatprep.subr.mxu0 0.0
  %2106 = vmatpush1.msra.mxu0 0.0
  %2107 = vmatprep.subr.mxu0 0.0
  %2108 = vmatpush1.msra.mxu0 0.0
  %2109 = vmatprep.subr.mxu0 0.0
  %2110 = vmatpush1.msra.mxu0 0.0
  %2111 = vmatprep.subr.mxu0 0.0
  %2112 = vmatpush1.msra.mxu0 0.0
  %2113 = vmatprep.subr.mxu0 0.0
  %2114 = vmatpush1.msra.mxu0 0.0
  %2115 = vmatprep.subr.mxu0 0.0
  %2116 = vmatpush1.msra.mxu0 0.0
  %2117 = vmatprep.subr.mxu0 0.0
  %2118 = vmatpush1.msra.mxu0 0.0
  %2119 = vmatprep.subr.mxu0 0.0
  %2120 = vmatpush1.msra.mxu0 0.0
  %2121 = vmatprep.subr.mxu0 0.0
  %2122 = vmatpush1.msra.mxu0 0.0
  %2123 = vmatprep.subr.mxu0 0.0
  %2124 = vmatpush1.msra.mxu0 0.0
  %2125 = vmatprep.mubr.f32.mxu0 0.0
  %2126 = vmatmul.mubr.f32.gmra.mrb[0].mxu0 %v2056
  %v2127 = vpop.f32.mrb[0].mxu0
  %v2128 = vadd.f32 0.0, %v2127
  %v2129 = vpop.f32.mrb[0].mxu0
  %2130 = vmatprep.mubr.f32.mxu0 0.0
  %2131 = vmatmul.mubr.f32.gmra.mrb[0].mxu0 %v2059
  %v2132 = vpop.f32.mrb[0].mxu0
  %v2133 = vadd.f32 0.0, %v2132
  %v2134 = vpop.f32.mrb[0].mxu0
  %2135 = vdwg.mxu0
  %2136 = vrot.lane.b32.xlu0 %v1503, 64
  %v2137 = vpop.permute.xlu0 %2136
  %2138 = vrot.lane.b32.xlu0 %v1505, 64
  %v2139 = vpop.permute.xlu0 %2138
  %v2143 = vsel %vm559, %v1958, 0
  %v2146 = vsel %vm559, %v1959, 0
  %2148 = vmatprep.subr.mxu0 0.0
  %2149 = vmatpush1.msra.mxu0 %v2137
  %2150 = vmatprep.subr.mxu0 0.0
  %2151 = vmatpush1.msra.mxu0 %v2139
  %2152 = vmatprep.subr.mxu0 0.0
  %2153 = vmatpush1.msra.mxu0 0.0
  %2154 = vmatprep.subr.mxu0 0.0
  %2155 = vmatpush1.msra.mxu0 0.0
  %2156 = vmatprep.subr.mxu0 0.0
  %2157 = vmatpush1.msra.mxu0 0.0
  %2158 = vmatprep.subr.mxu0 0.0
  %2159 = vmatpush1.msra.mxu0 0.0
  %2160 = vmatprep.subr.mxu0 0.0
  %2161 = vmatpush1.msra.mxu0 0.0
  %2162 = vmatprep.subr.mxu0 0.0
  %2163 = vmatpush1.msra.mxu0 0.0
  %2164 = vmatprep.subr.mxu0 0.0
  %2165 = vmatpush1.msra.mxu0 0.0
  %2166 = vmatprep.subr.mxu0 0.0
  %2167 = vmatpush1.msra.mxu0 0.0
  %2168 = vmatprep.subr.mxu0 0.0
  %2169 = vmatpush1.msra.mxu0 0.0
  %2170 = vmatprep.subr.mxu0 0.0
  %2171 = vmatpush1.msra.mxu0 0.0
  %2172 = vmatprep.subr.mxu0 0.0
  %2173 = vmatpush1.msra.mxu0 0.0
  %2174 = vmatprep.subr.mxu0 0.0
  %2175 = vmatpush1.msra.mxu0 0.0
  %2176 = vmatprep.subr.mxu0 0.0
  %2177 = vmatpush1.msra.mxu0 0.0
  %2178 = vmatprep.subr.mxu0 0.0
  %2179 = vmatpush1.msra.mxu0 0.0
  %2180 = vmatprep.subr.mxu0 0.0
  %2181 = vmatpush1.msra.mxu0 0.0
  %2182 = vmatprep.subr.mxu0 0.0
  %2183 = vmatpush1.msra.mxu0 0.0
  %2184 = vmatprep.subr.mxu0 0.0
  %2185 = vmatpush1.msra.mxu0 0.0
  %2186 = vmatprep.subr.mxu0 0.0
  %2187 = vmatpush1.msra.mxu0 0.0
  %2188 = vmatprep.subr.mxu0 0.0
  %2189 = vmatpush1.msra.mxu0 0.0
  %2190 = vmatprep.subr.mxu0 0.0
  %2191 = vmatpush1.msra.mxu0 0.0
  %2192 = vmatprep.subr.mxu0 0.0
  %2193 = vmatpush1.msra.mxu0 0.0
  %2194 = vmatprep.subr.mxu0 0.0
  %2195 = vmatpush1.msra.mxu0 0.0
  %2196 = vmatprep.subr.mxu0 0.0
  %2197 = vmatpush1.msra.mxu0 0.0
  %2198 = vmatprep.subr.mxu0 0.0
  %2199 = vmatpush1.msra.mxu0 0.0
  %2200 = vmatprep.subr.mxu0 0.0
  %2201 = vmatpush1.msra.mxu0 0.0
  %2202 = vmatprep.subr.mxu0 0.0
  %2203 = vmatpush1.msra.mxu0 0.0
  %2204 = vmatprep.subr.mxu0 0.0
  %2205 = vmatpush1.msra.mxu0 0.0
  %2206 = vmatprep.subr.mxu0 0.0
  %2207 = vmatpush1.msra.mxu0 0.0
  %2208 = vmatprep.subr.mxu0 0.0
  %2209 = vmatpush1.msra.mxu0 0.0
  %2210 = vmatprep.subr.mxu0 0.0
  %2211 = vmatpush1.msra.mxu0 0.0
  %2212 = vmatprep.mubr.f32.mxu0 0.0
  %2213 = vmatmul.mubr.f32.gmra.mrb[0].mxu0 %v2143
  %v2214 = vpop.f32.mrb[0].mxu0
  %v2215 = vadd.f32 0.0, %v2214
  %v2216 = vpop.f32.mrb[0].mxu0
  %2217 = vmatprep.mubr.f32.mxu0 0.0
  %2218 = vmatmul.mubr.f32.gmra.mrb[0].mxu0 %v2146
  %v2219 = vpop.f32.mrb[0].mxu0
  %v2220 = vadd.f32 0.0, %v2219
  %v2221 = vpop.f32.mrb[0].mxu0
  %2222 = vdwg.mxu0
  %2223 = vrot.lane.b32.xlu0 %v1507, 64
  %v2224 = vpop.permute.xlu0 %2223
  %2225 = vrot.lane.b32.xlu0 %v1509, 64
  %v2226 = vpop.permute.xlu0 %2225
  %v2230 = vsel %vm559, %v1960, 0
  %v2233 = vsel %vm559, %v1961, 0
  %2235 = vmatprep.subr.mxu0 0.0
  %2236 = vmatpush1.msra.mxu0 %v2224
  %2237 = vmatprep.subr.mxu0 0.0
  %2238 = vmatpush1.msra.mxu0 %v2226
  %2239 = vmatprep.subr.mxu0 0.0
  %2240 = vmatpush1.msra.mxu0 0.0
  %2241 = vmatprep.subr.mxu0 0.0
  %2242 = vmatpush1.msra.mxu0 0.0
  %2243 = vmatprep.subr.mxu0 0.0
  %2244 = vmatpush1.msra.mxu0 0.0
  %2245 = vmatprep.subr.mxu0 0.0
  %2246 = vmatpush1.msra.mxu0 0.0
  %2247 = vmatprep.subr.mxu0 0.0
  %2248 = vmatpush1.msra.mxu0 0.0
  %2249 = vmatprep.subr.mxu0 0.0
  %2250 = vmatpush1.msra.mxu0 0.0
  %2251 = vmatprep.subr.mxu0 0.0
  %2252 = vmatpush1.msra.mxu0 0.0
  %2253 = vmatprep.subr.mxu0 0.0
  %2254 = vmatpush1.msra.mxu0 0.0
  %2255 = vmatprep.subr.mxu0 0.0
  %2256 = vmatpush1.msra.mxu0 0.0
  %2257 = vmatprep.subr.mxu0 0.0
  %2258 = vmatpush1.msra.mxu0 0.0
  %2259 = vmatprep.subr.mxu0 0.0
  %2260 = vmatpush1.msra.mxu0 0.0
  %2261 = vmatprep.subr.mxu0 0.0
  %2262 = vmatpush1.msra.mxu0 0.0
  %2263 = vmatprep.subr.mxu0 0.0
  %2264 = vmatpush1.msra.mxu0 0.0
  %2265 = vmatprep.subr.mxu0 0.0
  %2266 = vmatpush1.msra.mxu0 0.0
  %2267 = vmatprep.subr.mxu0 0.0
  %2268 = vmatpush1.msra.mxu0 0.0
  %2269 = vmatprep.subr.mxu0 0.0
  %2270 = vmatpush1.msra.mxu0 0.0
  %2271 = vmatprep.subr.mxu0 0.0
  %2272 = vmatpush1.msra.mxu0 0.0
  %2273 = vmatprep.subr.mxu0 0.0
  %2274 = vmatpush1.msra.mxu0 0.0
  %2275 = vmatprep.subr.mxu0 0.0
  %2276 = vmatpush1.msra.mxu0 0.0
  %2277 = vmatprep.subr.mxu0 0.0
  %2278 = vmatpush1.msra.mxu0 0.0
  %2279 = vmatprep.subr.mxu0 0.0
  %2280 = vmatpush1.msra.mxu0 0.0
  %2281 = vmatprep.subr.mxu0 0.0
  %2282 = vmatpush1.msra.mxu0 0.0
  %2283 = vmatprep.subr.mxu0 0.0
  %2284 = vmatpush1.msra.mxu0 0.0
  %2285 = vmatprep.subr.mxu0 0.0
  %2286 = vmatpush1.msra.mxu0 0.0
  %2287 = vmatprep.subr.mxu0 0.0
  %2288 = vmatpush1.msra.mxu0 0.0
  %2289 = vmatprep.subr.mxu0 0.0
  %2290 = vmatpush1.msra.mxu0 0.0
  %2291 = vmatprep.subr.mxu0 0.0
  %2292 = vmatpush1.msra.mxu0 0.0
  %2293 = vmatprep.subr.mxu0 0.0
  %2294 = vmatpush1.msra.mxu0 0.0
  %2295 = vmatprep.subr.mxu0 0.0
  %2296 = vmatpush1.msra.mxu0 0.0
  %2297 = vmatprep.subr.mxu0 0.0
  %2298 = vmatpush1.msra.mxu0 0.0
  %2299 = vmatprep.mubr.f32.mxu0 0.0
  %2300 = vmatmul.mubr.f32.gmra.mrb[0].mxu0 %v2230
  %v2301 = vpop.f32.mrb[0].mxu0
  %v2302 = vadd.f32 0.0, %v2301
  %v2303 = vpop.f32.mrb[0].mxu0
  %2304 = vmatprep.mubr.f32.mxu0 0.0
  %2305 = vmatmul.mubr.f32.gmra.mrb[0].mxu0 %v2233
  %v2306 = vpop.f32.mrb[0].mxu0
  %v2307 = vadd.f32 0.0, %v2306
  %v2308 = vpop.f32.mrb[0].mxu0
  %2309 = vdwg.mxu0
  %2312 = vrot.lane.b32.xlu0 %v2128, 8
  %v2313 = vpop.permute.xlu0 %2312
  %2314 = vrot.lane.b32.xlu0 %v2133, 8
  %v2315 = vpop.permute.xlu0 %2314
  %2320 = vrot.lane.b32.xlu0 %v2215, 16
  %v2321 = vpop.permute.xlu0 %2320
  %2322 = vrot.lane.b32.xlu0 %v2220, 16
  %v2323 = vpop.permute.xlu0 %2322
  %2328 = vrot.lane.b32.xlu0 %v2302, 24
  %v2329 = vpop.permute.xlu0 %2328
  %2330 = vrot.lane.b32.xlu0 %v2307, 24
  %v2331 = vpop.permute.xlu0 %2330
  %v2334 = vsel %vm198, %v2041, %v2313
  %v2335 = vsel %vm198, %v2046, %v2315
  %v2336 = vsel %vm559, %v2334, %v2321
  %v2337 = vsel %vm559, %v2335, %v2323
  %v2338 = vsel %vm1024, %v2336, %v2329
  %v2339 = vsel %vm1024, %v2337, %v2331
  %s2340 = scalar_lea.vmem %s5, 32
  %v2341 = vld [vmem:[%s2340] sm:$0xff]
  %v2342 = vld [vmem:[%s2340 + $0x8] sm:$0xff]
  %v2343 = vld [vmem:[%s2340 + $0x10] sm:$0xff]
  %v2344 = vld [vmem:[%s2340 + $0x18] sm:$0xff]
  %v2345 = vlaneseq
  %v2346 = vshrl.u32 %v2345, 7
  %v2347 = vsub.s32 0, %v2346
  %v2348 = vrot.slane %v1401, %v2347
  %v2350 = vsel %vm45, %v2338, 0
  %v2353 = vsel %vm45, %v2339, 0
  %2355 = vmatprep.subr.mxu0 0.0
  %2356 = vmatpush1.msra.mxu0 %v2341
  %2357 = vmatprep.subr.mxu0 0.0
  %2358 = vmatpush1.msra.mxu0 %v2342
  %2359 = vmatprep.subr.mxu0 0.0
  %2360 = vmatpush1.msra.mxu0 %v2343
  %2361 = vmatprep.subr.mxu0 0.0
  %2362 = vmatpush1.msra.mxu0 %v2344
  %2363 = vmatprep.subr.mxu0 0.0
  %2364 = vmatpush1.msra.mxu0 0.0
  %2365 = vmatprep.subr.mxu0 0.0
  %2366 = vmatpush1.msra.mxu0 0.0
  %2367 = vmatprep.subr.mxu0 0.0
  %2368 = vmatpush1.msra.mxu0 0.0
  %2369 = vmatprep.subr.mxu0 0.0
  %2370 = vmatpush1.msra.mxu0 0.0
  %2371 = vmatprep.subr.mxu0 0.0
  %2372 = vmatpush1.msra.mxu0 0.0
  %2373 = vmatprep.subr.mxu0 0.0
  %2374 = vmatpush1.msra.mxu0 0.0
  %2375 = vmatprep.subr.mxu0 0.0
  %2376 = vmatpush1.msra.mxu0 0.0
  %2377 = vmatprep.subr.mxu0 0.0
  %2378 = vmatpush1.msra.mxu0 0.0
  %2379 = vmatprep.subr.mxu0 0.0
  %2380 = vmatpush1.msra.mxu0 0.0
  %2381 = vmatprep.subr.mxu0 0.0
  %2382 = vmatpush1.msra.mxu0 0.0
  %2383 = vmatprep.subr.mxu0 0.0
  %2384 = vmatpush1.msra.mxu0 0.0
  %2385 = vmatprep.subr.mxu0 0.0
  %2386 = vmatpush1.msra.mxu0 0.0
  %2387 = vmatprep.subr.mxu0 0.0
  %2388 = vmatpush1.msra.mxu0 0.0
  %2389 = vmatprep.subr.mxu0 0.0
  %2390 = vmatpush1.msra.mxu0 0.0
  %2391 = vmatprep.subr.mxu0 0.0
  %2392 = vmatpush1.msra.mxu0 0.0
  %2393 = vmatprep.subr.mxu0 0.0
  %2394 = vmatpush1.msra.mxu0 0.0
  %2395 = vmatprep.subr.mxu0 0.0
  %2396 = vmatpush1.msra.mxu0 0.0
  %2397 = vmatprep.subr.mxu0 0.0
  %2398 = vmatpush1.msra.mxu0 0.0
  %2399 = vmatprep.subr.mxu0 0.0
  %2400 = vmatpush1.msra.mxu0 0.0
  %2401 = vmatprep.subr.mxu0 0.0
  %2402 = vmatpush1.msra.mxu0 0.0
  %2403 = vmatprep.subr.mxu0 0.0
  %2404 = vmatpush1.msra.mxu0 0.0
  %2405 = vmatprep.subr.mxu0 0.0
  %2406 = vmatpush1.msra.mxu0 0.0
  %2407 = vmatprep.subr.mxu0 0.0
  %2408 = vmatpush1.msra.mxu0 0.0
  %2409 = vmatprep.subr.mxu0 0.0
  %2410 = vmatpush1.msra.mxu0 0.0
  %2411 = vmatprep.subr.mxu0 0.0
  %2412 = vmatpush1.msra.mxu0 0.0
  %2413 = vmatprep.subr.mxu0 0.0
  %2414 = vmatpush1.msra.mxu0 0.0
  %2415 = vmatprep.subr.mxu0 0.0
  %2416 = vmatpush1.msra.mxu0 0.0
  %2417 = vmatprep.subr.mxu0 0.0
  %2418 = vmatpush1.msra.mxu0 0.0
  %2419 = vmatprep.mubr.f32.mxu0 0.0
  %2420 = vmatmul.mubr.f32.gmra.mrb[0].mxu0 %v2350
  %v2421 = vpop.f32.mrb[0].mxu0
  %v2422 = vadd.f32 %v2348, %v2421
  %v2423 = vpop.f32.mrb[0].mxu0
  %2424 = vmatprep.mubr.f32.mxu0 0.0
  %2425 = vmatmul.mubr.f32.gmra.mrb[0].mxu0 %v2353
  %v2426 = vpop.f32.mrb[0].mxu0
  %v2427 = vadd.f32 %v2348, %v2426
  %v2428 = vpop.f32.mrb[0].mxu0
  %2429 = vdwg.mxu0
  %v2430 = vadd.f32 %v1398, %v2422
  %v2431 = vadd.f32 %v1399, %v2427
  %v2432 = vsel %vm45, %v2430, 0.0
  %2433 = vadd.xlane.f32.xlu0 %v2432
  %v2434 = vpop.xlane.xlu0 %2433
  %v2435 = vsel %vm45, %v2431, 0.0
  %2436 = vadd.xlane.f32.xlu0 %v2435
  %v2437 = vpop.xlane.xlu0 %2436
  %v2438 = vmul.f32 %v2434, %v52
  %v2439 = vmul.f32 %v2437, %v52
  %v2440 = vsub.f32 %v2430, %v2438
  %v2441 = vsub.f32 %v2431, %v2439
  %v2442 = vmul.f32 %v2440, %v2440
  %v2443 = vmul.f32 %v2441, %v2441
  %v2444 = vsel %vm45, %v2442, 0.0
  %2445 = vadd.xlane.f32.xlu0 %v2444
  %v2446 = vpop.xlane.xlu0 %2445
  %v2447 = vsel %vm45, %v2443, 0.0
  %2448 = vadd.xlane.f32.xlu0 %v2447
  %v2449 = vpop.xlane.xlu0 %2448
  %v2450 = vmul.f32 %v2446, %v52
  %v2451 = vmul.f32 %v2449, %v52
  %v2452 = vadd.f32 %v2450, 1e-12
  %v2453 = vadd.f32 %v2451, 1e-12
  %v2454 = vrsqrt.pop %v2452
  %v2455 = vrsqrt.pop %v2453
  %v2456 = vmul.f32 %v2440, %v2454
  %v2457 = vmul.f32 %v2441, %v2455
  %v2458 = vlaneseq
  %v2459 = vshrl.u32 %v2458, 7
  %v2460 = vsub.s32 1, %v2459
  %v2461 = vrot.slane %v1401, %v2460
  %v2462 = vmul.f32 %v2456, %v2461
  %v2463 = vmul.f32 %v2457, %v2461
  %v2464 = vlaneseq
  %v2465 = vshrl.u32 %v2464, 7
  %v2466 = vsub.s32 2, %v2465
  %v2467 = vrot.slane %v1401, %v2466
  %v2468 = vadd.f32 %v2462, %v2467
  %v2469 = vadd.f32 %v2463, %v2467
  %s2470 = scalar_lea.vmem %s6, 32
  %v2471 = vld [vmem:[%s2470] sm:$0xff]
  %v2472 = vld [vmem:[%s2470 + $0x8] sm:$0xff]
  %v2473 = vld [vmem:[%s2470 + $0x10] sm:$0xff]
  %v2474 = vld [vmem:[%s2470 + $0x18] sm:$0xff]
  %s2475 = scalar_lea.vmem %s7, 1
  %v2476 = vld [vmem:[%s2475] sm:$0x1]
  %v2478 = vlaneseq
  %v2479 = vshrl.u32 %v2478, 7
  %v2480 = vsub.s32 0, %v2479
  %v2481 = vrot.slane %v2476, %v2480
  %v2484 = vsel %vm45, %v2468, 0
  %v2487 = vsel %vm45, %v2469, 0
  %2489 = vmatprep.subr.mxu0 0.0
  %2490 = vmatpush1.msra.mxu0 %v2471
  %2491 = vmatprep.subr.mxu0 0.0
  %2492 = vmatpush1.msra.mxu0 %v2472
  %2493 = vmatprep.subr.mxu0 0.0
  %2494 = vmatpush1.msra.mxu0 %v2473
  %2495 = vmatprep.subr.mxu0 0.0
  %2496 = vmatpush1.msra.mxu0 %v2474
  %2497 = vmatprep.subr.mxu0 0.0
  %2498 = vmatpush1.msra.mxu0 0.0
  %2499 = vmatprep.subr.mxu0 0.0
  %2500 = vmatpush1.msra.mxu0 0.0
  %2501 = vmatprep.subr.mxu0 0.0
  %2502 = vmatpush1.msra.mxu0 0.0
  %2503 = vmatprep.subr.mxu0 0.0
  %2504 = vmatpush1.msra.mxu0 0.0
  %2505 = vmatprep.subr.mxu0 0.0
  %2506 = vmatpush1.msra.mxu0 0.0
  %2507 = vmatprep.subr.mxu0 0.0
  %2508 = vmatpush1.msra.mxu0 0.0
  %2509 = vmatprep.subr.mxu0 0.0
  %2510 = vmatpush1.msra.mxu0 0.0
  %2511 = vmatprep.subr.mxu0 0.0
  %2512 = vmatpush1.msra.mxu0 0.0
  %2513 = vmatprep.subr.mxu0 0.0
  %2514 = vmatpush1.msra.mxu0 0.0
  %2515 = vmatprep.subr.mxu0 0.0
  %2516 = vmatpush1.msra.mxu0 0.0
  %2517 = vmatprep.subr.mxu0 0.0
  %2518 = vmatpush1.msra.mxu0 0.0
  %2519 = vmatprep.subr.mxu0 0.0
  %2520 = vmatpush1.msra.mxu0 0.0
  %2521 = vmatprep.subr.mxu0 0.0
  %2522 = vmatpush1.msra.mxu0 0.0
  %2523 = vmatprep.subr.mxu0 0.0
  %2524 = vmatpush1.msra.mxu0 0.0
  %2525 = vmatprep.subr.mxu0 0.0
  %2526 = vmatpush1.msra.mxu0 0.0
  %2527 = vmatprep.subr.mxu0 0.0
  %2528 = vmatpush1.msra.mxu0 0.0
  %2529 = vmatprep.subr.mxu0 0.0
  %2530 = vmatpush1.msra.mxu0 0.0
  %2531 = vmatprep.subr.mxu0 0.0
  %2532 = vmatpush1.msra.mxu0 0.0
  %2533 = vmatprep.subr.mxu0 0.0
  %2534 = vmatpush1.msra.mxu0 0.0
  %2535 = vmatprep.subr.mxu0 0.0
  %2536 = vmatpush1.msra.mxu0 0.0
  %2537 = vmatprep.subr.mxu0 0.0
  %2538 = vmatpush1.msra.mxu0 0.0
  %2539 = vmatprep.subr.mxu0 0.0
  %2540 = vmatpush1.msra.mxu0 0.0
  %2541 = vmatprep.subr.mxu0 0.0
  %2542 = vmatpush1.msra.mxu0 0.0
  %2543 = vmatprep.subr.mxu0 0.0
  %2544 = vmatpush1.msra.mxu0 0.0
  %2545 = vmatprep.subr.mxu0 0.0
  %2546 = vmatpush1.msra.mxu0 0.0
  %2547 = vmatprep.subr.mxu0 0.0
  %2548 = vmatpush1.msra.mxu0 0.0
  %2549 = vmatprep.subr.mxu0 0.0
  %2550 = vmatpush1.msra.mxu0 0.0
  %2551 = vmatprep.subr.mxu0 0.0
  %2552 = vmatpush1.msra.mxu0 0.0
  %2553 = vmatprep.mubr.f32.mxu0 0.0
  %2554 = vmatmul.mubr.f32.gmra.mrb[0].mxu0 %v2484
  %v2555 = vpop.f32.mrb[0].mxu0
  %v2556 = vadd.f32 %v2481, %v2555
  %v2557 = vpop.f32.mrb[0].mxu0
  %2558 = vmatprep.mubr.f32.mxu0 0.0
  %2559 = vmatmul.mubr.f32.gmra.mrb[0].mxu0 %v2487
  %v2560 = vpop.f32.mrb[0].mxu0
  %v2561 = vadd.f32 %v2481, %v2560
  %v2562 = vpop.f32.mrb[0].mxu0
  %2563 = vdwg.mxu0
  %v2564 = vmul.f32 %v2556, %v2556
  %v2565 = vmul.f32 %v2561, %v2561
  %v2566 = vmul.f32 %v2556, %v2564
  %v2567 = vmul.f32 %v2561, %v2565
  %v2568 = vmul.f32 %v2566, 0.044715
  %v2569 = vmul.f32 %v2567, 0.044715
  %v2570 = vadd.f32 %v2556, %v2568
  %v2571 = vadd.f32 %v2561, %v2569
  %v2572 = vmul.f32 %v2570, 0.7978846
  %v2573 = vmul.f32 %v2571, 0.7978846
  %v2574 = vtanh.pop %v2572
  %v2575 = vtanh.pop %v2573
  %v2576 = vadd.f32 %v2574, 1.0
  %v2577 = vadd.f32 %v2575, 1.0
  %v2578 = vmul.f32 %v2576, 0.5
  %v2579 = vmul.f32 %v2577, 0.5
  %v2580 = vmul.f32 %v2556, %v2578
  %v2581 = vmul.f32 %v2561, %v2579
  %s2582 = scalar_lea.vmem %s8, 64
  %v2583 = vld [vmem:[%s2582] sm:$0xff]
  %v2584 = vld [vmem:[%s2582 + $0x8] sm:$0xff]
  %v2585 = vld [vmem:[%s2582 + $0x10] sm:$0xff]
  %v2586 = vld [vmem:[%s2582 + $0x18] sm:$0xff]
  %v2587 = vld [vmem:[%s2582 + $0x20] sm:$0xff]
  %v2588 = vld [vmem:[%s2582 + $0x28] sm:$0xff]
  %v2589 = vld [vmem:[%s2582 + $0x30] sm:$0xff]
  %v2590 = vld [vmem:[%s2582 + $0x38] sm:$0xff]
  %v2591 = vlaneseq
  %v2592 = vshrl.u32 %v2591, 7
  %v2593 = vsub.s32 3, %v2592
  %v2594 = vrot.slane %v1401, %v2593
  %v2596 = vsel %vm1278, %v2580, 0
  %v2599 = vsel %vm1278, %v2581, 0
  %2601 = vmatprep.subr.mxu0 0.0
  %2602 = vmatpush1.msra.mxu0 %v2583
  %2603 = vmatprep.subr.mxu0 0.0
  %2604 = vmatpush1.msra.mxu0 %v2584
  %2605 = vmatprep.subr.mxu0 0.0
  %2606 = vmatpush1.msra.mxu0 %v2585
  %2607 = vmatprep.subr.mxu0 0.0
  %2608 = vmatpush1.msra.mxu0 %v2586
  %2609 = vmatprep.subr.mxu0 0.0
  %2610 = vmatpush1.msra.mxu0 %v2587
  %2611 = vmatprep.subr.mxu0 0.0
  %2612 = vmatpush1.msra.mxu0 %v2588
  %2613 = vmatprep.subr.mxu0 0.0
  %2614 = vmatpush1.msra.mxu0 %v2589
  %2615 = vmatprep.subr.mxu0 0.0
  %2616 = vmatpush1.msra.mxu0 %v2590
  %2617 = vmatprep.subr.mxu0 0.0
  %2618 = vmatpush1.msra.mxu0 0.0
  %2619 = vmatprep.subr.mxu0 0.0
  %2620 = vmatpush1.msra.mxu0 0.0
  %2621 = vmatprep.subr.mxu0 0.0
  %2622 = vmatpush1.msra.mxu0 0.0
  %2623 = vmatprep.subr.mxu0 0.0
  %2624 = vmatpush1.msra.mxu0 0.0
  %2625 = vmatprep.subr.mxu0 0.0
  %2626 = vmatpush1.msra.mxu0 0.0
  %2627 = vmatprep.subr.mxu0 0.0
  %2628 = vmatpush1.msra.mxu0 0.0
  %2629 = vmatprep.subr.mxu0 0.0
  %2630 = vmatpush1.msra.mxu0 0.0
  %2631 = vmatprep.subr.mxu0 0.0
  %2632 = vmatpush1.msra.mxu0 0.0
  %2633 = vmatprep.subr.mxu0 0.0
  %2634 = vmatpush1.msra.mxu0 0.0
  %2635 = vmatprep.subr.mxu0 0.0
  %2636 = vmatpush1.msra.mxu0 0.0
  %2637 = vmatprep.subr.mxu0 0.0
  %2638 = vmatpush1.msra.mxu0 0.0
  %2639 = vmatprep.subr.mxu0 0.0
  %2640 = vmatpush1.msra.mxu0 0.0
  %2641 = vmatprep.subr.mxu0 0.0
  %2642 = vmatpush1.msra.mxu0 0.0
  %2643 = vmatprep.subr.mxu0 0.0
  %2644 = vmatpush1.msra.mxu0 0.0
  %2645 = vmatprep.subr.mxu0 0.0
  %2646 = vmatpush1.msra.mxu0 0.0
  %2647 = vmatprep.subr.mxu0 0.0
  %2648 = vmatpush1.msra.mxu0 0.0
  %2649 = vmatprep.subr.mxu0 0.0
  %2650 = vmatpush1.msra.mxu0 0.0
  %2651 = vmatprep.subr.mxu0 0.0
  %2652 = vmatpush1.msra.mxu0 0.0
  %2653 = vmatprep.subr.mxu0 0.0
  %2654 = vmatpush1.msra.mxu0 0.0
  %2655 = vmatprep.subr.mxu0 0.0
  %2656 = vmatpush1.msra.mxu0 0.0
  %2657 = vmatprep.subr.mxu0 0.0
  %2658 = vmatpush1.msra.mxu0 0.0
  %2659 = vmatprep.subr.mxu0 0.0
  %2660 = vmatpush1.msra.mxu0 0.0
  %2661 = vmatprep.subr.mxu0 0.0
  %2662 = vmatpush1.msra.mxu0 0.0
  %2663 = vmatprep.subr.mxu0 0.0
  %2664 = vmatpush1.msra.mxu0 0.0
  %2665 = vmatprep.mubr.f32.mxu0 0.0
  %2666 = vmatmul.mubr.f32.gmra.mrb[0].mxu0 %v2596
  %v2667 = vpop.f32.mrb[0].mxu0
  %v2668 = vadd.f32 %v2594, %v2667
  %v2669 = vpop.f32.mrb[0].mxu0
  %2670 = vmatprep.mubr.f32.mxu0 0.0
  %2671 = vmatmul.mubr.f32.gmra.mrb[0].mxu0 %v2599
  %v2672 = vpop.f32.mrb[0].mxu0
  %v2673 = vadd.f32 %v2594, %v2672
  %v2674 = vpop.f32.mrb[0].mxu0
  %2675 = vdwg.mxu0
  %v2676 = vadd.f32 %v2468, %v2668
  %v2677 = vadd.f32 %v2469, %v2673
  %v2678 = vsel %vm45, %v2676, 0.0
  %2679 = vadd.xlane.f32.xlu0 %v2678
  %v2680 = vpop.xlane.xlu0 %2679
  %v2681 = vsel %vm45, %v2677, 0.0
  %2682 = vadd.xlane.f32.xlu0 %v2681
  %v2683 = vpop.xlane.xlu0 %2682
  %v2684 = vmul.f32 %v2680, %v52
  %v2685 = vmul.f32 %v2683, %v52
  %v2686 = vsub.f32 %v2676, %v2684
  %v2687 = vsub.f32 %v2677, %v2685
  %v2688 = vmul.f32 %v2686, %v2686
  %v2689 = vmul.f32 %v2687, %v2687
  %v2690 = vsel %vm45, %v2688, 0.0
  %2691 = vadd.xlane.f32.xlu0 %v2690
  %v2692 = vpop.xlane.xlu0 %2691
  %v2693 = vsel %vm45, %v2689, 0.0
  %2694 = vadd.xlane.f32.xlu0 %v2693
  %v2695 = vpop.xlane.xlu0 %2694
  %v2696 = vmul.f32 %v2692, %v52
  %v2697 = vmul.f32 %v2695, %v52
  %v2698 = vadd.f32 %v2696, 1e-12
  %v2699 = vadd.f32 %v2697, 1e-12
  %v2700 = vrsqrt.pop %v2698
  %v2701 = vrsqrt.pop %v2699
  %v2702 = vmul.f32 %v2686, %v2700
  %v2703 = vmul.f32 %v2687, %v2701
  %v2704 = vlaneseq
  %v2705 = vshrl.u32 %v2704, 7
  %v2706 = vsub.s32 4, %v2705
  %v2707 = vrot.slane %v1401, %v2706
  %v2708 = vmul.f32 %v2702, %v2707
  %v2709 = vmul.f32 %v2703, %v2707
  %v2710 = vlaneseq
  %v2711 = vshrl.u32 %v2710, 7
  %v2712 = vsub.s32 5, %v2711
  %v2713 = vrot.slane %v1401, %v2712
  %v2714 = vadd.f32 %v2708, %v2713
  %v2715 = vadd.f32 %v2709, %v2713
  %v2716 = vld [vmem:[%s10] sm:$0xff]
  %v2717 = vld [vmem:[%s10 + $0x8] sm:$0xff]
  %v2718 = vld [vmem:[%s10 + $0x10] sm:$0xff]
  %v2719 = vld [vmem:[%s10 + $0x18] sm:$0xff]
  %v2720 = vld [vmem:[%s11] sm:$0x1]
  %v2722 = vlaneseq
  %v2723 = vshrl.u32 %v2722, 7
  %v2724 = vsub.s32 0, %v2723
  %v2725 = vrot.slane %v2720, %v2724
  %v2728 = vsel %vm45, %v2714, 0
  %v2731 = vsel %vm45, %v2715, 0
  %2733 = vmatprep.subr.mxu0 0.0
  %2734 = vmatpush1.msra.mxu0 %v2716
  %2735 = vmatprep.subr.mxu0 0.0
  %2736 = vmatpush1.msra.mxu0 %v2717
  %2737 = vmatprep.subr.mxu0 0.0
  %2738 = vmatpush1.msra.mxu0 %v2718
  %2739 = vmatprep.subr.mxu0 0.0
  %2740 = vmatpush1.msra.mxu0 %v2719
  %2741 = vmatprep.subr.mxu0 0.0
  %2742 = vmatpush1.msra.mxu0 0.0
  %2743 = vmatprep.subr.mxu0 0.0
  %2744 = vmatpush1.msra.mxu0 0.0
  %2745 = vmatprep.subr.mxu0 0.0
  %2746 = vmatpush1.msra.mxu0 0.0
  %2747 = vmatprep.subr.mxu0 0.0
  %2748 = vmatpush1.msra.mxu0 0.0
  %2749 = vmatprep.subr.mxu0 0.0
  %2750 = vmatpush1.msra.mxu0 0.0
  %2751 = vmatprep.subr.mxu0 0.0
  %2752 = vmatpush1.msra.mxu0 0.0
  %2753 = vmatprep.subr.mxu0 0.0
  %2754 = vmatpush1.msra.mxu0 0.0
  %2755 = vmatprep.subr.mxu0 0.0
  %2756 = vmatpush1.msra.mxu0 0.0
  %2757 = vmatprep.subr.mxu0 0.0
  %2758 = vmatpush1.msra.mxu0 0.0
  %2759 = vmatprep.subr.mxu0 0.0
  %2760 = vmatpush1.msra.mxu0 0.0
  %2761 = vmatprep.subr.mxu0 0.0
  %2762 = vmatpush1.msra.mxu0 0.0
  %2763 = vmatprep.subr.mxu0 0.0
  %2764 = vmatpush1.msra.mxu0 0.0
  %2765 = vmatprep.subr.mxu0 0.0
  %2766 = vmatpush1.msra.mxu0 0.0
  %2767 = vmatprep.subr.mxu0 0.0
  %2768 = vmatpush1.msra.mxu0 0.0
  %2769 = vmatprep.subr.mxu0 0.0
  %2770 = vmatpush1.msra.mxu0 0.0
  %2771 = vmatprep.subr.mxu0 0.0
  %2772 = vmatpush1.msra.mxu0 0.0
  %2773 = vmatprep.subr.mxu0 0.0
  %2774 = vmatpush1.msra.mxu0 0.0
  %2775 = vmatprep.subr.mxu0 0.0
  %2776 = vmatpush1.msra.mxu0 0.0
  %2777 = vmatprep.subr.mxu0 0.0
  %2778 = vmatpush1.msra.mxu0 0.0
  %2779 = vmatprep.subr.mxu0 0.0
  %2780 = vmatpush1.msra.mxu0 0.0
  %2781 = vmatprep.subr.mxu0 0.0
  %2782 = vmatpush1.msra.mxu0 0.0
  %2783 = vmatprep.subr.mxu0 0.0
  %2784 = vmatpush1.msra.mxu0 0.0
  %2785 = vmatprep.subr.mxu0 0.0
  %2786 = vmatpush1.msra.mxu0 0.0
  %2787 = vmatprep.subr.mxu0 0.0
  %2788 = vmatpush1.msra.mxu0 0.0
  %2789 = vmatprep.subr.mxu0 0.0
  %2790 = vmatpush1.msra.mxu0 0.0
  %2791 = vmatprep.subr.mxu0 0.0
  %2792 = vmatpush1.msra.mxu0 0.0
  %2793 = vmatprep.subr.mxu0 0.0
  %2794 = vmatpush1.msra.mxu0 0.0
  %2795 = vmatprep.subr.mxu0 0.0
  %2796 = vmatpush1.msra.mxu0 0.0
  %2797 = vmatprep.mubr.f32.mxu0 0.0
  %2798 = vmatmul.mubr.f32.gmra.mrb[0].mxu0 %v2728
  %v2799 = vpop.f32.mrb[0].mxu0
  %v2800 = vadd.f32 %v2725, %v2799
  %v2801 = vpop.f32.mrb[0].mxu0
  %2802 = vmatprep.mubr.f32.mxu0 0.0
  %2803 = vmatmul.mubr.f32.gmra.mrb[0].mxu0 %v2731
  %v2804 = vpop.f32.mrb[0].mxu0
  %v2805 = vadd.f32 %v2725, %v2804
  %v2806 = vpop.f32.mrb[0].mxu0
  %2807 = vdwg.mxu0
  %2808 = vst [vmem:[%s12] sm:$0xff] %v2800
  %2809 = vst [vmem:[%s12 + $0x8] sm:$0xff] %v2805
  // Predicated region
  $region50: #{bert_model_forward.1} parent=0 // pred_check
    _
  $region51: #{bert_model_forward.1} parent=0 // pred_check_branch
    %2811 = sbr.rel (0) target = $region53
  $region52: #{bert_model_forward.1} parent=0 // pred_region
    _
  $region53: #{bert_model_forward.1} parent=0 // pred_fallthru
    _
  // Predicated region
  $region54: #{bert_model_forward.1} parent=0 // pred_check
    _
  $region55: #{bert_model_forward.1} parent=0 // pred_check_branch
    %2813 = sbr.rel (0) target = $region57
  $region56: #{bert_model_forward.1} parent=0 // pred_region
    _
  $region57: #{bert_model_forward.1} parent=0 // pred_fallthru
    _

</llo_original>
